<compile_context>
chip_gen: v7x
topology: tpu7x:2x2x1
jax: 0.10.0
libtpu: 0.0.40
codegen_flags: <defaults>
</compile_context>

<pallas_src>
import jax
import jax.numpy as jnp
from jax.experimental import pallas as pl
from jax.experimental.pallas import tpu as pltpu

HIDDEN = 32
OUTPUT_DIM = 1
DROPOUT_P = 0.1
N_LAYERS = 3  # layers[0], layers[1], final_rnn


# ----------------------- fused 3-layer LSTM + head kernel ----------------------
def lstm_stack_kernel(x_ref, w_ref, b_ref, wm_ref, o_ref):
    # x_ref : (T, BT, H)     bf16, input features zero-padded from D to H
    # w_ref : (3, 2H, 4H)    bf16; per layer rows [0:H]=W_ih^T (padded), [H:2H]=W_hh^T;
    #                        g-gate columns pre-scaled by 2 (tanh-from-sigmoid identity)
    # b_ref : (4, 4H)        f32; rows 0..2 = b_ih+b_hh per layer (g cols x2);
    #                        b_ref[3, 0] = output Linear bias
    # wm_ref: (BT, H)        f32; scaled dropout mask * W_out (head weight, dropout folded in)
    # o_ref : (BT, 1)        f32
    T, BT, H = x_ref.shape

    def lstm_layer(layer, xs):
        """One LSTM layer over the (fully unrolled) sequence.

        xs: list of T arrays, each (BT, H) bf16 (MXU operands).
        Returns list of T hidden states, each (BT, H) f32.
        """
        wl = w_ref[layer]                    # (2H, 4H) bf16, loaded once per layer
        w_ih = wl[:H]                        # clean packed-sublane slices, no relayout
        w_hh = wl[H:]
        b = b_ref[pl.ds(layer, 1), :]        # (1, 4H) f32
        h = jnp.zeros((BT, H), jnp.float32)
        c = jnp.zeros((BT, H), jnp.float32)
        hs = []
        for t in range(T):                   # T static & small -> full unroll, one BB
            # Input projection has no dependence on the recurrence; the scheduler
            # overlaps it (and adjacent layers' steps) with the serial h-chain.
            gx = jnp.dot(xs[t], w_ih, preferred_element_type=jnp.float32)
            gh = jnp.dot(h.astype(jnp.bfloat16), w_hh,
                         preferred_element_type=jnp.float32)
            g = gx + gh + b                  # (BT, 4H) f32
            # One full-vreg sigmoid; tanh of the g-gate via tanh(z) = 2*sigmoid(2z)-1
            # (the 2z scaling is baked into the g-gate weight/bias columns host-side).
            sig = jax.nn.sigmoid(g)
            i = sig[:, 0 * H:1 * H]
            f = sig[:, 1 * H:2 * H]
            gg = 2.0 * sig[:, 2 * H:3 * H] - 1.0
            o = sig[:, 3 * H:4 * H]
            c = f * c + i * gg
            h = o * jnp.tanh(c)
            hs.append(h)
        return hs

    # layer 0: LSTM(D->H); consumes the zero-padded input straight from VMEM.
    hs0 = lstm_layer(0, [x_ref[t] for t in range(T)])
    # layers[1] and final_rnn: step t only needs the previous layer's step-t output
    # (wavefront dependence); hidden states stay in vregs, no sequence scratch.
    hs1 = lstm_layer(1, [h.astype(jnp.bfloat16) for h in hs0])
    hs2 = lstm_layer(2, [h.astype(jnp.bfloat16) for h in hs1])

    # Head: MC-dropout already folded into wm = mask * W_out; Linear(H, 1).
    h_last = hs2[-1]
    b_out = b_ref[pl.ds(N_LAYERS, 1), pl.ds(0, 1)]          # (1, 1)
    o_ref[...] = jnp.sum(h_last * wm_ref[...], axis=-1, keepdims=True) + b_out


# ------------------------------- parameter init --------------------------------
def init_params(key, input_dim, hidden_dim, output_dim):
    """Mimic torch's uniform(-1/sqrt(H), 1/sqrt(H)); biases drawn separately, summed."""
    k = 1.0 / jnp.sqrt(jnp.float32(hidden_dim))
    params = {}
    dims = [input_dim, hidden_dim, hidden_dim]   # layers[0], layers[1], final_rnn
    for l, d in enumerate(dims):
        key, k1, k2, k3, k4 = jax.random.split(key, 5)
        params[f"w_ih_{l}"] = jax.random.uniform(k1, (d, 4 * hidden_dim),
                                                 jnp.float32, -k, k)
        params[f"w_hh_{l}"] = jax.random.uniform(k2, (hidden_dim, 4 * hidden_dim),
                                                 jnp.float32, -k, k)
        b_ih = jax.random.uniform(k3, (1, 4 * hidden_dim), jnp.float32, -k, k)
        b_hh = jax.random.uniform(k4, (1, 4 * hidden_dim), jnp.float32, -k, k)
        params[f"b_{l}"] = b_ih + b_hh           # forward uses the sum
    key, k1, k2 = jax.random.split(key, 3)
    params["w_out"] = jax.random.uniform(k1, (output_dim, hidden_dim),
                                         jnp.float32, -k, k)
    params["b_out"] = jax.random.uniform(k2, (1, output_dim), jnp.float32, -k, k)
    return params


# ---------------------------------- forward -------------------------------------
def nn_forward(params, x, dropout_key):
    # x: (B, T, D) batch_first, like the PyTorch module
    B, T, D = x.shape
    H = HIDDEN
    assert D <= H, "input_dim is zero-padded up to hidden_dim"

    # --- host-side (plain XLA) parameter packing --------------------------------
    # Pre-scale the g-gate columns by 2 so the kernel needs only ONE sigmoid per step.
    gate_scale = jnp.concatenate([jnp.ones((2 * H,), jnp.float32),
                                  jnp.full((H,), 2.0, jnp.float32),
                                  jnp.ones((H,), jnp.float32)])
    w_layers, b_rows = [], []
    for l in range(N_LAYERS):
        w_ih = params[f"w_ih_{l}"] * gate_scale                      # (Din, 4H)
        w_hh = params[f"w_hh_{l}"] * gate_scale                      # (H, 4H)
        if w_ih.shape[0] < H:                                        # pad layer-0 Din -> H
            w_ih = jnp.pad(w_ih, ((0, H - w_ih.shape[0]), (0, 0)))
        w_layers.append(jnp.concatenate([w_ih, w_hh], axis=0))       # (2H, 4H)
        b_rows.append(params[f"b_{l}"] * gate_scale)                 # (1, 4H)
    w_stack = jnp.stack(w_layers).astype(jnp.bfloat16)               # (3, 2H, 4H) bf16
    b_out_row = jnp.zeros((1, 4 * H), jnp.float32).at[0, 0].set(params["b_out"][0, 0])
    b_stack = jnp.concatenate(b_rows + [b_out_row], axis=0)          # (4, 4H) f32

    # MC dropout (always active); scaled keep-mask folded into the head weight.
    keep = jax.random.bernoulli(dropout_key, 1.0 - DROPOUT_P, (B, H))
    wm = keep.astype(jnp.float32) * (params["w_out"][0] / (1.0 - DROPOUT_P))  # (B, H)

    # Time-major, zero-padded D -> H, bf16 MXU operand.
    x_tm = jnp.transpose(x, (1, 0, 2)).astype(jnp.float32)           # (T, B, D)
    x_tm = jnp.pad(x_tm, ((0, 0), (0, 0), (0, H - D))).astype(jnp.bfloat16)

    # --- batch grid: collapses to (1,) at small B, shards across v7x's 2 TCs later
    bt = B // 2 if (B >= 32 and B % 32 == 0) else B
    grid = (B // bt,)

    return pl.pallas_call(
        lstm_stack_kernel,
        out_shape=jax.ShapeDtypeStruct((B, OUTPUT_DIM), jnp.float32),
        grid=grid,
        in_specs=[
            pl.BlockSpec((T, bt, H), lambda i: (0, i, 0)),                    # x
            pl.BlockSpec((N_LAYERS, 2 * H, 4 * H), lambda i: (0, 0, 0)),      # weights
            pl.BlockSpec((N_LAYERS + 1, 4 * H), lambda i: (0, 0)),            # biases
            pl.BlockSpec((bt, H), lambda i: (i, 0)),                          # mask*W_out
        ],
        out_specs=pl.BlockSpec((bt, OUTPUT_DIM), lambda i: (i, 0)),
        compiler_params=pltpu.CompilerParams(dimension_semantics=("parallel",)),
    )(x_tm, w_stack, b_stack, wm)


if __name__ == "__main__":
    # B multiple of 8 (f32 sublane), T small, D <= HIDDEN; 4H = 128 lanes.
    B, T, D = 8, 8, 8
    key = jax.random.PRNGKey(0)
    key, kx, kp, kd = jax.random.split(key, 4)
    x = jax.random.normal(kx, (B, T, D), dtype=jnp.float32)
    params = init_params(kp, D, HIDDEN, OUTPUT_DIM)

    out = jax.block_until_ready(nn_forward(params, x, kd))
    assert out.shape == (B, OUTPUT_DIM)
    assert bool(jnp.all(jnp.isfinite(out)))
    print("KERNEL_OK")
</pallas_src>

<mosaic_0001>
module attributes {stable_mosaic.version = 11 : i64} {
  func.func @lstm_stack_kernel(%arg0: i32, %arg1: memref<8x8x32xbf16, #tpu.memory_space<vmem>>, %arg2: memref<3x64x128xbf16, #tpu.memory_space<vmem>>, %arg3: memref<4x128xf32, #tpu.memory_space<vmem>>, %arg4: memref<8x32xf32, #tpu.memory_space<vmem>>, %arg5: memref<8x1xf32, #tpu.memory_space<vmem>>) attributes {dimension_semantics = [#tpu.dimension_semantics<parallel>], iteration_bounds = array<i64: 1>, scalar_prefetch = 0 : i64, scratch_operands = 0 : i64, tpu.core_type = #tpu.core_type<tc>, window_params = [{transform_indices = @transform_0, window_bounds = array<i64: 8, 8, 32>}, {pipeline_mode = #tpu.pipeline_mode<synchronous>, transform_indices = @transform_1, window_bounds = array<i64: 3, 64, 128>}, {pipeline_mode = #tpu.pipeline_mode<synchronous>, transform_indices = @transform_2, window_bounds = array<i64: 4, 128>}, {transform_indices = @transform_3, window_bounds = array<i64: 8, 32>}, {transform_indices = @transform_4, window_bounds = array<i64: 8, 1>}]} {
    %c0 = arith.constant 0 : index
    %c0_0 = arith.constant 0 : index
    %c0_1 = arith.constant 0 : index
    %0 = vector.load %arg1[%c0, %c0_0, %c0_1] : memref<8x8x32xbf16, #tpu.memory_space<vmem>>, vector<1x8x32xbf16>
    %1 = vector.shape_cast %0 : vector<1x8x32xbf16> to vector<8x32xbf16>
    %c1 = arith.constant 1 : index
    %c0_2 = arith.constant 0 : index
    %c0_3 = arith.constant 0 : index
    %2 = vector.load %arg1[%c1, %c0_2, %c0_3] : memref<8x8x32xbf16, #tpu.memory_space<vmem>>, vector<1x8x32xbf16>
    %3 = vector.shape_cast %2 : vector<1x8x32xbf16> to vector<8x32xbf16>
    %c2 = arith.constant 2 : index
    %c0_4 = arith.constant 0 : index
    %c0_5 = arith.constant 0 : index
    %4 = vector.load %arg1[%c2, %c0_4, %c0_5] : memref<8x8x32xbf16, #tpu.memory_space<vmem>>, vector<1x8x32xbf16>
    %5 = vector.shape_cast %4 : vector<1x8x32xbf16> to vector<8x32xbf16>
    %c3 = arith.constant 3 : index
    %c0_6 = arith.constant 0 : index
    %c0_7 = arith.constant 0 : index
    %6 = vector.load %arg1[%c3, %c0_6, %c0_7] : memref<8x8x32xbf16, #tpu.memory_space<vmem>>, vector<1x8x32xbf16>
    %7 = vector.shape_cast %6 : vector<1x8x32xbf16> to vector<8x32xbf16>
    %c4 = arith.constant 4 : index
    %c0_8 = arith.constant 0 : index
    %c0_9 = arith.constant 0 : index
    %8 = vector.load %arg1[%c4, %c0_8, %c0_9] : memref<8x8x32xbf16, #tpu.memory_space<vmem>>, vector<1x8x32xbf16>
    %9 = vector.shape_cast %8 : vector<1x8x32xbf16> to vector<8x32xbf16>
    %c5 = arith.constant 5 : index
    %c0_10 = arith.constant 0 : index
    %c0_11 = arith.constant 0 : index
    %10 = vector.load %arg1[%c5, %c0_10, %c0_11] : memref<8x8x32xbf16, #tpu.memory_space<vmem>>, vector<1x8x32xbf16>
    %11 = vector.shape_cast %10 : vector<1x8x32xbf16> to vector<8x32xbf16>
    %c6 = arith.constant 6 : index
    %c0_12 = arith.constant 0 : index
    %c0_13 = arith.constant 0 : index
    %12 = vector.load %arg1[%c6, %c0_12, %c0_13] : memref<8x8x32xbf16, #tpu.memory_space<vmem>>, vector<1x8x32xbf16>
    %13 = vector.shape_cast %12 : vector<1x8x32xbf16> to vector<8x32xbf16>
    %c7 = arith.constant 7 : index
    %c0_14 = arith.constant 0 : index
    %c0_15 = arith.constant 0 : index
    %14 = vector.load %arg1[%c7, %c0_14, %c0_15] : memref<8x8x32xbf16, #tpu.memory_space<vmem>>, vector<1x8x32xbf16>
    %15 = vector.shape_cast %14 : vector<1x8x32xbf16> to vector<8x32xbf16>
    %c0_16 = arith.constant 0 : index
    %c0_17 = arith.constant 0 : index
    %c0_18 = arith.constant 0 : index
    %16 = vector.load %arg2[%c0_16, %c0_17, %c0_18] : memref<3x64x128xbf16, #tpu.memory_space<vmem>>, vector<1x64x128xbf16>
    %17 = vector.shape_cast %16 : vector<1x64x128xbf16> to vector<64x128xbf16>
    %18 = vector.extract_strided_slice %17 {offsets = [0, 0], sizes = [32, 128], strides = [1, 1]} : vector<64x128xbf16> to vector<32x128xbf16>
    %19 = vector.extract_strided_slice %17 {offsets = [32, 0], sizes = [32, 128], strides = [1, 1]} : vector<64x128xbf16> to vector<32x128xbf16>
    %c0_19 = arith.constant 0 : index
    %c0_20 = arith.constant 0 : index
    %20 = vector.load %arg3[%c0_19, %c0_20] : memref<4x128xf32, #tpu.memory_space<vmem>>, vector<1x128xf32>
    %cst = arith.constant 0.000000e+00 : f32
    %21 = vector.broadcast %cst : f32 to vector<8x32xf32>
    %cst_21 = arith.constant 0.000000e+00 : f32
    %22 = vector.broadcast %cst_21 : f32 to vector<8x32xf32>
    %cst_22 = arith.constant dense<0.000000e+00> : vector<8x128xf32>
    %23 = tpu.matmul %1, %18, %cst_22 {dimension_numbers = #tpu.dot_dimension_numbers<[1], [0], [0], [1], [0, 0, 1, 1], [], []>} : vector<8x32xbf16>, vector<32x128xbf16>, vector<8x128xf32> -> vector<8x128xf32>
    %24 = arith.truncf %21 : vector<8x32xf32> to vector<8x32xbf16>
    %cst_23 = arith.constant dense<0.000000e+00> : vector<8x128xf32>
    %25 = tpu.matmul %24, %19, %cst_23 {dimension_numbers = #tpu.dot_dimension_numbers<[1], [0], [0], [1], [0, 0, 1, 1], [], []>} : vector<8x32xbf16>, vector<32x128xbf16>, vector<8x128xf32> -> vector<8x128xf32>
    %26 = arith.addf %23, %25 : vector<8x128xf32>
    %27 = vector.broadcast %20 : vector<1x128xf32> to vector<8x128xf32>
    %28 = arith.addf %26, %27 : vector<8x128xf32>
    %29 = arith.negf %28 : vector<8x128xf32>
    %30 = math.exp %29 : vector<8x128xf32>
    %cst_24 = arith.constant 1.000000e+00 : f32
    %31 = vector.broadcast %cst_24 : f32 to vector<8x128xf32>
    %32 = arith.addf %31, %30 : vector<8x128xf32>
    %33 = arith.divf %31, %32 : vector<8x128xf32>
    %34 = vector.extract_strided_slice %33 {offsets = [0, 0], sizes = [8, 32], strides = [1, 1]} : vector<8x128xf32> to vector<8x32xf32>
    %35 = vector.extract_strided_slice %33 {offsets = [0, 32], sizes = [8, 32], strides = [1, 1]} : vector<8x128xf32> to vector<8x32xf32>
    %36 = vector.extract_strided_slice %33 {offsets = [0, 64], sizes = [8, 32], strides = [1, 1]} : vector<8x128xf32> to vector<8x32xf32>
    %cst_25 = arith.constant 2.000000e+00 : f32
    %37 = vector.broadcast %cst_25 : f32 to vector<8x32xf32>
    %38 = arith.mulf %37, %36 : vector<8x32xf32>
    %cst_26 = arith.constant 1.000000e+00 : f32
    %39 = vector.broadcast %cst_26 : f32 to vector<8x32xf32>
    %40 = arith.subf %38, %39 : vector<8x32xf32>
    %41 = vector.extract_strided_slice %33 {offsets = [0, 96], sizes = [8, 32], strides = [1, 1]} : vector<8x128xf32> to vector<8x32xf32>
    %42 = arith.mulf %35, %22 : vector<8x32xf32>
    %43 = arith.mulf %34, %40 : vector<8x32xf32>
    %44 = arith.addf %42, %43 : vector<8x32xf32>
    %45 = math.tanh %44 : vector<8x32xf32>
    %46 = arith.mulf %41, %45 : vector<8x32xf32>
    %cst_27 = arith.constant dense<0.000000e+00> : vector<8x128xf32>
    %47 = tpu.matmul %3, %18, %cst_27 {dimension_numbers = #tpu.dot_dimension_numbers<[1], [0], [0], [1], [0, 0, 1, 1], [], []>} : vector<8x32xbf16>, vector<32x128xbf16>, vector<8x128xf32> -> vector<8x128xf32>
    %48 = arith.truncf %46 : vector<8x32xf32> to vector<8x32xbf16>
    %cst_28 = arith.constant dense<0.000000e+00> : vector<8x128xf32>
    %49 = tpu.matmul %48, %19, %cst_28 {dimension_numbers = #tpu.dot_dimension_numbers<[1], [0], [0], [1], [0, 0, 1, 1], [], []>} : vector<8x32xbf16>, vector<32x128xbf16>, vector<8x128xf32> -> vector<8x128xf32>
    %50 = arith.addf %47, %49 : vector<8x128xf32>
    %51 = vector.broadcast %20 : vector<1x128xf32> to vector<8x128xf32>
    %52 = arith.addf %50, %51 : vector<8x128xf32>
    %53 = arith.negf %52 : vector<8x128xf32>
    %54 = math.exp %53 : vector<8x128xf32>
    %cst_29 = arith.constant 1.000000e+00 : f32
    %55 = vector.broadcast %cst_29 : f32 to vector<8x128xf32>
    %56 = arith.addf %55, %54 : vector<8x128xf32>
    %57 = arith.divf %55, %56 : vector<8x128xf32>
    %58 = vector.extract_strided_slice %57 {offsets = [0, 0], sizes = [8, 32], strides = [1, 1]} : vector<8x128xf32> to vector<8x32xf32>
    %59 = vector.extract_strided_slice %57 {offsets = [0, 32], sizes = [8, 32], strides = [1, 1]} : vector<8x128xf32> to vector<8x32xf32>
    %60 = vector.extract_strided_slice %57 {offsets = [0, 64], sizes = [8, 32], strides = [1, 1]} : vector<8x128xf32> to vector<8x32xf32>
    %cst_30 = arith.constant 2.000000e+00 : f32
    %61 = vector.broadcast %cst_30 : f32 to vector<8x32xf32>
    %62 = arith.mulf %61, %60 : vector<8x32xf32>
    %cst_31 = arith.constant 1.000000e+00 : f32
    %63 = vector.broadcast %cst_31 : f32 to vector<8x32xf32>
    %64 = arith.subf %62, %63 : vector<8x32xf32>
    %65 = vector.extract_strided_slice %57 {offsets = [0, 96], sizes = [8, 32], strides = [1, 1]} : vector<8x128xf32> to vector<8x32xf32>
    %66 = arith.mulf %59, %44 : vector<8x32xf32>
    %67 = arith.mulf %58, %64 : vector<8x32xf32>
    %68 = arith.addf %66, %67 : vector<8x32xf32>
    %69 = math.tanh %68 : vector<8x32xf32>
    %70 = arith.mulf %65, %69 : vector<8x32xf32>
    %cst_32 = arith.constant dense<0.000000e+00> : vector<8x128xf32>
    %71 = tpu.matmul %5, %18, %cst_32 {dimension_numbers = #tpu.dot_dimension_numbers<[1], [0], [0], [1], [0, 0, 1, 1], [], []>} : vector<8x32xbf16>, vector<32x128xbf16>, vector<8x128xf32> -> vector<8x128xf32>
    %72 = arith.truncf %70 : vector<8x32xf32> to vector<8x32xbf16>
    %cst_33 = arith.constant dense<0.000000e+00> : vector<8x128xf32>
    %73 = tpu.matmul %72, %19, %cst_33 {dimension_numbers = #tpu.dot_dimension_numbers<[1], [0], [0], [1], [0, 0, 1, 1], [], []>} : vector<8x32xbf16>, vector<32x128xbf16>, vector<8x128xf32> -> vector<8x128xf32>
    %74 = arith.addf %71, %73 : vector<8x128xf32>
    %75 = vector.broadcast %20 : vector<1x128xf32> to vector<8x128xf32>
    %76 = arith.addf %74, %75 : vector<8x128xf32>
    %77 = arith.negf %76 : vector<8x128xf32>
    %78 = math.exp %77 : vector<8x128xf32>
    %cst_34 = arith.constant 1.000000e+00 : f32
    %79 = vector.broadcast %cst_34 : f32 to vector<8x128xf32>
    %80 = arith.addf %79, %78 : vector<8x128xf32>
    %81 = arith.divf %79, %80 : vector<8x128xf32>
    %82 = vector.extract_strided_slice %81 {offsets = [0, 0], sizes = [8, 32], strides = [1, 1]} : vector<8x128xf32> to vector<8x32xf32>
    %83 = vector.extract_strided_slice %81 {offsets = [0, 32], sizes = [8, 32], strides = [1, 1]} : vector<8x128xf32> to vector<8x32xf32>
    %84 = vector.extract_strided_slice %81 {offsets = [0, 64], sizes = [8, 32], strides = [1, 1]} : vector<8x128xf32> to vector<8x32xf32>
    %cst_35 = arith.constant 2.000000e+00 : f32
    %85 = vector.broadcast %cst_35 : f32 to vector<8x32xf32>
    %86 = arith.mulf %85, %84 : vector<8x32xf32>
    %cst_36 = arith.constant 1.000000e+00 : f32
    %87 = vector.broadcast %cst_36 : f32 to vector<8x32xf32>
    %88 = arith.subf %86, %87 : vector<8x32xf32>
    %89 = vector.extract_strided_slice %81 {offsets = [0, 96], sizes = [8, 32], strides = [1, 1]} : vector<8x128xf32> to vector<8x32xf32>
    %90 = arith.mulf %83, %68 : vector<8x32xf32>
    %91 = arith.mulf %82, %88 : vector<8x32xf32>
    %92 = arith.addf %90, %91 : vector<8x32xf32>
    %93 = math.tanh %92 : vector<8x32xf32>
    %94 = arith.mulf %89, %93 : vector<8x32xf32>
    %cst_37 = arith.constant dense<0.000000e+00> : vector<8x128xf32>
    %95 = tpu.matmul %7, %18, %cst_37 {dimension_numbers = #tpu.dot_dimension_numbers<[1], [0], [0], [1], [0, 0, 1, 1], [], []>} : vector<8x32xbf16>, vector<32x128xbf16>, vector<8x128xf32> -> vector<8x128xf32>
    %96 = arith.truncf %94 : vector<8x32xf32> to vector<8x32xbf16>
    %cst_38 = arith.constant dense<0.000000e+00> : vector<8x128xf32>
    %97 = tpu.matmul %96, %19, %cst_38 {dimension_numbers = #tpu.dot_dimension_numbers<[1], [0], [0], [1], [0, 0, 1, 1], [], []>} : vector<8x32xbf16>, vector<32x128xbf16>, vector<8x128xf32> -> vector<8x128xf32>
    %98 = arith.addf %95, %97 : vector<8x128xf32>
    %99 = vector.broadcast %20 : vector<1x128xf32> to vector<8x128xf32>
    %100 = arith.addf %98, %99 : vector<8x128xf32>
    %101 = arith.negf %100 : vector<8x128xf32>
    %102 = math.exp %101 : vector<8x128xf32>
    %cst_39 = arith.constant 1.000000e+00 : f32
    %103 = vector.broadcast %cst_39 : f32 to vector<8x128xf32>
    %104 = arith.addf %103, %102 : vector<8x128xf32>
    %105 = arith.divf %103, %104 : vector<8x128xf32>
    %106 = vector.extract_strided_slice %105 {offsets = [0, 0], sizes = [8, 32], strides = [1, 1]} : vector<8x128xf32> to vector<8x32xf32>
    %107 = vector.extract_strided_slice %105 {offsets = [0, 32], sizes = [8, 32], strides = [1, 1]} : vector<8x128xf32> to vector<8x32xf32>
    %108 = vector.extract_strided_slice %105 {offsets = [0, 64], sizes = [8, 32], strides = [1, 1]} : vector<8x128xf32> to vector<8x32xf32>
    %cst_40 = arith.constant 2.000000e+00 : f32
    %109 = vector.broadcast %cst_40 : f32 to vector<8x32xf32>
    %110 = arith.mulf %109, %108 : vector<8x32xf32>
    %cst_41 = arith.constant 1.000000e+00 : f32
    %111 = vector.broadcast %cst_41 : f32 to vector<8x32xf32>
    %112 = arith.subf %110, %111 : vector<8x32xf32>
    %113 = vector.extract_strided_slice %105 {offsets = [0, 96], sizes = [8, 32], strides = [1, 1]} : vector<8x128xf32> to vector<8x32xf32>
    %114 = arith.mulf %107, %92 : vector<8x32xf32>
    %115 = arith.mulf %106, %112 : vector<8x32xf32>
    %116 = arith.addf %114, %115 : vector<8x32xf32>
    %117 = math.tanh %116 : vector<8x32xf32>
    %118 = arith.mulf %113, %117 : vector<8x32xf32>
    %cst_42 = arith.constant dense<0.000000e+00> : vector<8x128xf32>
    %119 = tpu.matmul %9, %18, %cst_42 {dimension_numbers = #tpu.dot_dimension_numbers<[1], [0], [0], [1], [0, 0, 1, 1], [], []>} : vector<8x32xbf16>, vector<32x128xbf16>, vector<8x128xf32> -> vector<8x128xf32>
    %120 = arith.truncf %118 : vector<8x32xf32> to vector<8x32xbf16>
    %cst_43 = arith.constant dense<0.000000e+00> : vector<8x128xf32>
    %121 = tpu.matmul %120, %19, %cst_43 {dimension_numbers = #tpu.dot_dimension_numbers<[1], [0], [0], [1], [0, 0, 1, 1], [], []>} : vector<8x32xbf16>, vector<32x128xbf16>, vector<8x128xf32> -> vector<8x128xf32>
    %122 = arith.addf %119, %121 : vector<8x128xf32>
    %123 = vector.broadcast %20 : vector<1x128xf32> to vector<8x128xf32>
    %124 = arith.addf %122, %123 : vector<8x128xf32>
    %125 = arith.negf %124 : vector<8x128xf32>
    %126 = math.exp %125 : vector<8x128xf32>
    %cst_44 = arith.constant 1.000000e+00 : f32
    %127 = vector.broadcast %cst_44 : f32 to vector<8x128xf32>
    %128 = arith.addf %127, %126 : vector<8x128xf32>
    %129 = arith.divf %127, %128 : vector<8x128xf32>
    %130 = vector.extract_strided_slice %129 {offsets = [0, 0], sizes = [8, 32], strides = [1, 1]} : vector<8x128xf32> to vector<8x32xf32>
    %131 = vector.extract_strided_slice %129 {offsets = [0, 32], sizes = [8, 32], strides = [1, 1]} : vector<8x128xf32> to vector<8x32xf32>
    %132 = vector.extract_strided_slice %129 {offsets = [0, 64], sizes = [8, 32], strides = [1, 1]} : vector<8x128xf32> to vector<8x32xf32>
    %cst_45 = arith.constant 2.000000e+00 : f32
    %133 = vector.broadcast %cst_45 : f32 to vector<8x32xf32>
    %134 = arith.mulf %133, %132 : vector<8x32xf32>
    %cst_46 = arith.constant 1.000000e+00 : f32
    %135 = vector.broadcast %cst_46 : f32 to vector<8x32xf32>
    %136 = arith.subf %134, %135 : vector<8x32xf32>
    %137 = vector.extract_strided_slice %129 {offsets = [0, 96], sizes = [8, 32], strides = [1, 1]} : vector<8x128xf32> to vector<8x32xf32>
    %138 = arith.mulf %131, %116 : vector<8x32xf32>
    %139 = arith.mulf %130, %136 : vector<8x32xf32>
    %140 = arith.addf %138, %139 : vector<8x32xf32>
    %141 = math.tanh %140 : vector<8x32xf32>
    %142 = arith.mulf %137, %141 : vector<8x32xf32>
    %cst_47 = arith.constant dense<0.000000e+00> : vector<8x128xf32>
    %143 = tpu.matmul %11, %18, %cst_47 {dimension_numbers = #tpu.dot_dimension_numbers<[1], [0], [0], [1], [0, 0, 1, 1], [], []>} : vector<8x32xbf16>, vector<32x128xbf16>, vector<8x128xf32> -> vector<8x128xf32>
    %144 = arith.truncf %142 : vector<8x32xf32> to vector<8x32xbf16>
    %cst_48 = arith.constant dense<0.000000e+00> : vector<8x128xf32>
    %145 = tpu.matmul %144, %19, %cst_48 {dimension_numbers = #tpu.dot_dimension_numbers<[1], [0], [0], [1], [0, 0, 1, 1], [], []>} : vector<8x32xbf16>, vector<32x128xbf16>, vector<8x128xf32> -> vector<8x128xf32>
    %146 = arith.addf %143, %145 : vector<8x128xf32>
    %147 = vector.broadcast %20 : vector<1x128xf32> to vector<8x128xf32>
    %148 = arith.addf %146, %147 : vector<8x128xf32>
    %149 = arith.negf %148 : vector<8x128xf32>
    %150 = math.exp %149 : vector<8x128xf32>
    %cst_49 = arith.constant 1.000000e+00 : f32
    %151 = vector.broadcast %cst_49 : f32 to vector<8x128xf32>
    %152 = arith.addf %151, %150 : vector<8x128xf32>
    %153 = arith.divf %151, %152 : vector<8x128xf32>
    %154 = vector.extract_strided_slice %153 {offsets = [0, 0], sizes = [8, 32], strides = [1, 1]} : vector<8x128xf32> to vector<8x32xf32>
    %155 = vector.extract_strided_slice %153 {offsets = [0, 32], sizes = [8, 32], strides = [1, 1]} : vector<8x128xf32> to vector<8x32xf32>
    %156 = vector.extract_strided_slice %153 {offsets = [0, 64], sizes = [8, 32], strides = [1, 1]} : vector<8x128xf32> to vector<8x32xf32>
    %cst_50 = arith.constant 2.000000e+00 : f32
    %157 = vector.broadcast %cst_50 : f32 to vector<8x32xf32>
    %158 = arith.mulf %157, %156 : vector<8x32xf32>
    %cst_51 = arith.constant 1.000000e+00 : f32
    %159 = vector.broadcast %cst_51 : f32 to vector<8x32xf32>
    %160 = arith.subf %158, %159 : vector<8x32xf32>
    %161 = vector.extract_strided_slice %153 {offsets = [0, 96], sizes = [8, 32], strides = [1, 1]} : vector<8x128xf32> to vector<8x32xf32>
    %162 = arith.mulf %155, %140 : vector<8x32xf32>
    %163 = arith.mulf %154, %160 : vector<8x32xf32>
    %164 = arith.addf %162, %163 : vector<8x32xf32>
    %165 = math.tanh %164 : vector<8x32xf32>
    %166 = arith.mulf %161, %165 : vector<8x32xf32>
    %cst_52 = arith.constant dense<0.000000e+00> : vector<8x128xf32>
    %167 = tpu.matmul %13, %18, %cst_52 {dimension_numbers = #tpu.dot_dimension_numbers<[1], [0], [0], [1], [0, 0, 1, 1], [], []>} : vector<8x32xbf16>, vector<32x128xbf16>, vector<8x128xf32> -> vector<8x128xf32>
    %168 = arith.truncf %166 : vector<8x32xf32> to vector<8x32xbf16>
    %cst_53 = arith.constant dense<0.000000e+00> : vector<8x128xf32>
    %169 = tpu.matmul %168, %19, %cst_53 {dimension_numbers = #tpu.dot_dimension_numbers<[1], [0], [0], [1], [0, 0, 1, 1], [], []>} : vector<8x32xbf16>, vector<32x128xbf16>, vector<8x128xf32> -> vector<8x128xf32>
    %170 = arith.addf %167, %169 : vector<8x128xf32>
    %171 = vector.broadcast %20 : vector<1x128xf32> to vector<8x128xf32>
    %172 = arith.addf %170, %171 : vector<8x128xf32>
    %173 = arith.negf %172 : vector<8x128xf32>
    %174 = math.exp %173 : vector<8x128xf32>
    %cst_54 = arith.constant 1.000000e+00 : f32
    %175 = vector.broadcast %cst_54 : f32 to vector<8x128xf32>
    %176 = arith.addf %175, %174 : vector<8x128xf32>
    %177 = arith.divf %175, %176 : vector<8x128xf32>
    %178 = vector.extract_strided_slice %177 {offsets = [0, 0], sizes = [8, 32], strides = [1, 1]} : vector<8x128xf32> to vector<8x32xf32>
    %179 = vector.extract_strided_slice %177 {offsets = [0, 32], sizes = [8, 32], strides = [1, 1]} : vector<8x128xf32> to vector<8x32xf32>
    %180 = vector.extract_strided_slice %177 {offsets = [0, 64], sizes = [8, 32], strides = [1, 1]} : vector<8x128xf32> to vector<8x32xf32>
    %cst_55 = arith.constant 2.000000e+00 : f32
    %181 = vector.broadcast %cst_55 : f32 to vector<8x32xf32>
    %182 = arith.mulf %181, %180 : vector<8x32xf32>
    %cst_56 = arith.constant 1.000000e+00 : f32
    %183 = vector.broadcast %cst_56 : f32 to vector<8x32xf32>
    %184 = arith.subf %182, %183 : vector<8x32xf32>
    %185 = vector.extract_strided_slice %177 {offsets = [0, 96], sizes = [8, 32], strides = [1, 1]} : vector<8x128xf32> to vector<8x32xf32>
    %186 = arith.mulf %179, %164 : vector<8x32xf32>
    %187 = arith.mulf %178, %184 : vector<8x32xf32>
    %188 = arith.addf %186, %187 : vector<8x32xf32>
    %189 = math.tanh %188 : vector<8x32xf32>
    %190 = arith.mulf %185, %189 : vector<8x32xf32>
    %cst_57 = arith.constant dense<0.000000e+00> : vector<8x128xf32>
    %191 = tpu.matmul %15, %18, %cst_57 {dimension_numbers = #tpu.dot_dimension_numbers<[1], [0], [0], [1], [0, 0, 1, 1], [], []>} : vector<8x32xbf16>, vector<32x128xbf16>, vector<8x128xf32> -> vector<8x128xf32>
    %192 = arith.truncf %190 : vector<8x32xf32> to vector<8x32xbf16>
    %cst_58 = arith.constant dense<0.000000e+00> : vector<8x128xf32>
    %193 = tpu.matmul %192, %19, %cst_58 {dimension_numbers = #tpu.dot_dimension_numbers<[1], [0], [0], [1], [0, 0, 1, 1], [], []>} : vector<8x32xbf16>, vector<32x128xbf16>, vector<8x128xf32> -> vector<8x128xf32>
    %194 = arith.addf %191, %193 : vector<8x128xf32>
    %195 = vector.broadcast %20 : vector<1x128xf32> to vector<8x128xf32>
    %196 = arith.addf %194, %195 : vector<8x128xf32>
    %197 = arith.negf %196 : vector<8x128xf32>
    %198 = math.exp %197 : vector<8x128xf32>
    %cst_59 = arith.constant 1.000000e+00 : f32
    %199 = vector.broadcast %cst_59 : f32 to vector<8x128xf32>
    %200 = arith.addf %199, %198 : vector<8x128xf32>
    %201 = arith.divf %199, %200 : vector<8x128xf32>
    %202 = vector.extract_strided_slice %201 {offsets = [0, 0], sizes = [8, 32], strides = [1, 1]} : vector<8x128xf32> to vector<8x32xf32>
    %203 = vector.extract_strided_slice %201 {offsets = [0, 32], sizes = [8, 32], strides = [1, 1]} : vector<8x128xf32> to vector<8x32xf32>
    %204 = vector.extract_strided_slice %201 {offsets = [0, 64], sizes = [8, 32], strides = [1, 1]} : vector<8x128xf32> to vector<8x32xf32>
    %cst_60 = arith.constant 2.000000e+00 : f32
    %205 = vector.broadcast %cst_60 : f32 to vector<8x32xf32>
    %206 = arith.mulf %205, %204 : vector<8x32xf32>
    %cst_61 = arith.constant 1.000000e+00 : f32
    %207 = vector.broadcast %cst_61 : f32 to vector<8x32xf32>
    %208 = arith.subf %206, %207 : vector<8x32xf32>
    %209 = vector.extract_strided_slice %201 {offsets = [0, 96], sizes = [8, 32], strides = [1, 1]} : vector<8x128xf32> to vector<8x32xf32>
    %210 = arith.mulf %203, %188 : vector<8x32xf32>
    %211 = arith.mulf %202, %208 : vector<8x32xf32>
    %212 = arith.addf %210, %211 : vector<8x32xf32>
    %213 = math.tanh %212 : vector<8x32xf32>
    %214 = arith.mulf %209, %213 : vector<8x32xf32>
    %215 = arith.truncf %46 : vector<8x32xf32> to vector<8x32xbf16>
    %216 = arith.truncf %70 : vector<8x32xf32> to vector<8x32xbf16>
    %217 = arith.truncf %94 : vector<8x32xf32> to vector<8x32xbf16>
    %218 = arith.truncf %118 : vector<8x32xf32> to vector<8x32xbf16>
    %219 = arith.truncf %142 : vector<8x32xf32> to vector<8x32xbf16>
    %220 = arith.truncf %166 : vector<8x32xf32> to vector<8x32xbf16>
    %221 = arith.truncf %190 : vector<8x32xf32> to vector<8x32xbf16>
    %222 = arith.truncf %214 : vector<8x32xf32> to vector<8x32xbf16>
    %c1_62 = arith.constant 1 : index
    %c0_63 = arith.constant 0 : index
    %c0_64 = arith.constant 0 : index
    %223 = vector.load %arg2[%c1_62, %c0_63, %c0_64] : memref<3x64x128xbf16, #tpu.memory_space<vmem>>, vector<1x64x128xbf16>
    %224 = vector.shape_cast %223 : vector<1x64x128xbf16> to vector<64x128xbf16>
    %225 = vector.extract_strided_slice %224 {offsets = [0, 0], sizes = [32, 128], strides = [1, 1]} : vector<64x128xbf16> to vector<32x128xbf16>
    %226 = vector.extract_strided_slice %224 {offsets = [32, 0], sizes = [32, 128], strides = [1, 1]} : vector<64x128xbf16> to vector<32x128xbf16>
    %c1_65 = arith.constant 1 : index
    %c0_66 = arith.constant 0 : index
    %227 = vector.load %arg3[%c1_65, %c0_66] : memref<4x128xf32, #tpu.memory_space<vmem>>, vector<1x128xf32>
    %cst_67 = arith.constant 0.000000e+00 : f32
    %228 = vector.broadcast %cst_67 : f32 to vector<8x32xf32>
    %cst_68 = arith.constant 0.000000e+00 : f32
    %229 = vector.broadcast %cst_68 : f32 to vector<8x32xf32>
    %cst_69 = arith.constant dense<0.000000e+00> : vector<8x128xf32>
    %230 = tpu.matmul %215, %225, %cst_69 {dimension_numbers = #tpu.dot_dimension_numbers<[1], [0], [0], [1], [0, 0, 1, 1], [], []>} : vector<8x32xbf16>, vector<32x128xbf16>, vector<8x128xf32> -> vector<8x128xf32>
    %231 = arith.truncf %228 : vector<8x32xf32> to vector<8x32xbf16>
    %cst_70 = arith.constant dense<0.000000e+00> : vector<8x128xf32>
    %232 = tpu.matmul %231, %226, %cst_70 {dimension_numbers = #tpu.dot_dimension_numbers<[1], [0], [0], [1], [0, 0, 1, 1], [], []>} : vector<8x32xbf16>, vector<32x128xbf16>, vector<8x128xf32> -> vector<8x128xf32>
    %233 = arith.addf %230, %232 : vector<8x128xf32>
    %234 = vector.broadcast %227 : vector<1x128xf32> to vector<8x128xf32>
    %235 = arith.addf %233, %234 : vector<8x128xf32>
    %236 = arith.negf %235 : vector<8x128xf32>
    %237 = math.exp %236 : vector<8x128xf32>
    %cst_71 = arith.constant 1.000000e+00 : f32
    %238 = vector.broadcast %cst_71 : f32 to vector<8x128xf32>
    %239 = arith.addf %238, %237 : vector<8x128xf32>
    %240 = arith.divf %238, %239 : vector<8x128xf32>
    %241 = vector.extract_strided_slice %240 {offsets = [0, 0], sizes = [8, 32], strides = [1, 1]} : vector<8x128xf32> to vector<8x32xf32>
    %242 = vector.extract_strided_slice %240 {offsets = [0, 32], sizes = [8, 32], strides = [1, 1]} : vector<8x128xf32> to vector<8x32xf32>
    %243 = vector.extract_strided_slice %240 {offsets = [0, 64], sizes = [8, 32], strides = [1, 1]} : vector<8x128xf32> to vector<8x32xf32>
    %cst_72 = arith.constant 2.000000e+00 : f32
    %244 = vector.broadcast %cst_72 : f32 to vector<8x32xf32>
    %245 = arith.mulf %244, %243 : vector<8x32xf32>
    %cst_73 = arith.constant 1.000000e+00 : f32
    %246 = vector.broadcast %cst_73 : f32 to vector<8x32xf32>
    %247 = arith.subf %245, %246 : vector<8x32xf32>
    %248 = vector.extract_strided_slice %240 {offsets = [0, 96], sizes = [8, 32], strides = [1, 1]} : vector<8x128xf32> to vector<8x32xf32>
    %249 = arith.mulf %242, %229 : vector<8x32xf32>
    %250 = arith.mulf %241, %247 : vector<8x32xf32>
    %251 = arith.addf %249, %250 : vector<8x32xf32>
    %252 = math.tanh %251 : vector<8x32xf32>
    %253 = arith.mulf %248, %252 : vector<8x32xf32>
    %cst_74 = arith.constant dense<0.000000e+00> : vector<8x128xf32>
    %254 = tpu.matmul %216, %225, %cst_74 {dimension_numbers = #tpu.dot_dimension_numbers<[1], [0], [0], [1], [0, 0, 1, 1], [], []>} : vector<8x32xbf16>, vector<32x128xbf16>, vector<8x128xf32> -> vector<8x128xf32>
    %255 = arith.truncf %253 : vector<8x32xf32> to vector<8x32xbf16>
    %cst_75 = arith.constant dense<0.000000e+00> : vector<8x128xf32>
    %256 = tpu.matmul %255, %226, %cst_75 {dimension_numbers = #tpu.dot_dimension_numbers<[1], [0], [0], [1], [0, 0, 1, 1], [], []>} : vector<8x32xbf16>, vector<32x128xbf16>, vector<8x128xf32> -> vector<8x128xf32>
    %257 = arith.addf %254, %256 : vector<8x128xf32>
    %258 = vector.broadcast %227 : vector<1x128xf32> to vector<8x128xf32>
    %259 = arith.addf %257, %258 : vector<8x128xf32>
    %260 = arith.negf %259 : vector<8x128xf32>
    %261 = math.exp %260 : vector<8x128xf32>
    %cst_76 = arith.constant 1.000000e+00 : f32
    %262 = vector.broadcast %cst_76 : f32 to vector<8x128xf32>
    %263 = arith.addf %262, %261 : vector<8x128xf32>
    %264 = arith.divf %262, %263 : vector<8x128xf32>
    %265 = vector.extract_strided_slice %264 {offsets = [0, 0], sizes = [8, 32], strides = [1, 1]} : vector<8x128xf32> to vector<8x32xf32>
    %266 = vector.extract_strided_slice %264 {offsets = [0, 32], sizes = [8, 32], strides = [1, 1]} : vector<8x128xf32> to vector<8x32xf32>
    %267 = vector.extract_strided_slice %264 {offsets = [0, 64], sizes = [8, 32], strides = [1, 1]} : vector<8x128xf32> to vector<8x32xf32>
    %cst_77 = arith.constant 2.000000e+00 : f32
    %268 = vector.broadcast %cst_77 : f32 to vector<8x32xf32>
    %269 = arith.mulf %268, %267 : vector<8x32xf32>
    %cst_78 = arith.constant 1.000000e+00 : f32
    %270 = vector.broadcast %cst_78 : f32 to vector<8x32xf32>
    %271 = arith.subf %269, %270 : vector<8x32xf32>
    %272 = vector.extract_strided_slice %264 {offsets = [0, 96], sizes = [8, 32], strides = [1, 1]} : vector<8x128xf32> to vector<8x32xf32>
    %273 = arith.mulf %266, %251 : vector<8x32xf32>
    %274 = arith.mulf %265, %271 : vector<8x32xf32>
    %275 = arith.addf %273, %274 : vector<8x32xf32>
    %276 = math.tanh %275 : vector<8x32xf32>
    %277 = arith.mulf %272, %276 : vector<8x32xf32>
    %cst_79 = arith.constant dense<0.000000e+00> : vector<8x128xf32>
    %278 = tpu.matmul %217, %225, %cst_79 {dimension_numbers = #tpu.dot_dimension_numbers<[1], [0], [0], [1], [0, 0, 1, 1], [], []>} : vector<8x32xbf16>, vector<32x128xbf16>, vector<8x128xf32> -> vector<8x128xf32>
    %279 = arith.truncf %277 : vector<8x32xf32> to vector<8x32xbf16>
    %cst_80 = arith.constant dense<0.000000e+00> : vector<8x128xf32>
    %280 = tpu.matmul %279, %226, %cst_80 {dimension_numbers = #tpu.dot_dimension_numbers<[1], [0], [0], [1], [0, 0, 1, 1], [], []>} : vector<8x32xbf16>, vector<32x128xbf16>, vector<8x128xf32> -> vector<8x128xf32>
    %281 = arith.addf %278, %280 : vector<8x128xf32>
    %282 = vector.broadcast %227 : vector<1x128xf32> to vector<8x128xf32>
    %283 = arith.addf %281, %282 : vector<8x128xf32>
    %284 = arith.negf %283 : vector<8x128xf32>
    %285 = math.exp %284 : vector<8x128xf32>
    %cst_81 = arith.constant 1.000000e+00 : f32
    %286 = vector.broadcast %cst_81 : f32 to vector<8x128xf32>
    %287 = arith.addf %286, %285 : vector<8x128xf32>
    %288 = arith.divf %286, %287 : vector<8x128xf32>
    %289 = vector.extract_strided_slice %288 {offsets = [0, 0], sizes = [8, 32], strides = [1, 1]} : vector<8x128xf32> to vector<8x32xf32>
    %290 = vector.extract_strided_slice %288 {offsets = [0, 32], sizes = [8, 32], strides = [1, 1]} : vector<8x128xf32> to vector<8x32xf32>
    %291 = vector.extract_strided_slice %288 {offsets = [0, 64], sizes = [8, 32], strides = [1, 1]} : vector<8x128xf32> to vector<8x32xf32>
    %cst_82 = arith.constant 2.000000e+00 : f32
    %292 = vector.broadcast %cst_82 : f32 to vector<8x32xf32>
    %293 = arith.mulf %292, %291 : vector<8x32xf32>
    %cst_83 = arith.constant 1.000000e+00 : f32
    %294 = vector.broadcast %cst_83 : f32 to vector<8x32xf32>
    %295 = arith.subf %293, %294 : vector<8x32xf32>
    %296 = vector.extract_strided_slice %288 {offsets = [0, 96], sizes = [8, 32], strides = [1, 1]} : vector<8x128xf32> to vector<8x32xf32>
    %297 = arith.mulf %290, %275 : vector<8x32xf32>
    %298 = arith.mulf %289, %295 : vector<8x32xf32>
    %299 = arith.addf %297, %298 : vector<8x32xf32>
    %300 = math.tanh %299 : vector<8x32xf32>
    %301 = arith.mulf %296, %300 : vector<8x32xf32>
    %cst_84 = arith.constant dense<0.000000e+00> : vector<8x128xf32>
    %302 = tpu.matmul %218, %225, %cst_84 {dimension_numbers = #tpu.dot_dimension_numbers<[1], [0], [0], [1], [0, 0, 1, 1], [], []>} : vector<8x32xbf16>, vector<32x128xbf16>, vector<8x128xf32> -> vector<8x128xf32>
    %303 = arith.truncf %301 : vector<8x32xf32> to vector<8x32xbf16>
    %cst_85 = arith.constant dense<0.000000e+00> : vector<8x128xf32>
    %304 = tpu.matmul %303, %226, %cst_85 {dimension_numbers = #tpu.dot_dimension_numbers<[1], [0], [0], [1], [0, 0, 1, 1], [], []>} : vector<8x32xbf16>, vector<32x128xbf16>, vector<8x128xf32> -> vector<8x128xf32>
    %305 = arith.addf %302, %304 : vector<8x128xf32>
    %306 = vector.broadcast %227 : vector<1x128xf32> to vector<8x128xf32>
    %307 = arith.addf %305, %306 : vector<8x128xf32>
    %308 = arith.negf %307 : vector<8x128xf32>
    %309 = math.exp %308 : vector<8x128xf32>
    %cst_86 = arith.constant 1.000000e+00 : f32
    %310 = vector.broadcast %cst_86 : f32 to vector<8x128xf32>
    %311 = arith.addf %310, %309 : vector<8x128xf32>
    %312 = arith.divf %310, %311 : vector<8x128xf32>
    %313 = vector.extract_strided_slice %312 {offsets = [0, 0], sizes = [8, 32], strides = [1, 1]} : vector<8x128xf32> to vector<8x32xf32>
    %314 = vector.extract_strided_slice %312 {offsets = [0, 32], sizes = [8, 32], strides = [1, 1]} : vector<8x128xf32> to vector<8x32xf32>
    %315 = vector.extract_strided_slice %312 {offsets = [0, 64], sizes = [8, 32], strides = [1, 1]} : vector<8x128xf32> to vector<8x32xf32>
    %cst_87 = arith.constant 2.000000e+00 : f32
    %316 = vector.broadcast %cst_87 : f32 to vector<8x32xf32>
    %317 = arith.mulf %316, %315 : vector<8x32xf32>
    %cst_88 = arith.constant 1.000000e+00 : f32
    %318 = vector.broadcast %cst_88 : f32 to vector<8x32xf32>
    %319 = arith.subf %317, %318 : vector<8x32xf32>
    %320 = vector.extract_strided_slice %312 {offsets = [0, 96], sizes = [8, 32], strides = [1, 1]} : vector<8x128xf32> to vector<8x32xf32>
    %321 = arith.mulf %314, %299 : vector<8x32xf32>
    %322 = arith.mulf %313, %319 : vector<8x32xf32>
    %323 = arith.addf %321, %322 : vector<8x32xf32>
    %324 = math.tanh %323 : vector<8x32xf32>
    %325 = arith.mulf %320, %324 : vector<8x32xf32>
    %cst_89 = arith.constant dense<0.000000e+00> : vector<8x128xf32>
    %326 = tpu.matmul %219, %225, %cst_89 {dimension_numbers = #tpu.dot_dimension_numbers<[1], [0], [0], [1], [0, 0, 1, 1], [], []>} : vector<8x32xbf16>, vector<32x128xbf16>, vector<8x128xf32> -> vector<8x128xf32>
    %327 = arith.truncf %325 : vector<8x32xf32> to vector<8x32xbf16>
    %cst_90 = arith.constant dense<0.000000e+00> : vector<8x128xf32>
    %328 = tpu.matmul %327, %226, %cst_90 {dimension_numbers = #tpu.dot_dimension_numbers<[1], [0], [0], [1], [0, 0, 1, 1], [], []>} : vector<8x32xbf16>, vector<32x128xbf16>, vector<8x128xf32> -> vector<8x128xf32>
    %329 = arith.addf %326, %328 : vector<8x128xf32>
    %330 = vector.broadcast %227 : vector<1x128xf32> to vector<8x128xf32>
    %331 = arith.addf %329, %330 : vector<8x128xf32>
    %332 = arith.negf %331 : vector<8x128xf32>
    %333 = math.exp %332 : vector<8x128xf32>
    %cst_91 = arith.constant 1.000000e+00 : f32
    %334 = vector.broadcast %cst_91 : f32 to vector<8x128xf32>
    %335 = arith.addf %334, %333 : vector<8x128xf32>
    %336 = arith.divf %334, %335 : vector<8x128xf32>
    %337 = vector.extract_strided_slice %336 {offsets = [0, 0], sizes = [8, 32], strides = [1, 1]} : vector<8x128xf32> to vector<8x32xf32>
    %338 = vector.extract_strided_slice %336 {offsets = [0, 32], sizes = [8, 32], strides = [1, 1]} : vector<8x128xf32> to vector<8x32xf32>
    %339 = vector.extract_strided_slice %336 {offsets = [0, 64], sizes = [8, 32], strides = [1, 1]} : vector<8x128xf32> to vector<8x32xf32>
    %cst_92 = arith.constant 2.000000e+00 : f32
    %340 = vector.broadcast %cst_92 : f32 to vector<8x32xf32>
    %341 = arith.mulf %340, %339 : vector<8x32xf32>
    %cst_93 = arith.constant 1.000000e+00 : f32
    %342 = vector.broadcast %cst_93 : f32 to vector<8x32xf32>
    %343 = arith.subf %341, %342 : vector<8x32xf32>
    %344 = vector.extract_strided_slice %336 {offsets = [0, 96], sizes = [8, 32], strides = [1, 1]} : vector<8x128xf32> to vector<8x32xf32>
    %345 = arith.mulf %338, %323 : vector<8x32xf32>
    %346 = arith.mulf %337, %343 : vector<8x32xf32>
    %347 = arith.addf %345, %346 : vector<8x32xf32>
    %348 = math.tanh %347 : vector<8x32xf32>
    %349 = arith.mulf %344, %348 : vector<8x32xf32>
    %cst_94 = arith.constant dense<0.000000e+00> : vector<8x128xf32>
    %350 = tpu.matmul %220, %225, %cst_94 {dimension_numbers = #tpu.dot_dimension_numbers<[1], [0], [0], [1], [0, 0, 1, 1], [], []>} : vector<8x32xbf16>, vector<32x128xbf16>, vector<8x128xf32> -> vector<8x128xf32>
    %351 = arith.truncf %349 : vector<8x32xf32> to vector<8x32xbf16>
    %cst_95 = arith.constant dense<0.000000e+00> : vector<8x128xf32>
    %352 = tpu.matmul %351, %226, %cst_95 {dimension_numbers = #tpu.dot_dimension_numbers<[1], [0], [0], [1], [0, 0, 1, 1], [], []>} : vector<8x32xbf16>, vector<32x128xbf16>, vector<8x128xf32> -> vector<8x128xf32>
    %353 = arith.addf %350, %352 : vector<8x128xf32>
    %354 = vector.broadcast %227 : vector<1x128xf32> to vector<8x128xf32>
    %355 = arith.addf %353, %354 : vector<8x128xf32>
    %356 = arith.negf %355 : vector<8x128xf32>
    %357 = math.exp %356 : vector<8x128xf32>
    %cst_96 = arith.constant 1.000000e+00 : f32
    %358 = vector.broadcast %cst_96 : f32 to vector<8x128xf32>
    %359 = arith.addf %358, %357 : vector<8x128xf32>
    %360 = arith.divf %358, %359 : vector<8x128xf32>
    %361 = vector.extract_strided_slice %360 {offsets = [0, 0], sizes = [8, 32], strides = [1, 1]} : vector<8x128xf32> to vector<8x32xf32>
    %362 = vector.extract_strided_slice %360 {offsets = [0, 32], sizes = [8, 32], strides = [1, 1]} : vector<8x128xf32> to vector<8x32xf32>
    %363 = vector.extract_strided_slice %360 {offsets = [0, 64], sizes = [8, 32], strides = [1, 1]} : vector<8x128xf32> to vector<8x32xf32>
    %cst_97 = arith.constant 2.000000e+00 : f32
    %364 = vector.broadcast %cst_97 : f32 to vector<8x32xf32>
    %365 = arith.mulf %364, %363 : vector<8x32xf32>
    %cst_98 = arith.constant 1.000000e+00 : f32
    %366 = vector.broadcast %cst_98 : f32 to vector<8x32xf32>
    %367 = arith.subf %365, %366 : vector<8x32xf32>
    %368 = vector.extract_strided_slice %360 {offsets = [0, 96], sizes = [8, 32], strides = [1, 1]} : vector<8x128xf32> to vector<8x32xf32>
    %369 = arith.mulf %362, %347 : vector<8x32xf32>
    %370 = arith.mulf %361, %367 : vector<8x32xf32>
    %371 = arith.addf %369, %370 : vector<8x32xf32>
    %372 = math.tanh %371 : vector<8x32xf32>
    %373 = arith.mulf %368, %372 : vector<8x32xf32>
    %cst_99 = arith.constant dense<0.000000e+00> : vector<8x128xf32>
    %374 = tpu.matmul %221, %225, %cst_99 {dimension_numbers = #tpu.dot_dimension_numbers<[1], [0], [0], [1], [0, 0, 1, 1], [], []>} : vector<8x32xbf16>, vector<32x128xbf16>, vector<8x128xf32> -> vector<8x128xf32>
    %375 = arith.truncf %373 : vector<8x32xf32> to vector<8x32xbf16>
    %cst_100 = arith.constant dense<0.000000e+00> : vector<8x128xf32>
    %376 = tpu.matmul %375, %226, %cst_100 {dimension_numbers = #tpu.dot_dimension_numbers<[1], [0], [0], [1], [0, 0, 1, 1], [], []>} : vector<8x32xbf16>, vector<32x128xbf16>, vector<8x128xf32> -> vector<8x128xf32>
    %377 = arith.addf %374, %376 : vector<8x128xf32>
    %378 = vector.broadcast %227 : vector<1x128xf32> to vector<8x128xf32>
    %379 = arith.addf %377, %378 : vector<8x128xf32>
    %380 = arith.negf %379 : vector<8x128xf32>
    %381 = math.exp %380 : vector<8x128xf32>
    %cst_101 = arith.constant 1.000000e+00 : f32
    %382 = vector.broadcast %cst_101 : f32 to vector<8x128xf32>
    %383 = arith.addf %382, %381 : vector<8x128xf32>
    %384 = arith.divf %382, %383 : vector<8x128xf32>
    %385 = vector.extract_strided_slice %384 {offsets = [0, 0], sizes = [8, 32], strides = [1, 1]} : vector<8x128xf32> to vector<8x32xf32>
    %386 = vector.extract_strided_slice %384 {offsets = [0, 32], sizes = [8, 32], strides = [1, 1]} : vector<8x128xf32> to vector<8x32xf32>
    %387 = vector.extract_strided_slice %384 {offsets = [0, 64], sizes = [8, 32], strides = [1, 1]} : vector<8x128xf32> to vector<8x32xf32>
    %cst_102 = arith.constant 2.000000e+00 : f32
    %388 = vector.broadcast %cst_102 : f32 to vector<8x32xf32>
    %389 = arith.mulf %388, %387 : vector<8x32xf32>
    %cst_103 = arith.constant 1.000000e+00 : f32
    %390 = vector.broadcast %cst_103 : f32 to vector<8x32xf32>
    %391 = arith.subf %389, %390 : vector<8x32xf32>
    %392 = vector.extract_strided_slice %384 {offsets = [0, 96], sizes = [8, 32], strides = [1, 1]} : vector<8x128xf32> to vector<8x32xf32>
    %393 = arith.mulf %386, %371 : vector<8x32xf32>
    %394 = arith.mulf %385, %391 : vector<8x32xf32>
    %395 = arith.addf %393, %394 : vector<8x32xf32>
    %396 = math.tanh %395 : vector<8x32xf32>
    %397 = arith.mulf %392, %396 : vector<8x32xf32>
    %cst_104 = arith.constant dense<0.000000e+00> : vector<8x128xf32>
    %398 = tpu.matmul %222, %225, %cst_104 {dimension_numbers = #tpu.dot_dimension_numbers<[1], [0], [0], [1], [0, 0, 1, 1], [], []>} : vector<8x32xbf16>, vector<32x128xbf16>, vector<8x128xf32> -> vector<8x128xf32>
    %399 = arith.truncf %397 : vector<8x32xf32> to vector<8x32xbf16>
    %cst_105 = arith.constant dense<0.000000e+00> : vector<8x128xf32>
    %400 = tpu.matmul %399, %226, %cst_105 {dimension_numbers = #tpu.dot_dimension_numbers<[1], [0], [0], [1], [0, 0, 1, 1], [], []>} : vector<8x32xbf16>, vector<32x128xbf16>, vector<8x128xf32> -> vector<8x128xf32>
    %401 = arith.addf %398, %400 : vector<8x128xf32>
    %402 = vector.broadcast %227 : vector<1x128xf32> to vector<8x128xf32>
    %403 = arith.addf %401, %402 : vector<8x128xf32>
    %404 = arith.negf %403 : vector<8x128xf32>
    %405 = math.exp %404 : vector<8x128xf32>
    %cst_106 = arith.constant 1.000000e+00 : f32
    %406 = vector.broadcast %cst_106 : f32 to vector<8x128xf32>
    %407 = arith.addf %406, %405 : vector<8x128xf32>
    %408 = arith.divf %406, %407 : vector<8x128xf32>
    %409 = vector.extract_strided_slice %408 {offsets = [0, 0], sizes = [8, 32], strides = [1, 1]} : vector<8x128xf32> to vector<8x32xf32>
    %410 = vector.extract_strided_slice %408 {offsets = [0, 32], sizes = [8, 32], strides = [1, 1]} : vector<8x128xf32> to vector<8x32xf32>
    %411 = vector.extract_strided_slice %408 {offsets = [0, 64], sizes = [8, 32], strides = [1, 1]} : vector<8x128xf32> to vector<8x32xf32>
    %cst_107 = arith.constant 2.000000e+00 : f32
    %412 = vector.broadcast %cst_107 : f32 to vector<8x32xf32>
    %413 = arith.mulf %412, %411 : vector<8x32xf32>
    %cst_108 = arith.constant 1.000000e+00 : f32
    %414 = vector.broadcast %cst_108 : f32 to vector<8x32xf32>
    %415 = arith.subf %413, %414 : vector<8x32xf32>
    %416 = vector.extract_strided_slice %408 {offsets = [0, 96], sizes = [8, 32], strides = [1, 1]} : vector<8x128xf32> to vector<8x32xf32>
    %417 = arith.mulf %410, %395 : vector<8x32xf32>
    %418 = arith.mulf %409, %415 : vector<8x32xf32>
    %419 = arith.addf %417, %418 : vector<8x32xf32>
    %420 = math.tanh %419 : vector<8x32xf32>
    %421 = arith.mulf %416, %420 : vector<8x32xf32>
    %422 = arith.truncf %253 : vector<8x32xf32> to vector<8x32xbf16>
    %423 = arith.truncf %277 : vector<8x32xf32> to vector<8x32xbf16>
    %424 = arith.truncf %301 : vector<8x32xf32> to vector<8x32xbf16>
    %425 = arith.truncf %325 : vector<8x32xf32> to vector<8x32xbf16>
    %426 = arith.truncf %349 : vector<8x32xf32> to vector<8x32xbf16>
    %427 = arith.truncf %373 : vector<8x32xf32> to vector<8x32xbf16>
    %428 = arith.truncf %397 : vector<8x32xf32> to vector<8x32xbf16>
    %429 = arith.truncf %421 : vector<8x32xf32> to vector<8x32xbf16>
    %c2_109 = arith.constant 2 : index
    %c0_110 = arith.constant 0 : index
    %c0_111 = arith.constant 0 : index
    %430 = vector.load %arg2[%c2_109, %c0_110, %c0_111] : memref<3x64x128xbf16, #tpu.memory_space<vmem>>, vector<1x64x128xbf16>
    %431 = vector.shape_cast %430 : vector<1x64x128xbf16> to vector<64x128xbf16>
    %432 = vector.extract_strided_slice %431 {offsets = [0, 0], sizes = [32, 128], strides = [1, 1]} : vector<64x128xbf16> to vector<32x128xbf16>
    %433 = vector.extract_strided_slice %431 {offsets = [32, 0], sizes = [32, 128], strides = [1, 1]} : vector<64x128xbf16> to vector<32x128xbf16>
    %c2_112 = arith.constant 2 : index
    %c0_113 = arith.constant 0 : index
    %434 = vector.load %arg3[%c2_112, %c0_113] : memref<4x128xf32, #tpu.memory_space<vmem>>, vector<1x128xf32>
    %cst_114 = arith.constant 0.000000e+00 : f32
    %435 = vector.broadcast %cst_114 : f32 to vector<8x32xf32>
    %cst_115 = arith.constant 0.000000e+00 : f32
    %436 = vector.broadcast %cst_115 : f32 to vector<8x32xf32>
    %cst_116 = arith.constant dense<0.000000e+00> : vector<8x128xf32>
    %437 = tpu.matmul %422, %432, %cst_116 {dimension_numbers = #tpu.dot_dimension_numbers<[1], [0], [0], [1], [0, 0, 1, 1], [], []>} : vector<8x32xbf16>, vector<32x128xbf16>, vector<8x128xf32> -> vector<8x128xf32>
    %438 = arith.truncf %435 : vector<8x32xf32> to vector<8x32xbf16>
    %cst_117 = arith.constant dense<0.000000e+00> : vector<8x128xf32>
    %439 = tpu.matmul %438, %433, %cst_117 {dimension_numbers = #tpu.dot_dimension_numbers<[1], [0], [0], [1], [0, 0, 1, 1], [], []>} : vector<8x32xbf16>, vector<32x128xbf16>, vector<8x128xf32> -> vector<8x128xf32>
    %440 = arith.addf %437, %439 : vector<8x128xf32>
    %441 = vector.broadcast %434 : vector<1x128xf32> to vector<8x128xf32>
    %442 = arith.addf %440, %441 : vector<8x128xf32>
    %443 = arith.negf %442 : vector<8x128xf32>
    %444 = math.exp %443 : vector<8x128xf32>
    %cst_118 = arith.constant 1.000000e+00 : f32
    %445 = vector.broadcast %cst_118 : f32 to vector<8x128xf32>
    %446 = arith.addf %445, %444 : vector<8x128xf32>
    %447 = arith.divf %445, %446 : vector<8x128xf32>
    %448 = vector.extract_strided_slice %447 {offsets = [0, 0], sizes = [8, 32], strides = [1, 1]} : vector<8x128xf32> to vector<8x32xf32>
    %449 = vector.extract_strided_slice %447 {offsets = [0, 32], sizes = [8, 32], strides = [1, 1]} : vector<8x128xf32> to vector<8x32xf32>
    %450 = vector.extract_strided_slice %447 {offsets = [0, 64], sizes = [8, 32], strides = [1, 1]} : vector<8x128xf32> to vector<8x32xf32>
    %cst_119 = arith.constant 2.000000e+00 : f32
    %451 = vector.broadcast %cst_119 : f32 to vector<8x32xf32>
    %452 = arith.mulf %451, %450 : vector<8x32xf32>
    %cst_120 = arith.constant 1.000000e+00 : f32
    %453 = vector.broadcast %cst_120 : f32 to vector<8x32xf32>
    %454 = arith.subf %452, %453 : vector<8x32xf32>
    %455 = vector.extract_strided_slice %447 {offsets = [0, 96], sizes = [8, 32], strides = [1, 1]} : vector<8x128xf32> to vector<8x32xf32>
    %456 = arith.mulf %449, %436 : vector<8x32xf32>
    %457 = arith.mulf %448, %454 : vector<8x32xf32>
    %458 = arith.addf %456, %457 : vector<8x32xf32>
    %459 = math.tanh %458 : vector<8x32xf32>
    %460 = arith.mulf %455, %459 : vector<8x32xf32>
    %cst_121 = arith.constant dense<0.000000e+00> : vector<8x128xf32>
    %461 = tpu.matmul %423, %432, %cst_121 {dimension_numbers = #tpu.dot_dimension_numbers<[1], [0], [0], [1], [0, 0, 1, 1], [], []>} : vector<8x32xbf16>, vector<32x128xbf16>, vector<8x128xf32> -> vector<8x128xf32>
    %462 = arith.truncf %460 : vector<8x32xf32> to vector<8x32xbf16>
    %cst_122 = arith.constant dense<0.000000e+00> : vector<8x128xf32>
    %463 = tpu.matmul %462, %433, %cst_122 {dimension_numbers = #tpu.dot_dimension_numbers<[1], [0], [0], [1], [0, 0, 1, 1], [], []>} : vector<8x32xbf16>, vector<32x128xbf16>, vector<8x128xf32> -> vector<8x128xf32>
    %464 = arith.addf %461, %463 : vector<8x128xf32>
    %465 = vector.broadcast %434 : vector<1x128xf32> to vector<8x128xf32>
    %466 = arith.addf %464, %465 : vector<8x128xf32>
    %467 = arith.negf %466 : vector<8x128xf32>
    %468 = math.exp %467 : vector<8x128xf32>
    %cst_123 = arith.constant 1.000000e+00 : f32
    %469 = vector.broadcast %cst_123 : f32 to vector<8x128xf32>
    %470 = arith.addf %469, %468 : vector<8x128xf32>
    %471 = arith.divf %469, %470 : vector<8x128xf32>
    %472 = vector.extract_strided_slice %471 {offsets = [0, 0], sizes = [8, 32], strides = [1, 1]} : vector<8x128xf32> to vector<8x32xf32>
    %473 = vector.extract_strided_slice %471 {offsets = [0, 32], sizes = [8, 32], strides = [1, 1]} : vector<8x128xf32> to vector<8x32xf32>
    %474 = vector.extract_strided_slice %471 {offsets = [0, 64], sizes = [8, 32], strides = [1, 1]} : vector<8x128xf32> to vector<8x32xf32>
    %cst_124 = arith.constant 2.000000e+00 : f32
    %475 = vector.broadcast %cst_124 : f32 to vector<8x32xf32>
    %476 = arith.mulf %475, %474 : vector<8x32xf32>
    %cst_125 = arith.constant 1.000000e+00 : f32
    %477 = vector.broadcast %cst_125 : f32 to vector<8x32xf32>
    %478 = arith.subf %476, %477 : vector<8x32xf32>
    %479 = vector.extract_strided_slice %471 {offsets = [0, 96], sizes = [8, 32], strides = [1, 1]} : vector<8x128xf32> to vector<8x32xf32>
    %480 = arith.mulf %473, %458 : vector<8x32xf32>
    %481 = arith.mulf %472, %478 : vector<8x32xf32>
    %482 = arith.addf %480, %481 : vector<8x32xf32>
    %483 = math.tanh %482 : vector<8x32xf32>
    %484 = arith.mulf %479, %483 : vector<8x32xf32>
    %cst_126 = arith.constant dense<0.000000e+00> : vector<8x128xf32>
    %485 = tpu.matmul %424, %432, %cst_126 {dimension_numbers = #tpu.dot_dimension_numbers<[1], [0], [0], [1], [0, 0, 1, 1], [], []>} : vector<8x32xbf16>, vector<32x128xbf16>, vector<8x128xf32> -> vector<8x128xf32>
    %486 = arith.truncf %484 : vector<8x32xf32> to vector<8x32xbf16>
    %cst_127 = arith.constant dense<0.000000e+00> : vector<8x128xf32>
    %487 = tpu.matmul %486, %433, %cst_127 {dimension_numbers = #tpu.dot_dimension_numbers<[1], [0], [0], [1], [0, 0, 1, 1], [], []>} : vector<8x32xbf16>, vector<32x128xbf16>, vector<8x128xf32> -> vector<8x128xf32>
    %488 = arith.addf %485, %487 : vector<8x128xf32>
    %489 = vector.broadcast %434 : vector<1x128xf32> to vector<8x128xf32>
    %490 = arith.addf %488, %489 : vector<8x128xf32>
    %491 = arith.negf %490 : vector<8x128xf32>
    %492 = math.exp %491 : vector<8x128xf32>
    %cst_128 = arith.constant 1.000000e+00 : f32
    %493 = vector.broadcast %cst_128 : f32 to vector<8x128xf32>
    %494 = arith.addf %493, %492 : vector<8x128xf32>
    %495 = arith.divf %493, %494 : vector<8x128xf32>
    %496 = vector.extract_strided_slice %495 {offsets = [0, 0], sizes = [8, 32], strides = [1, 1]} : vector<8x128xf32> to vector<8x32xf32>
    %497 = vector.extract_strided_slice %495 {offsets = [0, 32], sizes = [8, 32], strides = [1, 1]} : vector<8x128xf32> to vector<8x32xf32>
    %498 = vector.extract_strided_slice %495 {offsets = [0, 64], sizes = [8, 32], strides = [1, 1]} : vector<8x128xf32> to vector<8x32xf32>
    %cst_129 = arith.constant 2.000000e+00 : f32
    %499 = vector.broadcast %cst_129 : f32 to vector<8x32xf32>
    %500 = arith.mulf %499, %498 : vector<8x32xf32>
    %cst_130 = arith.constant 1.000000e+00 : f32
    %501 = vector.broadcast %cst_130 : f32 to vector<8x32xf32>
    %502 = arith.subf %500, %501 : vector<8x32xf32>
    %503 = vector.extract_strided_slice %495 {offsets = [0, 96], sizes = [8, 32], strides = [1, 1]} : vector<8x128xf32> to vector<8x32xf32>
    %504 = arith.mulf %497, %482 : vector<8x32xf32>
    %505 = arith.mulf %496, %502 : vector<8x32xf32>
    %506 = arith.addf %504, %505 : vector<8x32xf32>
    %507 = math.tanh %506 : vector<8x32xf32>
    %508 = arith.mulf %503, %507 : vector<8x32xf32>
    %cst_131 = arith.constant dense<0.000000e+00> : vector<8x128xf32>
    %509 = tpu.matmul %425, %432, %cst_131 {dimension_numbers = #tpu.dot_dimension_numbers<[1], [0], [0], [1], [0, 0, 1, 1], [], []>} : vector<8x32xbf16>, vector<32x128xbf16>, vector<8x128xf32> -> vector<8x128xf32>
    %510 = arith.truncf %508 : vector<8x32xf32> to vector<8x32xbf16>
    %cst_132 = arith.constant dense<0.000000e+00> : vector<8x128xf32>
    %511 = tpu.matmul %510, %433, %cst_132 {dimension_numbers = #tpu.dot_dimension_numbers<[1], [0], [0], [1], [0, 0, 1, 1], [], []>} : vector<8x32xbf16>, vector<32x128xbf16>, vector<8x128xf32> -> vector<8x128xf32>
    %512 = arith.addf %509, %511 : vector<8x128xf32>
    %513 = vector.broadcast %434 : vector<1x128xf32> to vector<8x128xf32>
    %514 = arith.addf %512, %513 : vector<8x128xf32>
    %515 = arith.negf %514 : vector<8x128xf32>
    %516 = math.exp %515 : vector<8x128xf32>
    %cst_133 = arith.constant 1.000000e+00 : f32
    %517 = vector.broadcast %cst_133 : f32 to vector<8x128xf32>
    %518 = arith.addf %517, %516 : vector<8x128xf32>
    %519 = arith.divf %517, %518 : vector<8x128xf32>
    %520 = vector.extract_strided_slice %519 {offsets = [0, 0], sizes = [8, 32], strides = [1, 1]} : vector<8x128xf32> to vector<8x32xf32>
    %521 = vector.extract_strided_slice %519 {offsets = [0, 32], sizes = [8, 32], strides = [1, 1]} : vector<8x128xf32> to vector<8x32xf32>
    %522 = vector.extract_strided_slice %519 {offsets = [0, 64], sizes = [8, 32], strides = [1, 1]} : vector<8x128xf32> to vector<8x32xf32>
    %cst_134 = arith.constant 2.000000e+00 : f32
    %523 = vector.broadcast %cst_134 : f32 to vector<8x32xf32>
    %524 = arith.mulf %523, %522 : vector<8x32xf32>
    %cst_135 = arith.constant 1.000000e+00 : f32
    %525 = vector.broadcast %cst_135 : f32 to vector<8x32xf32>
    %526 = arith.subf %524, %525 : vector<8x32xf32>
    %527 = vector.extract_strided_slice %519 {offsets = [0, 96], sizes = [8, 32], strides = [1, 1]} : vector<8x128xf32> to vector<8x32xf32>
    %528 = arith.mulf %521, %506 : vector<8x32xf32>
    %529 = arith.mulf %520, %526 : vector<8x32xf32>
    %530 = arith.addf %528, %529 : vector<8x32xf32>
    %531 = math.tanh %530 : vector<8x32xf32>
    %532 = arith.mulf %527, %531 : vector<8x32xf32>
    %cst_136 = arith.constant dense<0.000000e+00> : vector<8x128xf32>
    %533 = tpu.matmul %426, %432, %cst_136 {dimension_numbers = #tpu.dot_dimension_numbers<[1], [0], [0], [1], [0, 0, 1, 1], [], []>} : vector<8x32xbf16>, vector<32x128xbf16>, vector<8x128xf32> -> vector<8x128xf32>
    %534 = arith.truncf %532 : vector<8x32xf32> to vector<8x32xbf16>
    %cst_137 = arith.constant dense<0.000000e+00> : vector<8x128xf32>
    %535 = tpu.matmul %534, %433, %cst_137 {dimension_numbers = #tpu.dot_dimension_numbers<[1], [0], [0], [1], [0, 0, 1, 1], [], []>} : vector<8x32xbf16>, vector<32x128xbf16>, vector<8x128xf32> -> vector<8x128xf32>
    %536 = arith.addf %533, %535 : vector<8x128xf32>
    %537 = vector.broadcast %434 : vector<1x128xf32> to vector<8x128xf32>
    %538 = arith.addf %536, %537 : vector<8x128xf32>
    %539 = arith.negf %538 : vector<8x128xf32>
    %540 = math.exp %539 : vector<8x128xf32>
    %cst_138 = arith.constant 1.000000e+00 : f32
    %541 = vector.broadcast %cst_138 : f32 to vector<8x128xf32>
    %542 = arith.addf %541, %540 : vector<8x128xf32>
    %543 = arith.divf %541, %542 : vector<8x128xf32>
    %544 = vector.extract_strided_slice %543 {offsets = [0, 0], sizes = [8, 32], strides = [1, 1]} : vector<8x128xf32> to vector<8x32xf32>
    %545 = vector.extract_strided_slice %543 {offsets = [0, 32], sizes = [8, 32], strides = [1, 1]} : vector<8x128xf32> to vector<8x32xf32>
    %546 = vector.extract_strided_slice %543 {offsets = [0, 64], sizes = [8, 32], strides = [1, 1]} : vector<8x128xf32> to vector<8x32xf32>
    %cst_139 = arith.constant 2.000000e+00 : f32
    %547 = vector.broadcast %cst_139 : f32 to vector<8x32xf32>
    %548 = arith.mulf %547, %546 : vector<8x32xf32>
    %cst_140 = arith.constant 1.000000e+00 : f32
    %549 = vector.broadcast %cst_140 : f32 to vector<8x32xf32>
    %550 = arith.subf %548, %549 : vector<8x32xf32>
    %551 = vector.extract_strided_slice %543 {offsets = [0, 96], sizes = [8, 32], strides = [1, 1]} : vector<8x128xf32> to vector<8x32xf32>
    %552 = arith.mulf %545, %530 : vector<8x32xf32>
    %553 = arith.mulf %544, %550 : vector<8x32xf32>
    %554 = arith.addf %552, %553 : vector<8x32xf32>
    %555 = math.tanh %554 : vector<8x32xf32>
    %556 = arith.mulf %551, %555 : vector<8x32xf32>
    %cst_141 = arith.constant dense<0.000000e+00> : vector<8x128xf32>
    %557 = tpu.matmul %427, %432, %cst_141 {dimension_numbers = #tpu.dot_dimension_numbers<[1], [0], [0], [1], [0, 0, 1, 1], [], []>} : vector<8x32xbf16>, vector<32x128xbf16>, vector<8x128xf32> -> vector<8x128xf32>
    %558 = arith.truncf %556 : vector<8x32xf32> to vector<8x32xbf16>
    %cst_142 = arith.constant dense<0.000000e+00> : vector<8x128xf32>
    %559 = tpu.matmul %558, %433, %cst_142 {dimension_numbers = #tpu.dot_dimension_numbers<[1], [0], [0], [1], [0, 0, 1, 1], [], []>} : vector<8x32xbf16>, vector<32x128xbf16>, vector<8x128xf32> -> vector<8x128xf32>
    %560 = arith.addf %557, %559 : vector<8x128xf32>
    %561 = vector.broadcast %434 : vector<1x128xf32> to vector<8x128xf32>
    %562 = arith.addf %560, %561 : vector<8x128xf32>
    %563 = arith.negf %562 : vector<8x128xf32>
    %564 = math.exp %563 : vector<8x128xf32>
    %cst_143 = arith.constant 1.000000e+00 : f32
    %565 = vector.broadcast %cst_143 : f32 to vector<8x128xf32>
    %566 = arith.addf %565, %564 : vector<8x128xf32>
    %567 = arith.divf %565, %566 : vector<8x128xf32>
    %568 = vector.extract_strided_slice %567 {offsets = [0, 0], sizes = [8, 32], strides = [1, 1]} : vector<8x128xf32> to vector<8x32xf32>
    %569 = vector.extract_strided_slice %567 {offsets = [0, 32], sizes = [8, 32], strides = [1, 1]} : vector<8x128xf32> to vector<8x32xf32>
    %570 = vector.extract_strided_slice %567 {offsets = [0, 64], sizes = [8, 32], strides = [1, 1]} : vector<8x128xf32> to vector<8x32xf32>
    %cst_144 = arith.constant 2.000000e+00 : f32
    %571 = vector.broadcast %cst_144 : f32 to vector<8x32xf32>
    %572 = arith.mulf %571, %570 : vector<8x32xf32>
    %cst_145 = arith.constant 1.000000e+00 : f32
    %573 = vector.broadcast %cst_145 : f32 to vector<8x32xf32>
    %574 = arith.subf %572, %573 : vector<8x32xf32>
    %575 = vector.extract_strided_slice %567 {offsets = [0, 96], sizes = [8, 32], strides = [1, 1]} : vector<8x128xf32> to vector<8x32xf32>
    %576 = arith.mulf %569, %554 : vector<8x32xf32>
    %577 = arith.mulf %568, %574 : vector<8x32xf32>
    %578 = arith.addf %576, %577 : vector<8x32xf32>
    %579 = math.tanh %578 : vector<8x32xf32>
    %580 = arith.mulf %575, %579 : vector<8x32xf32>
    %cst_146 = arith.constant dense<0.000000e+00> : vector<8x128xf32>
    %581 = tpu.matmul %428, %432, %cst_146 {dimension_numbers = #tpu.dot_dimension_numbers<[1], [0], [0], [1], [0, 0, 1, 1], [], []>} : vector<8x32xbf16>, vector<32x128xbf16>, vector<8x128xf32> -> vector<8x128xf32>
    %582 = arith.truncf %580 : vector<8x32xf32> to vector<8x32xbf16>
    %cst_147 = arith.constant dense<0.000000e+00> : vector<8x128xf32>
    %583 = tpu.matmul %582, %433, %cst_147 {dimension_numbers = #tpu.dot_dimension_numbers<[1], [0], [0], [1], [0, 0, 1, 1], [], []>} : vector<8x32xbf16>, vector<32x128xbf16>, vector<8x128xf32> -> vector<8x128xf32>
    %584 = arith.addf %581, %583 : vector<8x128xf32>
    %585 = vector.broadcast %434 : vector<1x128xf32> to vector<8x128xf32>
    %586 = arith.addf %584, %585 : vector<8x128xf32>
    %587 = arith.negf %586 : vector<8x128xf32>
    %588 = math.exp %587 : vector<8x128xf32>
    %cst_148 = arith.constant 1.000000e+00 : f32
    %589 = vector.broadcast %cst_148 : f32 to vector<8x128xf32>
    %590 = arith.addf %589, %588 : vector<8x128xf32>
    %591 = arith.divf %589, %590 : vector<8x128xf32>
    %592 = vector.extract_strided_slice %591 {offsets = [0, 0], sizes = [8, 32], strides = [1, 1]} : vector<8x128xf32> to vector<8x32xf32>
    %593 = vector.extract_strided_slice %591 {offsets = [0, 32], sizes = [8, 32], strides = [1, 1]} : vector<8x128xf32> to vector<8x32xf32>
    %594 = vector.extract_strided_slice %591 {offsets = [0, 64], sizes = [8, 32], strides = [1, 1]} : vector<8x128xf32> to vector<8x32xf32>
    %cst_149 = arith.constant 2.000000e+00 : f32
    %595 = vector.broadcast %cst_149 : f32 to vector<8x32xf32>
    %596 = arith.mulf %595, %594 : vector<8x32xf32>
    %cst_150 = arith.constant 1.000000e+00 : f32
    %597 = vector.broadcast %cst_150 : f32 to vector<8x32xf32>
    %598 = arith.subf %596, %597 : vector<8x32xf32>
    %599 = vector.extract_strided_slice %591 {offsets = [0, 96], sizes = [8, 32], strides = [1, 1]} : vector<8x128xf32> to vector<8x32xf32>
    %600 = arith.mulf %593, %578 : vector<8x32xf32>
    %601 = arith.mulf %592, %598 : vector<8x32xf32>
    %602 = arith.addf %600, %601 : vector<8x32xf32>
    %603 = math.tanh %602 : vector<8x32xf32>
    %604 = arith.mulf %599, %603 : vector<8x32xf32>
    %cst_151 = arith.constant dense<0.000000e+00> : vector<8x128xf32>
    %605 = tpu.matmul %429, %432, %cst_151 {dimension_numbers = #tpu.dot_dimension_numbers<[1], [0], [0], [1], [0, 0, 1, 1], [], []>} : vector<8x32xbf16>, vector<32x128xbf16>, vector<8x128xf32> -> vector<8x128xf32>
    %606 = arith.truncf %604 : vector<8x32xf32> to vector<8x32xbf16>
    %cst_152 = arith.constant dense<0.000000e+00> : vector<8x128xf32>
    %607 = tpu.matmul %606, %433, %cst_152 {dimension_numbers = #tpu.dot_dimension_numbers<[1], [0], [0], [1], [0, 0, 1, 1], [], []>} : vector<8x32xbf16>, vector<32x128xbf16>, vector<8x128xf32> -> vector<8x128xf32>
    %608 = arith.addf %605, %607 : vector<8x128xf32>
    %609 = vector.broadcast %434 : vector<1x128xf32> to vector<8x128xf32>
    %610 = arith.addf %608, %609 : vector<8x128xf32>
    %611 = arith.negf %610 : vector<8x128xf32>
    %612 = math.exp %611 : vector<8x128xf32>
    %cst_153 = arith.constant 1.000000e+00 : f32
    %613 = vector.broadcast %cst_153 : f32 to vector<8x128xf32>
    %614 = arith.addf %613, %612 : vector<8x128xf32>
    %615 = arith.divf %613, %614 : vector<8x128xf32>
    %616 = vector.extract_strided_slice %615 {offsets = [0, 0], sizes = [8, 32], strides = [1, 1]} : vector<8x128xf32> to vector<8x32xf32>
    %617 = vector.extract_strided_slice %615 {offsets = [0, 32], sizes = [8, 32], strides = [1, 1]} : vector<8x128xf32> to vector<8x32xf32>
    %618 = vector.extract_strided_slice %615 {offsets = [0, 64], sizes = [8, 32], strides = [1, 1]} : vector<8x128xf32> to vector<8x32xf32>
    %cst_154 = arith.constant 2.000000e+00 : f32
    %619 = vector.broadcast %cst_154 : f32 to vector<8x32xf32>
    %620 = arith.mulf %619, %618 : vector<8x32xf32>
    %cst_155 = arith.constant 1.000000e+00 : f32
    %621 = vector.broadcast %cst_155 : f32 to vector<8x32xf32>
    %622 = arith.subf %620, %621 : vector<8x32xf32>
    %623 = vector.extract_strided_slice %615 {offsets = [0, 96], sizes = [8, 32], strides = [1, 1]} : vector<8x128xf32> to vector<8x32xf32>
    %624 = arith.mulf %617, %602 : vector<8x32xf32>
    %625 = arith.mulf %616, %622 : vector<8x32xf32>
    %626 = arith.addf %624, %625 : vector<8x32xf32>
    %627 = math.tanh %626 : vector<8x32xf32>
    %628 = arith.mulf %623, %627 : vector<8x32xf32>
    %c3_156 = arith.constant 3 : index
    %c0_157 = arith.constant 0 : index
    %629 = vector.load %arg3[%c3_156, %c0_157] : memref<4x128xf32, #tpu.memory_space<vmem>>, vector<1x1xf32>
    %c0_158 = arith.constant 0 : index
    %c0_159 = arith.constant 0 : index
    %630 = vector.load %arg4[%c0_158, %c0_159] : memref<8x32xf32, #tpu.memory_space<vmem>>, vector<8x32xf32>
    %631 = arith.mulf %628, %630 : vector<8x32xf32>
    %cst_160 = arith.constant dense<0.000000e+00> : vector<8xf32>
    %632 = vector.multi_reduction <add>, %631, %cst_160 [1] : vector<8x32xf32> to vector<8xf32>
    %633 = vector.shape_cast %632 : vector<8xf32> to vector<8x1xf32>
    %634 = vector.broadcast %629 : vector<1x1xf32> to vector<8x1xf32>
    %635 = arith.addf %633, %634 : vector<8x1xf32>
    %c0_161 = arith.constant 0 : index
    %c0_162 = arith.constant 0 : index
    %636 = vector.load %arg5[%c0_161, %c0_162] : memref<8x1xf32, #tpu.memory_space<vmem>>, vector<8x1xf32>
    tpu.vector_store %arg5[%c0_161, %c0_162], %635 {strides = array<i32>} : memref<8x1xf32, #tpu.memory_space<vmem>>, vector<8x1xf32>,
    return
  }
  func.func @transform_0(%arg0: i32) -> (i32, i32, i32) {
    %c0_i32 = arith.constant 0 : i32
    %c0_i32_0 = arith.constant 0 : i32
    %c0_i32_1 = arith.constant 0 : i32
    return %c0_i32, %arg0, %c0_i32_0 : i32, i32, i32
  }
  func.func @transform_1(%arg0: i32) -> (i32, i32, i32) {
    %c0_i32 = arith.constant 0 : i32
    %c0_i32_0 = arith.constant 0 : i32
    %c0_i32_1 = arith.constant 0 : i32
    %c0_i32_2 = arith.constant 0 : i32
    return %c0_i32, %c0_i32_0, %c0_i32_1 : i32, i32, i32
  }
  func.func @transform_2(%arg0: i32) -> (i32, i32) {
    %c0_i32 = arith.constant 0 : i32
    %c0_i32_0 = arith.constant 0 : i32
    %c0_i32_1 = arith.constant 0 : i32
    return %c0_i32, %c0_i32_0 : i32, i32
  }
  func.func @transform_3(%arg0: i32) -> (i32, i32) {
    %c0_i32 = arith.constant 0 : i32
    %c0_i32_0 = arith.constant 0 : i32
    return %arg0, %c0_i32 : i32, i32
  }
  func.func @transform_4(%arg0: i32) -> (i32, i32) {
    %c0_i32 = arith.constant 0 : i32
    %c0_i32_0 = arith.constant 0 : i32
    return %arg0, %c0_i32 : i32, i32
  }
}

</mosaic_0001>

<llo_original>
// kernel: tpu_custom_call.1
$region0: #{tpu_custom_call.1}
  #allocation0 [shape = 'u32[]', space=smem, size = 0x4, offset = 0x4, fixed_abs, tag = 'smem constant byte address 0x4 - core index']
  #allocation1 [shape = 'u32[144,128]{1,0:T(1,128)}', space=vmem, size = 0x12000, scoped, tag = 'internal scratch']
  %s0 = inlined_call_operand.hbm [shape: bf16[8,8,32], index: 0, kind: input, shape index: {}]
  %s1 = inlined_call_operand.hbm [shape: bf16[3,64,128], index: 1, kind: input, shape index: {}]
  %s2 = inlined_call_operand.hbm [shape: f32[4,128], index: 2, kind: input, shape index: {}]
  %s3 = inlined_call_operand.vmem [shape: f32[8,32], index: 3, kind: input, shape index: {}]
  %s4 = inlined_call_operand.vmem [shape: f32[8,1], index: 4, kind: output, shape index: {}]
  %s5 = sld [smem:[#allocation0]]
  $region38: #{tpu_custom_call.1} parent=0
    _
  %s7 = ssub.s32 1, %s5
  %s8 = scalar_select 0, %s7, %s5
  $region1: #{tpu_custom_call.1} parent=0
    #allocation2 [shape = 'u8[16384]{0}', space=vmem, size = 0x4000, scoped, tag = 'input window, operand 0, single buffered']
    #allocation3 [shape = 's32[1]{0}', space=sflag, size = 0x4, scoped, tag = 'scoped memory for tpu_custom_call.1']
    #allocation4 [shape = 'u8[49152]{0}', space=vmem, size = 0xc000, scoped, tag = 'input window, operand 1, single buffered']
    #allocation5 [shape = 's32[1]{0}', space=sflag, size = 0x4, scoped, tag = 'scoped memory for tpu_custom_call.1']
    #allocation6 [shape = 'u8[2048]{0}', space=vmem, size = 0x800, scoped, tag = 'input window, operand 2, single buffered']
    %9 = vsyncpa [#allocation3], 0
    %10 = vsyncpa [#allocation5], 0
    // Predicated region
    $region2: #{tpu_custom_call.1} parent=1 // pred_check
      _
    $region3: #{tpu_custom_call.1} parent=1 // pred_check_branch
      %12 = sbr.rel (0) target = $region5
    $region4: #{tpu_custom_call.1} parent=1 // pred_region
      %s14 = ssub.s32 512, 512
      %15 = vsyncadd [#allocation3], %s14
      %s16 = sshll.u32 [#allocation2], 4
      %s17 = int_to_ptr.vmem [resolvable:$true] %s16
      %22 = dma.hbm_to_vmem [thread:$0]  %s0, 512, %s17, [#allocation3], 64, 64, 4
    $region5: #{tpu_custom_call.1} parent=1 // pred_fallthru
      _
    // Predicated region
    $region6: #{tpu_custom_call.1} parent=1 // pred_check
      _
    $region7: #{tpu_custom_call.1} parent=1 // pred_check_branch
      %24 = sbr.rel (0) target = $region9
    $region8: #{tpu_custom_call.1} parent=1 // pred_region
      %s26 = ssub.s32 1536, 1536
      %27 = vsyncadd [#allocation5], %s26
      %s28 = sshll.u32 [#allocation4], 4
      %s29 = int_to_ptr.vmem [resolvable:$true] %s28
      %34 = dma.hbm_to_vmem [thread:$0]  %s1, 1536, %s29, [#allocation5], 64, 64, 4
    $region9: #{tpu_custom_call.1} parent=1 // pred_fallthru
      _
    // Predicated region
    $region10: #{tpu_custom_call.1} parent=1 // pred_check
      _
    $region11: #{tpu_custom_call.1} parent=1 // pred_check_branch
      %36 = sbr.rel (0) target = $region13
    $region12: #{tpu_custom_call.1} parent=1 // pred_region
      %s38 = ssub.s32 64, 64
      %39 = vsyncadd [#allocation5], %s38
      %s41 = sshll.u32 [#allocation6], 4
      %s42 = int_to_ptr.vmem [resolvable:$true] %s41
      %44 = dma.hbm_to_vmem [thread:$0]  %s2, 64, %s42, [#allocation5]
    $region13: #{tpu_custom_call.1} parent=1 // pred_fallthru
      _
    // Predicated region
    $region14: #{tpu_custom_call.1} parent=1 // pred_check
      _
    $region15: #{tpu_custom_call.1} parent=1 // pred_check_branch
      %46 = sbr.rel (0) target = $region17
    $region16: #{tpu_custom_call.1} parent=1 // pred_region
      _
    $region17: #{tpu_custom_call.1} parent=1 // pred_fallthru
      _
    // Predicated region
    $region18: #{tpu_custom_call.1} parent=1 // pred_check
      _
    $region19: #{tpu_custom_call.1} parent=1 // pred_check_branch
      %48 = sbr.rel (0) target = $region21
    $region20: #{tpu_custom_call.1} parent=1 // pred_region
      %49 = dma.done [#allocation3], 512
    $region21: #{tpu_custom_call.1} parent=1 // pred_fallthru
      _
    // Predicated region
    $region22: #{tpu_custom_call.1} parent=1 // pred_check
      _
    $region23: #{tpu_custom_call.1} parent=1 // pred_check_branch
      %51 = sbr.rel (0) target = $region25
    $region24: #{tpu_custom_call.1} parent=1 // pred_region
      %52 = dma.done [#allocation5], 1536
    $region25: #{tpu_custom_call.1} parent=1 // pred_fallthru
      _
    // Predicated region
    $region26: #{tpu_custom_call.1} parent=1 // pred_check
      _
    $region27: #{tpu_custom_call.1} parent=1 // pred_check_branch
      %54 = sbr.rel (0) target = $region29
    $region28: #{tpu_custom_call.1} parent=1 // pred_region
      %55 = dma.done [#allocation5], 64
    $region29: #{tpu_custom_call.1} parent=1 // pred_fallthru
      _
    %v57 = vld [vmem:[#allocation2] sm:$0xf]
    %s58 = scalar_lea.vmem [#allocation2], 4
    %v59 = vld [vmem:[%s58] sm:$0xf]
    %s60 = scalar_lea.vmem [#allocation2], 8
    %v61 = vld [vmem:[%s60] sm:$0xf]
    %s62 = scalar_lea.vmem [#allocation2], 12
    %v63 = vld [vmem:[%s62] sm:$0xf]
    %s64 = scalar_lea.vmem [#allocation2], 16
    %v65 = vld [vmem:[%s64] sm:$0xf]
    %s66 = scalar_lea.vmem [#allocation2], 20
    %v67 = vld [vmem:[%s66] sm:$0xf]
    %s68 = scalar_lea.vmem [#allocation2], 24
    %v69 = vld [vmem:[%s68] sm:$0xf]
    %s70 = scalar_lea.vmem [#allocation2], 28
    %v71 = vld [vmem:[%s70] sm:$0xf]
    %v72 = vld [vmem:[#allocation4] sm:$0xf]
    %v73 = vld [vmem:[#allocation4 + $0x4] sm:$0xf]
    %v74 = vld [vmem:[#allocation4 + $0x8] sm:$0xf]
    %v75 = vld [vmem:[#allocation4 + $0xc] sm:$0xf]
    %v76 = vld [vmem:[#allocation4 + $0x10] sm:$0xf]
    %v77 = vld [vmem:[#allocation4 + $0x14] sm:$0xf]
    %v78 = vld [vmem:[#allocation4 + $0x18] sm:$0xf]
    %v79 = vld [vmem:[#allocation4 + $0x1c] sm:$0xf]
    %v80 = vld [vmem:[#allocation6] sm:$0x1]
    %v85 = vunpack.c.l.b16 %v76
    %v86 = vunpack.c.l.b16 %v77
    %v87 = vunpack.c.l.b16 %v78
    %v88 = vunpack.c.l.b16 %v79
    %v89 = vpack.c.b16 %v86, %v85
    %v90 = vpack.c.b16 %v88, %v87
    %vm93 = vcmask 261120
    %v95 = vsel %vm93, 0, 0
    %97 = vmatprep.subr.bf16.mxu0 0
    %98 = vmatpush1.bf16.msra.mxu0 %v89
    %99 = vmatprep.subr.bf16.mxu0 0
    %100 = vmatpush1.bf16.msra.mxu0 %v90
    %101 = vmatprep.subr.bf16.mxu0 0
    %102 = vmatpush1.bf16.msra.mxu0 0
    %103 = vmatprep.subr.bf16.mxu0 0
    %104 = vmatpush1.bf16.msra.mxu0 0
    %105 = vmatprep.subr.bf16.mxu0 0
    %106 = vmatpush1.bf16.msra.mxu0 0
    %107 = vmatprep.subr.bf16.mxu0 0
    %108 = vmatpush1.bf16.msra.mxu0 0
    %109 = vmatprep.subr.bf16.mxu0 0
    %110 = vmatpush1.bf16.msra.mxu0 0
    %111 = vmatprep.subr.bf16.mxu0 0
    %112 = vmatpush1.bf16.msra.mxu0 0
    %113 = vmatprep.subr.bf16.mxu0 0
    %114 = vmatpush1.bf16.msra.mxu0 0
    %115 = vmatprep.subr.bf16.mxu0 0
    %116 = vmatpush1.bf16.msra.mxu0 0
    %117 = vmatprep.subr.bf16.mxu0 0
    %118 = vmatpush1.bf16.msra.mxu0 0
    %119 = vmatprep.subr.bf16.mxu0 0
    %120 = vmatpush1.bf16.msra.mxu0 0
    %121 = vmatprep.subr.bf16.mxu0 0
    %122 = vmatpush1.bf16.msra.mxu0 0
    %123 = vmatprep.subr.bf16.mxu0 0
    %124 = vmatpush1.bf16.msra.mxu0 0
    %125 = vmatprep.subr.bf16.mxu0 0
    %126 = vmatpush1.bf16.msra.mxu0 0
    %127 = vmatprep.subr.bf16.mxu0 0
    %128 = vmatpush1.bf16.msra.mxu0 0
    %129 = vmatprep.mubr.bf16.mxu0 0
    %130 = vmatmul.mubr.bf16.gmra.mrb[0].mxu0 %v95
    %v131 = vpop.f32.mrb[0].mxu0
    %v132 = vadd.f32 0.0, %v131
    %v133 = vpop.f32.mrb[0].mxu0
    %v134 = vpop.f32.mrb[0].mxu0
    %v135 = vpop.f32.mrb[0].mxu0
    %136 = vdwg.mxu0
    %v141 = vunpack.c.l.b16 %v72
    %v142 = vunpack.c.l.b16 %v73
    %v143 = vunpack.c.l.b16 %v74
    %v144 = vunpack.c.l.b16 %v75
    %v145 = vpack.c.b16 %v142, %v141
    %v146 = vpack.c.b16 %v144, %v143
    %v150 = vsel %vm93, %v57, 0
    %152 = vmatprep.subr.bf16.mxu0 0
    %153 = vmatpush1.bf16.msra.mxu0 %v145
    %154 = vmatprep.subr.bf16.mxu0 0
    %155 = vmatpush1.bf16.msra.mxu0 %v146
    %156 = vmatprep.subr.bf16.mxu0 0
    %157 = vmatpush1.bf16.msra.mxu0 0
    %158 = vmatprep.subr.bf16.mxu0 0
    %159 = vmatpush1.bf16.msra.mxu0 0
    %160 = vmatprep.subr.bf16.mxu0 0
    %161 = vmatpush1.bf16.msra.mxu0 0
    %162 = vmatprep.subr.bf16.mxu0 0
    %163 = vmatpush1.bf16.msra.mxu0 0
    %164 = vmatprep.subr.bf16.mxu0 0
    %165 = vmatpush1.bf16.msra.mxu0 0
    %166 = vmatprep.subr.bf16.mxu0 0
    %167 = vmatpush1.bf16.msra.mxu0 0
    %168 = vmatprep.subr.bf16.mxu0 0
    %169 = vmatpush1.bf16.msra.mxu0 0
    %170 = vmatprep.subr.bf16.mxu0 0
    %171 = vmatpush1.bf16.msra.mxu0 0
    %172 = vmatprep.subr.bf16.mxu0 0
    %173 = vmatpush1.bf16.msra.mxu0 0
    %174 = vmatprep.subr.bf16.mxu0 0
    %175 = vmatpush1.bf16.msra.mxu0 0
    %176 = vmatprep.subr.bf16.mxu0 0
    %177 = vmatpush1.bf16.msra.mxu0 0
    %178 = vmatprep.subr.bf16.mxu0 0
    %179 = vmatpush1.bf16.msra.mxu0 0
    %180 = vmatprep.subr.bf16.mxu0 0
    %181 = vmatpush1.bf16.msra.mxu0 0
    %182 = vmatprep.subr.bf16.mxu0 0
    %183 = vmatpush1.bf16.msra.mxu0 0
    %184 = vmatprep.mubr.bf16.mxu0 0
    %185 = vmatmul.mubr.bf16.gmra.mrb[0].mxu0 %v150
    %v186 = vpop.f32.mrb[0].mxu0
    %v187 = vadd.f32 %v132, %v186
    %v188 = vpop.f32.mrb[0].mxu0
    %v189 = vpop.f32.mrb[0].mxu0
    %v190 = vpop.f32.mrb[0].mxu0
    %191 = vdwg.mxu0
    %v192 = vlaneseq
    %v193 = vshrl.u32 %v192, 7
    %v194 = vsub.s32 0, %v193
    %v195 = vrot.slane %v80, %v194
    %v196 = vadd.f32 %v187, %v195
    %v197 = vxor.u32 %v196, 2147483648
    %v198 = vmul.f32 %v197, 1.442695
    %v199 = vpow.pop %v198
    %v200 = vadd.f32 %v199, 1.0
    %v201 = vrcp.pop %v200
    %v202 = vmul.f32 1.0, %v201
    %v203 = vmul.f32 %v202, 2.0
    %v204 = vsub.f32 %v203, 1.0
    %v205 = vmul.f32 %v202, 0.0
    %207 = vrot.lane.b32.xlu0 %v204, 64
    %v208 = vpop.permute.xlu0 %207
    %v210 = vmul.f32 %v202, %v208
    %212 = vrot.lane.b32.xlu0 %v210, 32
    %v213 = vpop.permute.xlu0 %212
    %v215 = vadd.f32 %v205, %v213
    %v216 = vtanh.pop %v215
    %218 = vrot.lane.b32.xlu0 %v216, 64
    %v219 = vpop.permute.xlu0 %218
    %v221 = vmul.f32 %v202, %v219
    %v222 = vpack.c.bf16 %v221, %v221
    %224 = vrot.lane.b32.xlu0 %v222, 32
    %v225 = vpop.permute.xlu0 %224
    %v227 = vsel %vm93, %v225, 0
    %229 = vmatprep.subr.bf16.mxu0 0
    %230 = vmatpush1.bf16.msra.mxu0 %v89
    %231 = vmatprep.subr.bf16.mxu0 0
    %232 = vmatpush1.bf16.msra.mxu0 %v90
    %233 = vmatprep.subr.bf16.mxu0 0
    %234 = vmatpush1.bf16.msra.mxu0 0
    %235 = vmatprep.subr.bf16.mxu0 0
    %236 = vmatpush1.bf16.msra.mxu0 0
    %237 = vmatprep.subr.bf16.mxu0 0
    %238 = vmatpush1.bf16.msra.mxu0 0
    %239 = vmatprep.subr.bf16.mxu0 0
    %240 = vmatpush1.bf16.msra.mxu0 0
    %241 = vmatprep.subr.bf16.mxu0 0
    %242 = vmatpush1.bf16.msra.mxu0 0
    %243 = vmatprep.subr.bf16.mxu0 0
    %244 = vmatpush1.bf16.msra.mxu0 0
    %245 = vmatprep.subr.bf16.mxu0 0
    %246 = vmatpush1.bf16.msra.mxu0 0
    %247 = vmatprep.subr.bf16.mxu0 0
    %248 = vmatpush1.bf16.msra.mxu0 0
    %249 = vmatprep.subr.bf16.mxu0 0
    %250 = vmatpush1.bf16.msra.mxu0 0
    %251 = vmatprep.subr.bf16.mxu0 0
    %252 = vmatpush1.bf16.msra.mxu0 0
    %253 = vmatprep.subr.bf16.mxu0 0
    %254 = vmatpush1.bf16.msra.mxu0 0
    %255 = vmatprep.subr.bf16.mxu0 0
    %256 = vmatpush1.bf16.msra.mxu0 0
    %257 = vmatprep.subr.bf16.mxu0 0
    %258 = vmatpush1.bf16.msra.mxu0 0
    %259 = vmatprep.subr.bf16.mxu0 0
    %260 = vmatpush1.bf16.msra.mxu0 0
    %261 = vmatprep.mubr.bf16.mxu0 0
    %262 = vmatmul.mubr.bf16.gmra.mrb[0].mxu0 %v227
    %v263 = vpop.f32.mrb[0].mxu0
    %v264 = vadd.f32 0.0, %v263
    %v265 = vpop.f32.mrb[0].mxu0
    %v266 = vpop.f32.mrb[0].mxu0
    %v267 = vpop.f32.mrb[0].mxu0
    %268 = vdwg.mxu0
    %v270 = vsel %vm93, %v59, 0
    %272 = vmatprep.subr.bf16.mxu0 0
    %273 = vmatpush1.bf16.msra.mxu0 %v145
    %274 = vmatprep.subr.bf16.mxu0 0
    %275 = vmatpush1.bf16.msra.mxu0 %v146
    %276 = vmatprep.subr.bf16.mxu0 0
    %277 = vmatpush1.bf16.msra.mxu0 0
    %278 = vmatprep.subr.bf16.mxu0 0
    %279 = vmatpush1.bf16.msra.mxu0 0
    %280 = vmatprep.subr.bf16.mxu0 0
    %281 = vmatpush1.bf16.msra.mxu0 0
    %282 = vmatprep.subr.bf16.mxu0 0
    %283 = vmatpush1.bf16.msra.mxu0 0
    %284 = vmatprep.subr.bf16.mxu0 0
    %285 = vmatpush1.bf16.msra.mxu0 0
    %286 = vmatprep.subr.bf16.mxu0 0
    %287 = vmatpush1.bf16.msra.mxu0 0
    %288 = vmatprep.subr.bf16.mxu0 0
    %289 = vmatpush1.bf16.msra.mxu0 0
    %290 = vmatprep.subr.bf16.mxu0 0
    %291 = vmatpush1.bf16.msra.mxu0 0
    %292 = vmatprep.subr.bf16.mxu0 0
    %293 = vmatpush1.bf16.msra.mxu0 0
    %294 = vmatprep.subr.bf16.mxu0 0
    %295 = vmatpush1.bf16.msra.mxu0 0
    %296 = vmatprep.subr.bf16.mxu0 0
    %297 = vmatpush1.bf16.msra.mxu0 0
    %298 = vmatprep.subr.bf16.mxu0 0
    %299 = vmatpush1.bf16.msra.mxu0 0
    %300 = vmatprep.subr.bf16.mxu0 0
    %301 = vmatpush1.bf16.msra.mxu0 0
    %302 = vmatprep.subr.bf16.mxu0 0
    %303 = vmatpush1.bf16.msra.mxu0 0
    %304 = vmatprep.mubr.bf16.mxu0 0
    %305 = vmatmul.mubr.bf16.gmra.mrb[0].mxu0 %v270
    %v306 = vpop.f32.mrb[0].mxu0
    %v307 = vadd.f32 %v264, %v306
    %v308 = vpop.f32.mrb[0].mxu0
    %v309 = vpop.f32.mrb[0].mxu0
    %v310 = vpop.f32.mrb[0].mxu0
    %311 = vdwg.mxu0
    %v312 = vadd.f32 %v307, %v195
    %v313 = vxor.u32 %v312, 2147483648
    %v314 = vmul.f32 %v313, 1.442695
    %v315 = vpow.pop %v314
    %v316 = vadd.f32 %v315, 1.0
    %v317 = vrcp.pop %v316
    %v318 = vmul.f32 1.0, %v317
    %v319 = vmul.f32 %v318, 2.0
    %v320 = vsub.f32 %v319, 1.0
    %v321 = vmul.f32 %v318, %v215
    %323 = vrot.lane.b32.xlu0 %v320, 64
    %v324 = vpop.permute.xlu0 %323
    %v326 = vmul.f32 %v318, %v324
    %328 = vrot.lane.b32.xlu0 %v326, 32
    %v329 = vpop.permute.xlu0 %328
    %v331 = vadd.f32 %v321, %v329
    %v332 = vtanh.pop %v331
    %334 = vrot.lane.b32.xlu0 %v332, 64
    %v335 = vpop.permute.xlu0 %334
    %v337 = vmul.f32 %v318, %v335
    %v338 = vpack.c.bf16 %v337, %v337
    %340 = vrot.lane.b32.xlu0 %v338, 32
    %v341 = vpop.permute.xlu0 %340
    %v343 = vsel %vm93, %v341, 0
    %345 = vmatprep.subr.bf16.mxu0 0
    %346 = vmatpush1.bf16.msra.mxu0 %v89
    %347 = vmatprep.subr.bf16.mxu0 0
    %348 = vmatpush1.bf16.msra.mxu0 %v90
    %349 = vmatprep.subr.bf16.mxu0 0
    %350 = vmatpush1.bf16.msra.mxu0 0
    %351 = vmatprep.subr.bf16.mxu0 0
    %352 = vmatpush1.bf16.msra.mxu0 0
    %353 = vmatprep.subr.bf16.mxu0 0
    %354 = vmatpush1.bf16.msra.mxu0 0
    %355 = vmatprep.subr.bf16.mxu0 0
    %356 = vmatpush1.bf16.msra.mxu0 0
    %357 = vmatprep.subr.bf16.mxu0 0
    %358 = vmatpush1.bf16.msra.mxu0 0
    %359 = vmatprep.subr.bf16.mxu0 0
    %360 = vmatpush1.bf16.msra.mxu0 0
    %361 = vmatprep.subr.bf16.mxu0 0
    %362 = vmatpush1.bf16.msra.mxu0 0
    %363 = vmatprep.subr.bf16.mxu0 0
    %364 = vmatpush1.bf16.msra.mxu0 0
    %365 = vmatprep.subr.bf16.mxu0 0
    %366 = vmatpush1.bf16.msra.mxu0 0
    %367 = vmatprep.subr.bf16.mxu0 0
    %368 = vmatpush1.bf16.msra.mxu0 0
    %369 = vmatprep.subr.bf16.mxu0 0
    %370 = vmatpush1.bf16.msra.mxu0 0
    %371 = vmatprep.subr.bf16.mxu0 0
    %372 = vmatpush1.bf16.msra.mxu0 0
    %373 = vmatprep.subr.bf16.mxu0 0
    %374 = vmatpush1.bf16.msra.mxu0 0
    %375 = vmatprep.subr.bf16.mxu0 0
    %376 = vmatpush1.bf16.msra.mxu0 0
    %377 = vmatprep.mubr.bf16.mxu0 0
    %378 = vmatmul.mubr.bf16.gmra.mrb[0].mxu0 %v343
    %v379 = vpop.f32.mrb[0].mxu0
    %v380 = vadd.f32 0.0, %v379
    %v381 = vpop.f32.mrb[0].mxu0
    %v382 = vpop.f32.mrb[0].mxu0
    %v383 = vpop.f32.mrb[0].mxu0
    %384 = vdwg.mxu0
    %v386 = vsel %vm93, %v61, 0
    %388 = vmatprep.subr.bf16.mxu0 0
    %389 = vmatpush1.bf16.msra.mxu0 %v145
    %390 = vmatprep.subr.bf16.mxu0 0
    %391 = vmatpush1.bf16.msra.mxu0 %v146
    %392 = vmatprep.subr.bf16.mxu0 0
    %393 = vmatpush1.bf16.msra.mxu0 0
    %394 = vmatprep.subr.bf16.mxu0 0
    %395 = vmatpush1.bf16.msra.mxu0 0
    %396 = vmatprep.subr.bf16.mxu0 0
    %397 = vmatpush1.bf16.msra.mxu0 0
    %398 = vmatprep.subr.bf16.mxu0 0
    %399 = vmatpush1.bf16.msra.mxu0 0
    %400 = vmatprep.subr.bf16.mxu0 0
    %401 = vmatpush1.bf16.msra.mxu0 0
    %402 = vmatprep.subr.bf16.mxu0 0
    %403 = vmatpush1.bf16.msra.mxu0 0
    %404 = vmatprep.subr.bf16.mxu0 0
    %405 = vmatpush1.bf16.msra.mxu0 0
    %406 = vmatprep.subr.bf16.mxu0 0
    %407 = vmatpush1.bf16.msra.mxu0 0
    %408 = vmatprep.subr.bf16.mxu0 0
    %409 = vmatpush1.bf16.msra.mxu0 0
    %410 = vmatprep.subr.bf16.mxu0 0
    %411 = vmatpush1.bf16.msra.mxu0 0
    %412 = vmatprep.subr.bf16.mxu0 0
    %413 = vmatpush1.bf16.msra.mxu0 0
    %414 = vmatprep.subr.bf16.mxu0 0
    %415 = vmatpush1.bf16.msra.mxu0 0
    %416 = vmatprep.subr.bf16.mxu0 0
    %417 = vmatpush1.bf16.msra.mxu0 0
    %418 = vmatprep.subr.bf16.mxu0 0
    %419 = vmatpush1.bf16.msra.mxu0 0
    %420 = vmatprep.mubr.bf16.mxu0 0
    %421 = vmatmul.mubr.bf16.gmra.mrb[0].mxu0 %v386
    %v422 = vpop.f32.mrb[0].mxu0
    %v423 = vadd.f32 %v380, %v422
    %v424 = vpop.f32.mrb[0].mxu0
    %v425 = vpop.f32.mrb[0].mxu0
    %v426 = vpop.f32.mrb[0].mxu0
    %427 = vdwg.mxu0
    %v428 = vadd.f32 %v423, %v195
    %v429 = vxor.u32 %v428, 2147483648
    %v430 = vmul.f32 %v429, 1.442695
    %v431 = vpow.pop %v430
    %v432 = vadd.f32 %v431, 1.0
    %v433 = vrcp.pop %v432
    %v434 = vmul.f32 1.0, %v433
    %v435 = vmul.f32 %v434, 2.0
    %v436 = vsub.f32 %v435, 1.0
    %v437 = vmul.f32 %v434, %v331
    %439 = vrot.lane.b32.xlu0 %v436, 64
    %v440 = vpop.permute.xlu0 %439
    %v442 = vmul.f32 %v434, %v440
    %444 = vrot.lane.b32.xlu0 %v442, 32
    %v445 = vpop.permute.xlu0 %444
    %v447 = vadd.f32 %v437, %v445
    %v448 = vtanh.pop %v447
    %450 = vrot.lane.b32.xlu0 %v448, 64
    %v451 = vpop.permute.xlu0 %450
    %v453 = vmul.f32 %v434, %v451
    %v454 = vpack.c.bf16 %v453, %v453
    %456 = vrot.lane.b32.xlu0 %v454, 32
    %v457 = vpop.permute.xlu0 %456
    %v459 = vsel %vm93, %v457, 0
    %461 = vmatprep.subr.bf16.mxu0 0
    %462 = vmatpush1.bf16.msra.mxu0 %v89
    %463 = vmatprep.subr.bf16.mxu0 0
    %464 = vmatpush1.bf16.msra.mxu0 %v90
    %465 = vmatprep.subr.bf16.mxu0 0
    %466 = vmatpush1.bf16.msra.mxu0 0
    %467 = vmatprep.subr.bf16.mxu0 0
    %468 = vmatpush1.bf16.msra.mxu0 0
    %469 = vmatprep.subr.bf16.mxu0 0
    %470 = vmatpush1.bf16.msra.mxu0 0
    %471 = vmatprep.subr.bf16.mxu0 0
    %472 = vmatpush1.bf16.msra.mxu0 0
    %473 = vmatprep.subr.bf16.mxu0 0
    %474 = vmatpush1.bf16.msra.mxu0 0
    %475 = vmatprep.subr.bf16.mxu0 0
    %476 = vmatpush1.bf16.msra.mxu0 0
    %477 = vmatprep.subr.bf16.mxu0 0
    %478 = vmatpush1.bf16.msra.mxu0 0
    %479 = vmatprep.subr.bf16.mxu0 0
    %480 = vmatpush1.bf16.msra.mxu0 0
    %481 = vmatprep.subr.bf16.mxu0 0
    %482 = vmatpush1.bf16.msra.mxu0 0
    %483 = vmatprep.subr.bf16.mxu0 0
    %484 = vmatpush1.bf16.msra.mxu0 0
    %485 = vmatprep.subr.bf16.mxu0 0
    %486 = vmatpush1.bf16.msra.mxu0 0
    %487 = vmatprep.subr.bf16.mxu0 0
    %488 = vmatpush1.bf16.msra.mxu0 0
    %489 = vmatprep.subr.bf16.mxu0 0
    %490 = vmatpush1.bf16.msra.mxu0 0
    %491 = vmatprep.subr.bf16.mxu0 0
    %492 = vmatpush1.bf16.msra.mxu0 0
    %493 = vmatprep.mubr.bf16.mxu0 0
    %494 = vmatmul.mubr.bf16.gmra.mrb[0].mxu0 %v459
    %v495 = vpop.f32.mrb[0].mxu0
    %v496 = vadd.f32 0.0, %v495
    %v497 = vpop.f32.mrb[0].mxu0
    %v498 = vpop.f32.mrb[0].mxu0
    %v499 = vpop.f32.mrb[0].mxu0
    %500 = vdwg.mxu0
    %v502 = vsel %vm93, %v63, 0
    %504 = vmatprep.subr.bf16.mxu0 0
    %505 = vmatpush1.bf16.msra.mxu0 %v145
    %506 = vmatprep.subr.bf16.mxu0 0
    %507 = vmatpush1.bf16.msra.mxu0 %v146
    %508 = vmatprep.subr.bf16.mxu0 0
    %509 = vmatpush1.bf16.msra.mxu0 0
    %510 = vmatprep.subr.bf16.mxu0 0
    %511 = vmatpush1.bf16.msra.mxu0 0
    %512 = vmatprep.subr.bf16.mxu0 0
    %513 = vmatpush1.bf16.msra.mxu0 0
    %514 = vmatprep.subr.bf16.mxu0 0
    %515 = vmatpush1.bf16.msra.mxu0 0
    %516 = vmatprep.subr.bf16.mxu0 0
    %517 = vmatpush1.bf16.msra.mxu0 0
    %518 = vmatprep.subr.bf16.mxu0 0
    %519 = vmatpush1.bf16.msra.mxu0 0
    %520 = vmatprep.subr.bf16.mxu0 0
    %521 = vmatpush1.bf16.msra.mxu0 0
    %522 = vmatprep.subr.bf16.mxu0 0
    %523 = vmatpush1.bf16.msra.mxu0 0
    %524 = vmatprep.subr.bf16.mxu0 0
    %525 = vmatpush1.bf16.msra.mxu0 0
    %526 = vmatprep.subr.bf16.mxu0 0
    %527 = vmatpush1.bf16.msra.mxu0 0
    %528 = vmatprep.subr.bf16.mxu0 0
    %529 = vmatpush1.bf16.msra.mxu0 0
    %530 = vmatprep.subr.bf16.mxu0 0
    %531 = vmatpush1.bf16.msra.mxu0 0
    %532 = vmatprep.subr.bf16.mxu0 0
    %533 = vmatpush1.bf16.msra.mxu0 0
    %534 = vmatprep.subr.bf16.mxu0 0
    %535 = vmatpush1.bf16.msra.mxu0 0
    %536 = vmatprep.mubr.bf16.mxu0 0
    %537 = vmatmul.mubr.bf16.gmra.mrb[0].mxu0 %v502
    %v538 = vpop.f32.mrb[0].mxu0
    %v539 = vadd.f32 %v496, %v538
    %v540 = vpop.f32.mrb[0].mxu0
    %v541 = vpop.f32.mrb[0].mxu0
    %v542 = vpop.f32.mrb[0].mxu0
    %543 = vdwg.mxu0
    %v544 = vadd.f32 %v539, %v195
    %v545 = vxor.u32 %v544, 2147483648
    %v546 = vmul.f32 %v545, 1.442695
    %v547 = vpow.pop %v546
    %v548 = vadd.f32 %v547, 1.0
    %v549 = vrcp.pop %v548
    %v550 = vmul.f32 1.0, %v549
    %v551 = vmul.f32 %v550, 2.0
    %v552 = vsub.f32 %v551, 1.0
    %v553 = vmul.f32 %v550, %v447
    %555 = vrot.lane.b32.xlu0 %v552, 64
    %v556 = vpop.permute.xlu0 %555
    %v558 = vmul.f32 %v550, %v556
    %560 = vrot.lane.b32.xlu0 %v558, 32
    %v561 = vpop.permute.xlu0 %560
    %v563 = vadd.f32 %v553, %v561
    %v564 = vtanh.pop %v563
    %566 = vrot.lane.b32.xlu0 %v564, 64
    %v567 = vpop.permute.xlu0 %566
    %v569 = vmul.f32 %v550, %v567
    %v570 = vpack.c.bf16 %v569, %v569
    %572 = vrot.lane.b32.xlu0 %v570, 32
    %v573 = vpop.permute.xlu0 %572
    %v575 = vsel %vm93, %v573, 0
    %577 = vmatprep.subr.bf16.mxu0 0
    %578 = vmatpush1.bf16.msra.mxu0 %v89
    %579 = vmatprep.subr.bf16.mxu0 0
    %580 = vmatpush1.bf16.msra.mxu0 %v90
    %581 = vmatprep.subr.bf16.mxu0 0
    %582 = vmatpush1.bf16.msra.mxu0 0
    %583 = vmatprep.subr.bf16.mxu0 0
    %584 = vmatpush1.bf16.msra.mxu0 0
    %585 = vmatprep.subr.bf16.mxu0 0
    %586 = vmatpush1.bf16.msra.mxu0 0
    %587 = vmatprep.subr.bf16.mxu0 0
    %588 = vmatpush1.bf16.msra.mxu0 0
    %589 = vmatprep.subr.bf16.mxu0 0
    %590 = vmatpush1.bf16.msra.mxu0 0
    %591 = vmatprep.subr.bf16.mxu0 0
    %592 = vmatpush1.bf16.msra.mxu0 0
    %593 = vmatprep.subr.bf16.mxu0 0
    %594 = vmatpush1.bf16.msra.mxu0 0
    %595 = vmatprep.subr.bf16.mxu0 0
    %596 = vmatpush1.bf16.msra.mxu0 0
    %597 = vmatprep.subr.bf16.mxu0 0
    %598 = vmatpush1.bf16.msra.mxu0 0
    %599 = vmatprep.subr.bf16.mxu0 0
    %600 = vmatpush1.bf16.msra.mxu0 0
    %601 = vmatprep.subr.bf16.mxu0 0
    %602 = vmatpush1.bf16.msra.mxu0 0
    %603 = vmatprep.subr.bf16.mxu0 0
    %604 = vmatpush1.bf16.msra.mxu0 0
    %605 = vmatprep.subr.bf16.mxu0 0
    %606 = vmatpush1.bf16.msra.mxu0 0
    %607 = vmatprep.subr.bf16.mxu0 0
    %608 = vmatpush1.bf16.msra.mxu0 0
    %609 = vmatprep.mubr.bf16.mxu0 0
    %610 = vmatmul.mubr.bf16.gmra.mrb[0].mxu0 %v575
    %v611 = vpop.f32.mrb[0].mxu0
    %v612 = vadd.f32 0.0, %v611
    %v613 = vpop.f32.mrb[0].mxu0
    %v614 = vpop.f32.mrb[0].mxu0
    %v615 = vpop.f32.mrb[0].mxu0
    %616 = vdwg.mxu0
    %v618 = vsel %vm93, %v65, 0
    %620 = vmatprep.subr.bf16.mxu0 0
    %621 = vmatpush1.bf16.msra.mxu0 %v145
    %622 = vmatprep.subr.bf16.mxu0 0
    %623 = vmatpush1.bf16.msra.mxu0 %v146
    %624 = vmatprep.subr.bf16.mxu0 0
    %625 = vmatpush1.bf16.msra.mxu0 0
    %626 = vmatprep.subr.bf16.mxu0 0
    %627 = vmatpush1.bf16.msra.mxu0 0
    %628 = vmatprep.subr.bf16.mxu0 0
    %629 = vmatpush1.bf16.msra.mxu0 0
    %630 = vmatprep.subr.bf16.mxu0 0
    %631 = vmatpush1.bf16.msra.mxu0 0
    %632 = vmatprep.subr.bf16.mxu0 0
    %633 = vmatpush1.bf16.msra.mxu0 0
    %634 = vmatprep.subr.bf16.mxu0 0
    %635 = vmatpush1.bf16.msra.mxu0 0
    %636 = vmatprep.subr.bf16.mxu0 0
    %637 = vmatpush1.bf16.msra.mxu0 0
    %638 = vmatprep.subr.bf16.mxu0 0
    %639 = vmatpush1.bf16.msra.mxu0 0
    %640 = vmatprep.subr.bf16.mxu0 0
    %641 = vmatpush1.bf16.msra.mxu0 0
    %642 = vmatprep.subr.bf16.mxu0 0
    %643 = vmatpush1.bf16.msra.mxu0 0
    %644 = vmatprep.subr.bf16.mxu0 0
    %645 = vmatpush1.bf16.msra.mxu0 0
    %646 = vmatprep.subr.bf16.mxu0 0
    %647 = vmatpush1.bf16.msra.mxu0 0
    %648 = vmatprep.subr.bf16.mxu0 0
    %649 = vmatpush1.bf16.msra.mxu0 0
    %650 = vmatprep.subr.bf16.mxu0 0
    %651 = vmatpush1.bf16.msra.mxu0 0
    %652 = vmatprep.mubr.bf16.mxu0 0
    %653 = vmatmul.mubr.bf16.gmra.mrb[0].mxu0 %v618
    %v654 = vpop.f32.mrb[0].mxu0
    %v655 = vadd.f32 %v612, %v654
    %v656 = vpop.f32.mrb[0].mxu0
    %v657 = vpop.f32.mrb[0].mxu0
    %v658 = vpop.f32.mrb[0].mxu0
    %659 = vdwg.mxu0
    %v660 = vadd.f32 %v655, %v195
    %v661 = vxor.u32 %v660, 2147483648
    %v662 = vmul.f32 %v661, 1.442695
    %v663 = vpow.pop %v662
    %v664 = vadd.f32 %v663, 1.0
    %v665 = vrcp.pop %v664
    %v666 = vmul.f32 1.0, %v665
    %v667 = vmul.f32 %v666, 2.0
    %v668 = vsub.f32 %v667, 1.0
    %v669 = vmul.f32 %v666, %v563
    %671 = vrot.lane.b32.xlu0 %v668, 64
    %v672 = vpop.permute.xlu0 %671
    %v674 = vmul.f32 %v666, %v672
    %676 = vrot.lane.b32.xlu0 %v674, 32
    %v677 = vpop.permute.xlu0 %676
    %v679 = vadd.f32 %v669, %v677
    %v680 = vtanh.pop %v679
    %682 = vrot.lane.b32.xlu0 %v680, 64
    %v683 = vpop.permute.xlu0 %682
    %v685 = vmul.f32 %v666, %v683
    %v686 = vpack.c.bf16 %v685, %v685
    %688 = vrot.lane.b32.xlu0 %v686, 32
    %v689 = vpop.permute.xlu0 %688
    %v691 = vsel %vm93, %v689, 0
    %693 = vmatprep.subr.bf16.mxu0 0
    %694 = vmatpush1.bf16.msra.mxu0 %v89
    %695 = vmatprep.subr.bf16.mxu0 0
    %696 = vmatpush1.bf16.msra.mxu0 %v90
    %697 = vmatprep.subr.bf16.mxu0 0
    %698 = vmatpush1.bf16.msra.mxu0 0
    %699 = vmatprep.subr.bf16.mxu0 0
    %700 = vmatpush1.bf16.msra.mxu0 0
    %701 = vmatprep.subr.bf16.mxu0 0
    %702 = vmatpush1.bf16.msra.mxu0 0
    %703 = vmatprep.subr.bf16.mxu0 0
    %704 = vmatpush1.bf16.msra.mxu0 0
    %705 = vmatprep.subr.bf16.mxu0 0
    %706 = vmatpush1.bf16.msra.mxu0 0
    %707 = vmatprep.subr.bf16.mxu0 0
    %708 = vmatpush1.bf16.msra.mxu0 0
    %709 = vmatprep.subr.bf16.mxu0 0
    %710 = vmatpush1.bf16.msra.mxu0 0
    %711 = vmatprep.subr.bf16.mxu0 0
    %712 = vmatpush1.bf16.msra.mxu0 0
    %713 = vmatprep.subr.bf16.mxu0 0
    %714 = vmatpush1.bf16.msra.mxu0 0
    %715 = vmatprep.subr.bf16.mxu0 0
    %716 = vmatpush1.bf16.msra.mxu0 0
    %717 = vmatprep.subr.bf16.mxu0 0
    %718 = vmatpush1.bf16.msra.mxu0 0
    %719 = vmatprep.subr.bf16.mxu0 0
    %720 = vmatpush1.bf16.msra.mxu0 0
    %721 = vmatprep.subr.bf16.mxu0 0
    %722 = vmatpush1.bf16.msra.mxu0 0
    %723 = vmatprep.subr.bf16.mxu0 0
    %724 = vmatpush1.bf16.msra.mxu0 0
    %725 = vmatprep.mubr.bf16.mxu0 0
    %726 = vmatmul.mubr.bf16.gmra.mrb[0].mxu0 %v691
    %v727 = vpop.f32.mrb[0].mxu0
    %v728 = vadd.f32 0.0, %v727
    %v729 = vpop.f32.mrb[0].mxu0
    %v730 = vpop.f32.mrb[0].mxu0
    %v731 = vpop.f32.mrb[0].mxu0
    %732 = vdwg.mxu0
    %v734 = vsel %vm93, %v67, 0
    %736 = vmatprep.subr.bf16.mxu0 0
    %737 = vmatpush1.bf16.msra.mxu0 %v145
    %738 = vmatprep.subr.bf16.mxu0 0
    %739 = vmatpush1.bf16.msra.mxu0 %v146
    %740 = vmatprep.subr.bf16.mxu0 0
    %741 = vmatpush1.bf16.msra.mxu0 0
    %742 = vmatprep.subr.bf16.mxu0 0
    %743 = vmatpush1.bf16.msra.mxu0 0
    %744 = vmatprep.subr.bf16.mxu0 0
    %745 = vmatpush1.bf16.msra.mxu0 0
    %746 = vmatprep.subr.bf16.mxu0 0
    %747 = vmatpush1.bf16.msra.mxu0 0
    %748 = vmatprep.subr.bf16.mxu0 0
    %749 = vmatpush1.bf16.msra.mxu0 0
    %750 = vmatprep.subr.bf16.mxu0 0
    %751 = vmatpush1.bf16.msra.mxu0 0
    %752 = vmatprep.subr.bf16.mxu0 0
    %753 = vmatpush1.bf16.msra.mxu0 0
    %754 = vmatprep.subr.bf16.mxu0 0
    %755 = vmatpush1.bf16.msra.mxu0 0
    %756 = vmatprep.subr.bf16.mxu0 0
    %757 = vmatpush1.bf16.msra.mxu0 0
    %758 = vmatprep.subr.bf16.mxu0 0
    %759 = vmatpush1.bf16.msra.mxu0 0
    %760 = vmatprep.subr.bf16.mxu0 0
    %761 = vmatpush1.bf16.msra.mxu0 0
    %762 = vmatprep.subr.bf16.mxu0 0
    %763 = vmatpush1.bf16.msra.mxu0 0
    %764 = vmatprep.subr.bf16.mxu0 0
    %765 = vmatpush1.bf16.msra.mxu0 0
    %766 = vmatprep.subr.bf16.mxu0 0
    %767 = vmatpush1.bf16.msra.mxu0 0
    %768 = vmatprep.mubr.bf16.mxu0 0
    %769 = vmatmul.mubr.bf16.gmra.mrb[0].mxu0 %v734
    %v770 = vpop.f32.mrb[0].mxu0
    %v771 = vadd.f32 %v728, %v770
    %v772 = vpop.f32.mrb[0].mxu0
    %v773 = vpop.f32.mrb[0].mxu0
    %v774 = vpop.f32.mrb[0].mxu0
    %775 = vdwg.mxu0
    %v776 = vadd.f32 %v771, %v195
    %v777 = vxor.u32 %v776, 2147483648
    %v778 = vmul.f32 %v777, 1.442695
    %v779 = vpow.pop %v778
    %v780 = vadd.f32 %v779, 1.0
    %v781 = vrcp.pop %v780
    %v782 = vmul.f32 1.0, %v781
    %v783 = vmul.f32 %v782, 2.0
    %v784 = vsub.f32 %v783, 1.0
    %v785 = vmul.f32 %v782, %v679
    %787 = vrot.lane.b32.xlu0 %v784, 64
    %v788 = vpop.permute.xlu0 %787
    %v790 = vmul.f32 %v782, %v788
    %792 = vrot.lane.b32.xlu0 %v790, 32
    %v793 = vpop.permute.xlu0 %792
    %v795 = vadd.f32 %v785, %v793
    %v796 = vtanh.pop %v795
    %798 = vrot.lane.b32.xlu0 %v796, 64
    %v799 = vpop.permute.xlu0 %798
    %v801 = vmul.f32 %v782, %v799
    %v802 = vpack.c.bf16 %v801, %v801
    %804 = vrot.lane.b32.xlu0 %v802, 32
    %v805 = vpop.permute.xlu0 %804
    %v807 = vsel %vm93, %v805, 0
    %809 = vmatprep.subr.bf16.mxu0 0
    %810 = vmatpush1.bf16.msra.mxu0 %v89
    %811 = vmatprep.subr.bf16.mxu0 0
    %812 = vmatpush1.bf16.msra.mxu0 %v90
    %813 = vmatprep.subr.bf16.mxu0 0
    %814 = vmatpush1.bf16.msra.mxu0 0
    %815 = vmatprep.subr.bf16.mxu0 0
    %816 = vmatpush1.bf16.msra.mxu0 0
    %817 = vmatprep.subr.bf16.mxu0 0
    %818 = vmatpush1.bf16.msra.mxu0 0
    %819 = vmatprep.subr.bf16.mxu0 0
    %820 = vmatpush1.bf16.msra.mxu0 0
    %821 = vmatprep.subr.bf16.mxu0 0
    %822 = vmatpush1.bf16.msra.mxu0 0
    %823 = vmatprep.subr.bf16.mxu0 0
    %824 = vmatpush1.bf16.msra.mxu0 0
    %825 = vmatprep.subr.bf16.mxu0 0
    %826 = vmatpush1.bf16.msra.mxu0 0
    %827 = vmatprep.subr.bf16.mxu0 0
    %828 = vmatpush1.bf16.msra.mxu0 0
    %829 = vmatprep.subr.bf16.mxu0 0
    %830 = vmatpush1.bf16.msra.mxu0 0
    %831 = vmatprep.subr.bf16.mxu0 0
    %832 = vmatpush1.bf16.msra.mxu0 0
    %833 = vmatprep.subr.bf16.mxu0 0
    %834 = vmatpush1.bf16.msra.mxu0 0
    %835 = vmatprep.subr.bf16.mxu0 0
    %836 = vmatpush1.bf16.msra.mxu0 0
    %837 = vmatprep.subr.bf16.mxu0 0
    %838 = vmatpush1.bf16.msra.mxu0 0
    %839 = vmatprep.subr.bf16.mxu0 0
    %840 = vmatpush1.bf16.msra.mxu0 0
    %841 = vmatprep.mubr.bf16.mxu0 0
    %842 = vmatmul.mubr.bf16.gmra.mrb[0].mxu0 %v807
    %v843 = vpop.f32.mrb[0].mxu0
    %v844 = vadd.f32 0.0, %v843
    %v845 = vpop.f32.mrb[0].mxu0
    %v846 = vpop.f32.mrb[0].mxu0
    %v847 = vpop.f32.mrb[0].mxu0
    %848 = vdwg.mxu0
    %v850 = vsel %vm93, %v69, 0
    %852 = vmatprep.subr.bf16.mxu0 0
    %853 = vmatpush1.bf16.msra.mxu0 %v145
    %854 = vmatprep.subr.bf16.mxu0 0
    %855 = vmatpush1.bf16.msra.mxu0 %v146
    %856 = vmatprep.subr.bf16.mxu0 0
    %857 = vmatpush1.bf16.msra.mxu0 0
    %858 = vmatprep.subr.bf16.mxu0 0
    %859 = vmatpush1.bf16.msra.mxu0 0
    %860 = vmatprep.subr.bf16.mxu0 0
    %861 = vmatpush1.bf16.msra.mxu0 0
    %862 = vmatprep.subr.bf16.mxu0 0
    %863 = vmatpush1.bf16.msra.mxu0 0
    %864 = vmatprep.subr.bf16.mxu0 0
    %865 = vmatpush1.bf16.msra.mxu0 0
    %866 = vmatprep.subr.bf16.mxu0 0
    %867 = vmatpush1.bf16.msra.mxu0 0
    %868 = vmatprep.subr.bf16.mxu0 0
    %869 = vmatpush1.bf16.msra.mxu0 0
    %870 = vmatprep.subr.bf16.mxu0 0
    %871 = vmatpush1.bf16.msra.mxu0 0
    %872 = vmatprep.subr.bf16.mxu0 0
    %873 = vmatpush1.bf16.msra.mxu0 0
    %874 = vmatprep.subr.bf16.mxu0 0
    %875 = vmatpush1.bf16.msra.mxu0 0
    %876 = vmatprep.subr.bf16.mxu0 0
    %877 = vmatpush1.bf16.msra.mxu0 0
    %878 = vmatprep.subr.bf16.mxu0 0
    %879 = vmatpush1.bf16.msra.mxu0 0
    %880 = vmatprep.subr.bf16.mxu0 0
    %881 = vmatpush1.bf16.msra.mxu0 0
    %882 = vmatprep.subr.bf16.mxu0 0
    %883 = vmatpush1.bf16.msra.mxu0 0
    %884 = vmatprep.mubr.bf16.mxu0 0
    %885 = vmatmul.mubr.bf16.gmra.mrb[0].mxu0 %v850
    %v886 = vpop.f32.mrb[0].mxu0
    %v887 = vadd.f32 %v844, %v886
    %v888 = vpop.f32.mrb[0].mxu0
    %v889 = vpop.f32.mrb[0].mxu0
    %v890 = vpop.f32.mrb[0].mxu0
    %891 = vdwg.mxu0
    %v892 = vadd.f32 %v887, %v195
    %v893 = vxor.u32 %v892, 2147483648
    %v894 = vmul.f32 %v893, 1.442695
    %v895 = vpow.pop %v894
    %v896 = vadd.f32 %v895, 1.0
    %v897 = vrcp.pop %v896
    %v898 = vmul.f32 1.0, %v897
    %v899 = vmul.f32 %v898, 2.0
    %v900 = vsub.f32 %v899, 1.0
    %v901 = vmul.f32 %v898, %v795
    %903 = vrot.lane.b32.xlu0 %v900, 64
    %v904 = vpop.permute.xlu0 %903
    %v906 = vmul.f32 %v898, %v904
    %908 = vrot.lane.b32.xlu0 %v906, 32
    %v909 = vpop.permute.xlu0 %908
    %v911 = vadd.f32 %v901, %v909
    %v912 = vtanh.pop %v911
    %914 = vrot.lane.b32.xlu0 %v912, 64
    %v915 = vpop.permute.xlu0 %914
    %v917 = vmul.f32 %v898, %v915
    %v918 = vpack.c.bf16 %v917, %v917
    %920 = vrot.lane.b32.xlu0 %v918, 32
    %v921 = vpop.permute.xlu0 %920
    %v923 = vsel %vm93, %v921, 0
    %925 = vmatprep.subr.bf16.mxu0 0
    %926 = vmatpush1.bf16.msra.mxu0 %v89
    %927 = vmatprep.subr.bf16.mxu0 0
    %928 = vmatpush1.bf16.msra.mxu0 %v90
    %929 = vmatprep.subr.bf16.mxu0 0
    %930 = vmatpush1.bf16.msra.mxu0 0
    %931 = vmatprep.subr.bf16.mxu0 0
    %932 = vmatpush1.bf16.msra.mxu0 0
    %933 = vmatprep.subr.bf16.mxu0 0
    %934 = vmatpush1.bf16.msra.mxu0 0
    %935 = vmatprep.subr.bf16.mxu0 0
    %936 = vmatpush1.bf16.msra.mxu0 0
    %937 = vmatprep.subr.bf16.mxu0 0
    %938 = vmatpush1.bf16.msra.mxu0 0
    %939 = vmatprep.subr.bf16.mxu0 0
    %940 = vmatpush1.bf16.msra.mxu0 0
    %941 = vmatprep.subr.bf16.mxu0 0
    %942 = vmatpush1.bf16.msra.mxu0 0
    %943 = vmatprep.subr.bf16.mxu0 0
    %944 = vmatpush1.bf16.msra.mxu0 0
    %945 = vmatprep.subr.bf16.mxu0 0
    %946 = vmatpush1.bf16.msra.mxu0 0
    %947 = vmatprep.subr.bf16.mxu0 0
    %948 = vmatpush1.bf16.msra.mxu0 0
    %949 = vmatprep.subr.bf16.mxu0 0
    %950 = vmatpush1.bf16.msra.mxu0 0
    %951 = vmatprep.subr.bf16.mxu0 0
    %952 = vmatpush1.bf16.msra.mxu0 0
    %953 = vmatprep.subr.bf16.mxu0 0
    %954 = vmatpush1.bf16.msra.mxu0 0
    %955 = vmatprep.subr.bf16.mxu0 0
    %956 = vmatpush1.bf16.msra.mxu0 0
    %957 = vmatprep.mubr.bf16.mxu0 0
    %958 = vmatmul.mubr.bf16.gmra.mrb[0].mxu0 %v923
    %v959 = vpop.f32.mrb[0].mxu0
    %v960 = vadd.f32 0.0, %v959
    %v961 = vpop.f32.mrb[0].mxu0
    %v962 = vpop.f32.mrb[0].mxu0
    %v963 = vpop.f32.mrb[0].mxu0
    %964 = vdwg.mxu0
    %v966 = vsel %vm93, %v71, 0
    %968 = vmatprep.subr.bf16.mxu0 0
    %969 = vmatpush1.bf16.msra.mxu0 %v145
    %970 = vmatprep.subr.bf16.mxu0 0
    %971 = vmatpush1.bf16.msra.mxu0 %v146
    %972 = vmatprep.subr.bf16.mxu0 0
    %973 = vmatpush1.bf16.msra.mxu0 0
    %974 = vmatprep.subr.bf16.mxu0 0
    %975 = vmatpush1.bf16.msra.mxu0 0
    %976 = vmatprep.subr.bf16.mxu0 0
    %977 = vmatpush1.bf16.msra.mxu0 0
    %978 = vmatprep.subr.bf16.mxu0 0
    %979 = vmatpush1.bf16.msra.mxu0 0
    %980 = vmatprep.subr.bf16.mxu0 0
    %981 = vmatpush1.bf16.msra.mxu0 0
    %982 = vmatprep.subr.bf16.mxu0 0
    %983 = vmatpush1.bf16.msra.mxu0 0
    %984 = vmatprep.subr.bf16.mxu0 0
    %985 = vmatpush1.bf16.msra.mxu0 0
    %986 = vmatprep.subr.bf16.mxu0 0
    %987 = vmatpush1.bf16.msra.mxu0 0
    %988 = vmatprep.subr.bf16.mxu0 0
    %989 = vmatpush1.bf16.msra.mxu0 0
    %990 = vmatprep.subr.bf16.mxu0 0
    %991 = vmatpush1.bf16.msra.mxu0 0
    %992 = vmatprep.subr.bf16.mxu0 0
    %993 = vmatpush1.bf16.msra.mxu0 0
    %994 = vmatprep.subr.bf16.mxu0 0
    %995 = vmatpush1.bf16.msra.mxu0 0
    %996 = vmatprep.subr.bf16.mxu0 0
    %997 = vmatpush1.bf16.msra.mxu0 0
    %998 = vmatprep.subr.bf16.mxu0 0
    %999 = vmatpush1.bf16.msra.mxu0 0
    %1000 = vmatprep.mubr.bf16.mxu0 0
    %1001 = vmatmul.mubr.bf16.gmra.mrb[0].mxu0 %v966
    %v1002 = vpop.f32.mrb[0].mxu0
    %v1003 = vadd.f32 %v960, %v1002
    %v1004 = vpop.f32.mrb[0].mxu0
    %v1005 = vpop.f32.mrb[0].mxu0
    %v1006 = vpop.f32.mrb[0].mxu0
    %1007 = vdwg.mxu0
    %v1008 = vadd.f32 %v1003, %v195
    %v1009 = vxor.u32 %v1008, 2147483648
    %v1010 = vmul.f32 %v1009, 1.442695
    %v1011 = vpow.pop %v1010
    %v1012 = vadd.f32 %v1011, 1.0
    %v1013 = vrcp.pop %v1012
    %v1014 = vmul.f32 1.0, %v1013
    %v1015 = vmul.f32 %v1014, 2.0
    %v1016 = vsub.f32 %v1015, 1.0
    %v1017 = vmul.f32 %v1014, %v911
    %1019 = vrot.lane.b32.xlu0 %v1016, 64
    %v1020 = vpop.permute.xlu0 %1019
    %v1022 = vmul.f32 %v1014, %v1020
    %1024 = vrot.lane.b32.xlu0 %v1022, 32
    %v1025 = vpop.permute.xlu0 %1024
    %v1027 = vadd.f32 %v1017, %v1025
    %v1028 = vtanh.pop %v1027
    %1030 = vrot.lane.b32.xlu0 %v1028, 64
    %v1031 = vpop.permute.xlu0 %1030
    %v1033 = vmul.f32 %v1014, %v1031
    %v1034 = vpack.c.bf16 %v1033, %v1033
    %s1035 = scalar_lea.vmem [#allocation4], 32
    %v1036 = vld [vmem:[%s1035] sm:$0xf]
    %v1037 = vld [vmem:[%s1035 + $0x4] sm:$0xf]
    %v1038 = vld [vmem:[%s1035 + $0x8] sm:$0xf]
    %v1039 = vld [vmem:[%s1035 + $0xc] sm:$0xf]
    %v1040 = vld [vmem:[%s1035 + $0x10] sm:$0xf]
    %v1041 = vld [vmem:[%s1035 + $0x14] sm:$0xf]
    %v1042 = vld [vmem:[%s1035 + $0x18] sm:$0xf]
    %v1043 = vld [vmem:[%s1035 + $0x1c] sm:$0xf]
    %v1044 = vld [vmem:[#allocation6 + $0x1] sm:$0x1]
    %v1049 = vunpack.c.l.b16 %v1040
    %v1050 = vunpack.c.l.b16 %v1041
    %v1051 = vunpack.c.l.b16 %v1042
    %v1052 = vunpack.c.l.b16 %v1043
    %v1053 = vpack.c.b16 %v1050, %v1049
    %v1054 = vpack.c.b16 %v1052, %v1051
    %1057 = vmatprep.subr.bf16.mxu0 0
    %1058 = vmatpush1.bf16.msra.mxu0 %v1053
    %1059 = vmatprep.subr.bf16.mxu0 0
    %1060 = vmatpush1.bf16.msra.mxu0 %v1054
    %1061 = vmatprep.subr.bf16.mxu0 0
    %1062 = vmatpush1.bf16.msra.mxu0 0
    %1063 = vmatprep.subr.bf16.mxu0 0
    %1064 = vmatpush1.bf16.msra.mxu0 0
    %1065 = vmatprep.subr.bf16.mxu0 0
    %1066 = vmatpush1.bf16.msra.mxu0 0
    %1067 = vmatprep.subr.bf16.mxu0 0
    %1068 = vmatpush1.bf16.msra.mxu0 0
    %1069 = vmatprep.subr.bf16.mxu0 0
    %1070 = vmatpush1.bf16.msra.mxu0 0
    %1071 = vmatprep.subr.bf16.mxu0 0
    %1072 = vmatpush1.bf16.msra.mxu0 0
    %1073 = vmatprep.subr.bf16.mxu0 0
    %1074 = vmatpush1.bf16.msra.mxu0 0
    %1075 = vmatprep.subr.bf16.mxu0 0
    %1076 = vmatpush1.bf16.msra.mxu0 0
    %1077 = vmatprep.subr.bf16.mxu0 0
    %1078 = vmatpush1.bf16.msra.mxu0 0
    %1079 = vmatprep.subr.bf16.mxu0 0
    %1080 = vmatpush1.bf16.msra.mxu0 0
    %1081 = vmatprep.subr.bf16.mxu0 0
    %1082 = vmatpush1.bf16.msra.mxu0 0
    %1083 = vmatprep.subr.bf16.mxu0 0
    %1084 = vmatpush1.bf16.msra.mxu0 0
    %1085 = vmatprep.subr.bf16.mxu0 0
    %1086 = vmatpush1.bf16.msra.mxu0 0
    %1087 = vmatprep.subr.bf16.mxu0 0
    %1088 = vmatpush1.bf16.msra.mxu0 0
    %1089 = vmatprep.mubr.bf16.mxu0 0
    %1090 = vmatmul.mubr.bf16.gmra.mrb[0].mxu0 %v95
    %v1091 = vpop.f32.mrb[0].mxu0
    %v1092 = vadd.f32 0.0, %v1091
    %v1093 = vpop.f32.mrb[0].mxu0
    %v1094 = vpop.f32.mrb[0].mxu0
    %v1095 = vpop.f32.mrb[0].mxu0
    %1096 = vdwg.mxu0
    %v1101 = vunpack.c.l.b16 %v1036
    %v1102 = vunpack.c.l.b16 %v1037
    %v1103 = vunpack.c.l.b16 %v1038
    %v1104 = vunpack.c.l.b16 %v1039
    %v1105 = vpack.c.b16 %v1102, %v1101
    %v1106 = vpack.c.b16 %v1104, %v1103
    %1109 = vmatprep.subr.bf16.mxu0 0
    %1110 = vmatpush1.bf16.msra.mxu0 %v1105
    %1111 = vmatprep.subr.bf16.mxu0 0
    %1112 = vmatpush1.bf16.msra.mxu0 %v1106
    %1113 = vmatprep.subr.bf16.mxu0 0
    %1114 = vmatpush1.bf16.msra.mxu0 0
    %1115 = vmatprep.subr.bf16.mxu0 0
    %1116 = vmatpush1.bf16.msra.mxu0 0
    %1117 = vmatprep.subr.bf16.mxu0 0
    %1118 = vmatpush1.bf16.msra.mxu0 0
    %1119 = vmatprep.subr.bf16.mxu0 0
    %1120 = vmatpush1.bf16.msra.mxu0 0
    %1121 = vmatprep.subr.bf16.mxu0 0
    %1122 = vmatpush1.bf16.msra.mxu0 0
    %1123 = vmatprep.subr.bf16.mxu0 0
    %1124 = vmatpush1.bf16.msra.mxu0 0
    %1125 = vmatprep.subr.bf16.mxu0 0
    %1126 = vmatpush1.bf16.msra.mxu0 0
    %1127 = vmatprep.subr.bf16.mxu0 0
    %1128 = vmatpush1.bf16.msra.mxu0 0
    %1129 = vmatprep.subr.bf16.mxu0 0
    %1130 = vmatpush1.bf16.msra.mxu0 0
    %1131 = vmatprep.subr.bf16.mxu0 0
    %1132 = vmatpush1.bf16.msra.mxu0 0
    %1133 = vmatprep.subr.bf16.mxu0 0
    %1134 = vmatpush1.bf16.msra.mxu0 0
    %1135 = vmatprep.subr.bf16.mxu0 0
    %1136 = vmatpush1.bf16.msra.mxu0 0
    %1137 = vmatprep.subr.bf16.mxu0 0
    %1138 = vmatpush1.bf16.msra.mxu0 0
    %1139 = vmatprep.subr.bf16.mxu0 0
    %1140 = vmatpush1.bf16.msra.mxu0 0
    %1141 = vmatprep.mubr.bf16.mxu0 0
    %1142 = vmatmul.mubr.bf16.gmra.mrb[0].mxu0 %v227
    %v1143 = vpop.f32.mrb[0].mxu0
    %v1144 = vadd.f32 %v1092, %v1143
    %v1145 = vpop.f32.mrb[0].mxu0
    %v1146 = vpop.f32.mrb[0].mxu0
    %v1147 = vpop.f32.mrb[0].mxu0
    %1148 = vdwg.mxu0
    %v1149 = vlaneseq
    %v1150 = vshrl.u32 %v1149, 7
    %v1151 = vsub.s32 0, %v1150
    %v1152 = vrot.slane %v1044, %v1151
    %v1153 = vadd.f32 %v1144, %v1152
    %v1154 = vxor.u32 %v1153, 2147483648
    %v1155 = vmul.f32 %v1154, 1.442695
    %v1156 = vpow.pop %v1155
    %v1157 = vadd.f32 %v1156, 1.0
    %v1158 = vrcp.pop %v1157
    %v1159 = vmul.f32 1.0, %v1158
    %v1160 = vmul.f32 %v1159, 2.0
    %v1161 = vsub.f32 %v1160, 1.0
    %v1162 = vmul.f32 %v1159, 0.0
    %1164 = vrot.lane.b32.xlu0 %v1161, 64
    %v1165 = vpop.permute.xlu0 %1164
    %v1167 = vmul.f32 %v1159, %v1165
    %1169 = vrot.lane.b32.xlu0 %v1167, 32
    %v1170 = vpop.permute.xlu0 %1169
    %v1172 = vadd.f32 %v1162, %v1170
    %v1173 = vtanh.pop %v1172
    %1175 = vrot.lane.b32.xlu0 %v1173, 64
    %v1176 = vpop.permute.xlu0 %1175
    %v1178 = vmul.f32 %v1159, %v1176
    %v1179 = vpack.c.bf16 %v1178, %v1178
    %1181 = vrot.lane.b32.xlu0 %v1179, 32
    %v1182 = vpop.permute.xlu0 %1181
    %v1184 = vsel %vm93, %v1182, 0
    %1186 = vmatprep.subr.bf16.mxu0 0
    %1187 = vmatpush1.bf16.msra.mxu0 %v1053
    %1188 = vmatprep.subr.bf16.mxu0 0
    %1189 = vmatpush1.bf16.msra.mxu0 %v1054
    %1190 = vmatprep.subr.bf16.mxu0 0
    %1191 = vmatpush1.bf16.msra.mxu0 0
    %1192 = vmatprep.subr.bf16.mxu0 0
    %1193 = vmatpush1.bf16.msra.mxu0 0
    %1194 = vmatprep.subr.bf16.mxu0 0
    %1195 = vmatpush1.bf16.msra.mxu0 0
    %1196 = vmatprep.subr.bf16.mxu0 0
    %1197 = vmatpush1.bf16.msra.mxu0 0
    %1198 = vmatprep.subr.bf16.mxu0 0
    %1199 = vmatpush1.bf16.msra.mxu0 0
    %1200 = vmatprep.subr.bf16.mxu0 0
    %1201 = vmatpush1.bf16.msra.mxu0 0
    %1202 = vmatprep.subr.bf16.mxu0 0
    %1203 = vmatpush1.bf16.msra.mxu0 0
    %1204 = vmatprep.subr.bf16.mxu0 0
    %1205 = vmatpush1.bf16.msra.mxu0 0
    %1206 = vmatprep.subr.bf16.mxu0 0
    %1207 = vmatpush1.bf16.msra.mxu0 0
    %1208 = vmatprep.subr.bf16.mxu0 0
    %1209 = vmatpush1.bf16.msra.mxu0 0
    %1210 = vmatprep.subr.bf16.mxu0 0
    %1211 = vmatpush1.bf16.msra.mxu0 0
    %1212 = vmatprep.subr.bf16.mxu0 0
    %1213 = vmatpush1.bf16.msra.mxu0 0
    %1214 = vmatprep.subr.bf16.mxu0 0
    %1215 = vmatpush1.bf16.msra.mxu0 0
    %1216 = vmatprep.subr.bf16.mxu0 0
    %1217 = vmatpush1.bf16.msra.mxu0 0
    %1218 = vmatprep.mubr.bf16.mxu0 0
    %1219 = vmatmul.mubr.bf16.gmra.mrb[0].mxu0 %v1184
    %v1220 = vpop.f32.mrb[0].mxu0
    %v1221 = vadd.f32 0.0, %v1220
    %v1222 = vpop.f32.mrb[0].mxu0
    %v1223 = vpop.f32.mrb[0].mxu0
    %v1224 = vpop.f32.mrb[0].mxu0
    %1225 = vdwg.mxu0
    %1226 = vmatprep.subr.bf16.mxu0 0
    %1227 = vmatpush1.bf16.msra.mxu0 %v1105
    %1228 = vmatprep.subr.bf16.mxu0 0
    %1229 = vmatpush1.bf16.msra.mxu0 %v1106
    %1230 = vmatprep.subr.bf16.mxu0 0
    %1231 = vmatpush1.bf16.msra.mxu0 0
    %1232 = vmatprep.subr.bf16.mxu0 0
    %1233 = vmatpush1.bf16.msra.mxu0 0
    %1234 = vmatprep.subr.bf16.mxu0 0
    %1235 = vmatpush1.bf16.msra.mxu0 0
    %1236 = vmatprep.subr.bf16.mxu0 0
    %1237 = vmatpush1.bf16.msra.mxu0 0
    %1238 = vmatprep.subr.bf16.mxu0 0
    %1239 = vmatpush1.bf16.msra.mxu0 0
    %1240 = vmatprep.subr.bf16.mxu0 0
    %1241 = vmatpush1.bf16.msra.mxu0 0
    %1242 = vmatprep.subr.bf16.mxu0 0
    %1243 = vmatpush1.bf16.msra.mxu0 0
    %1244 = vmatprep.subr.bf16.mxu0 0
    %1245 = vmatpush1.bf16.msra.mxu0 0
    %1246 = vmatprep.subr.bf16.mxu0 0
    %1247 = vmatpush1.bf16.msra.mxu0 0
    %1248 = vmatprep.subr.bf16.mxu0 0
    %1249 = vmatpush1.bf16.msra.mxu0 0
    %1250 = vmatprep.subr.bf16.mxu0 0
    %1251 = vmatpush1.bf16.msra.mxu0 0
    %1252 = vmatprep.subr.bf16.mxu0 0
    %1253 = vmatpush1.bf16.msra.mxu0 0
    %1254 = vmatprep.subr.bf16.mxu0 0
    %1255 = vmatpush1.bf16.msra.mxu0 0
    %1256 = vmatprep.subr.bf16.mxu0 0
    %1257 = vmatpush1.bf16.msra.mxu0 0
    %1258 = vmatprep.mubr.bf16.mxu0 0
    %1259 = vmatmul.mubr.bf16.gmra.mrb[0].mxu0 %v343
    %v1260 = vpop.f32.mrb[0].mxu0
    %v1261 = vadd.f32 %v1221, %v1260
    %v1262 = vpop.f32.mrb[0].mxu0
    %v1263 = vpop.f32.mrb[0].mxu0
    %v1264 = vpop.f32.mrb[0].mxu0
    %1265 = vdwg.mxu0
    %v1266 = vadd.f32 %v1261, %v1152
    %v1267 = vxor.u32 %v1266, 2147483648
    %v1268 = vmul.f32 %v1267, 1.442695
    %v1269 = vpow.pop %v1268
    %v1270 = vadd.f32 %v1269, 1.0
    %v1271 = vrcp.pop %v1270
    %v1272 = vmul.f32 1.0, %v1271
    %v1273 = vmul.f32 %v1272, 2.0
    %v1274 = vsub.f32 %v1273, 1.0
    %v1275 = vmul.f32 %v1272, %v1172
    %1277 = vrot.lane.b32.xlu0 %v1274, 64
    %v1278 = vpop.permute.xlu0 %1277
    %v1280 = vmul.f32 %v1272, %v1278
    %1282 = vrot.lane.b32.xlu0 %v1280, 32
    %v1283 = vpop.permute.xlu0 %1282
    %v1285 = vadd.f32 %v1275, %v1283
    %v1286 = vtanh.pop %v1285
    %1288 = vrot.lane.b32.xlu0 %v1286, 64
    %v1289 = vpop.permute.xlu0 %1288
    %v1291 = vmul.f32 %v1272, %v1289
    %v1292 = vpack.c.bf16 %v1291, %v1291
    %1294 = vrot.lane.b32.xlu0 %v1292, 32
    %v1295 = vpop.permute.xlu0 %1294
    %v1297 = vsel %vm93, %v1295, 0
    %1299 = vmatprep.subr.bf16.mxu0 0
    %1300 = vmatpush1.bf16.msra.mxu0 %v1053
    %1301 = vmatprep.subr.bf16.mxu0 0
    %1302 = vmatpush1.bf16.msra.mxu0 %v1054
    %1303 = vmatprep.subr.bf16.mxu0 0
    %1304 = vmatpush1.bf16.msra.mxu0 0
    %1305 = vmatprep.subr.bf16.mxu0 0
    %1306 = vmatpush1.bf16.msra.mxu0 0
    %1307 = vmatprep.subr.bf16.mxu0 0
    %1308 = vmatpush1.bf16.msra.mxu0 0
    %1309 = vmatprep.subr.bf16.mxu0 0
    %1310 = vmatpush1.bf16.msra.mxu0 0
    %1311 = vmatprep.subr.bf16.mxu0 0
    %1312 = vmatpush1.bf16.msra.mxu0 0
    %1313 = vmatprep.subr.bf16.mxu0 0
    %1314 = vmatpush1.bf16.msra.mxu0 0
    %1315 = vmatprep.subr.bf16.mxu0 0
    %1316 = vmatpush1.bf16.msra.mxu0 0
    %1317 = vmatprep.subr.bf16.mxu0 0
    %1318 = vmatpush1.bf16.msra.mxu0 0
    %1319 = vmatprep.subr.bf16.mxu0 0
    %1320 = vmatpush1.bf16.msra.mxu0 0
    %1321 = vmatprep.subr.bf16.mxu0 0
    %1322 = vmatpush1.bf16.msra.mxu0 0
    %1323 = vmatprep.subr.bf16.mxu0 0
    %1324 = vmatpush1.bf16.msra.mxu0 0
    %1325 = vmatprep.subr.bf16.mxu0 0
    %1326 = vmatpush1.bf16.msra.mxu0 0
    %1327 = vmatprep.subr.bf16.mxu0 0
    %1328 = vmatpush1.bf16.msra.mxu0 0
    %1329 = vmatprep.subr.bf16.mxu0 0
    %1330 = vmatpush1.bf16.msra.mxu0 0
    %1331 = vmatprep.mubr.bf16.mxu0 0
    %1332 = vmatmul.mubr.bf16.gmra.mrb[0].mxu0 %v1297
    %v1333 = vpop.f32.mrb[0].mxu0
    %v1334 = vadd.f32 0.0, %v1333
    %v1335 = vpop.f32.mrb[0].mxu0
    %v1336 = vpop.f32.mrb[0].mxu0
    %v1337 = vpop.f32.mrb[0].mxu0
    %1338 = vdwg.mxu0
    %1339 = vmatprep.subr.bf16.mxu0 0
    %1340 = vmatpush1.bf16.msra.mxu0 %v1105
    %1341 = vmatprep.subr.bf16.mxu0 0
    %1342 = vmatpush1.bf16.msra.mxu0 %v1106
    %1343 = vmatprep.subr.bf16.mxu0 0
    %1344 = vmatpush1.bf16.msra.mxu0 0
    %1345 = vmatprep.subr.bf16.mxu0 0
    %1346 = vmatpush1.bf16.msra.mxu0 0
    %1347 = vmatprep.subr.bf16.mxu0 0
    %1348 = vmatpush1.bf16.msra.mxu0 0
    %1349 = vmatprep.subr.bf16.mxu0 0
    %1350 = vmatpush1.bf16.msra.mxu0 0
    %1351 = vmatprep.subr.bf16.mxu0 0
    %1352 = vmatpush1.bf16.msra.mxu0 0
    %1353 = vmatprep.subr.bf16.mxu0 0
    %1354 = vmatpush1.bf16.msra.mxu0 0
    %1355 = vmatprep.subr.bf16.mxu0 0
    %1356 = vmatpush1.bf16.msra.mxu0 0
    %1357 = vmatprep.subr.bf16.mxu0 0
    %1358 = vmatpush1.bf16.msra.mxu0 0
    %1359 = vmatprep.subr.bf16.mxu0 0
    %1360 = vmatpush1.bf16.msra.mxu0 0
    %1361 = vmatprep.subr.bf16.mxu0 0
    %1362 = vmatpush1.bf16.msra.mxu0 0
    %1363 = vmatprep.subr.bf16.mxu0 0
    %1364 = vmatpush1.bf16.msra.mxu0 0
    %1365 = vmatprep.subr.bf16.mxu0 0
    %1366 = vmatpush1.bf16.msra.mxu0 0
    %1367 = vmatprep.subr.bf16.mxu0 0
    %1368 = vmatpush1.bf16.msra.mxu0 0
    %1369 = vmatprep.subr.bf16.mxu0 0
    %1370 = vmatpush1.bf16.msra.mxu0 0
    %1371 = vmatprep.mubr.bf16.mxu0 0
    %1372 = vmatmul.mubr.bf16.gmra.mrb[0].mxu0 %v459
    %v1373 = vpop.f32.mrb[0].mxu0
    %v1374 = vadd.f32 %v1334, %v1373
    %v1375 = vpop.f32.mrb[0].mxu0
    %v1376 = vpop.f32.mrb[0].mxu0
    %v1377 = vpop.f32.mrb[0].mxu0
    %1378 = vdwg.mxu0
    %v1379 = vadd.f32 %v1374, %v1152
    %v1380 = vxor.u32 %v1379, 2147483648
    %v1381 = vmul.f32 %v1380, 1.442695
    %v1382 = vpow.pop %v1381
    %v1383 = vadd.f32 %v1382, 1.0
    %v1384 = vrcp.pop %v1383
    %v1385 = vmul.f32 1.0, %v1384
    %v1386 = vmul.f32 %v1385, 2.0
    %v1387 = vsub.f32 %v1386, 1.0
    %v1388 = vmul.f32 %v1385, %v1285
    %1390 = vrot.lane.b32.xlu0 %v1387, 64
    %v1391 = vpop.permute.xlu0 %1390
    %v1393 = vmul.f32 %v1385, %v1391
    %1395 = vrot.lane.b32.xlu0 %v1393, 32
    %v1396 = vpop.permute.xlu0 %1395
    %v1398 = vadd.f32 %v1388, %v1396
    %v1399 = vtanh.pop %v1398
    %1401 = vrot.lane.b32.xlu0 %v1399, 64
    %v1402 = vpop.permute.xlu0 %1401
    %v1404 = vmul.f32 %v1385, %v1402
    %v1405 = vpack.c.bf16 %v1404, %v1404
    %1407 = vrot.lane.b32.xlu0 %v1405, 32
    %v1408 = vpop.permute.xlu0 %1407
    %v1410 = vsel %vm93, %v1408, 0
    %1412 = vmatprep.subr.bf16.mxu0 0
    %1413 = vmatpush1.bf16.msra.mxu0 %v1053
    %1414 = vmatprep.subr.bf16.mxu0 0
    %1415 = vmatpush1.bf16.msra.mxu0 %v1054
    %1416 = vmatprep.subr.bf16.mxu0 0
    %1417 = vmatpush1.bf16.msra.mxu0 0
    %1418 = vmatprep.subr.bf16.mxu0 0
    %1419 = vmatpush1.bf16.msra.mxu0 0
    %1420 = vmatprep.subr.bf16.mxu0 0
    %1421 = vmatpush1.bf16.msra.mxu0 0
    %1422 = vmatprep.subr.bf16.mxu0 0
    %1423 = vmatpush1.bf16.msra.mxu0 0
    %1424 = vmatprep.subr.bf16.mxu0 0
    %1425 = vmatpush1.bf16.msra.mxu0 0
    %1426 = vmatprep.subr.bf16.mxu0 0
    %1427 = vmatpush1.bf16.msra.mxu0 0
    %1428 = vmatprep.subr.bf16.mxu0 0
    %1429 = vmatpush1.bf16.msra.mxu0 0
    %1430 = vmatprep.subr.bf16.mxu0 0
    %1431 = vmatpush1.bf16.msra.mxu0 0
    %1432 = vmatprep.subr.bf16.mxu0 0
    %1433 = vmatpush1.bf16.msra.mxu0 0
    %1434 = vmatprep.subr.bf16.mxu0 0
    %1435 = vmatpush1.bf16.msra.mxu0 0
    %1436 = vmatprep.subr.bf16.mxu0 0
    %1437 = vmatpush1.bf16.msra.mxu0 0
    %1438 = vmatprep.subr.bf16.mxu0 0
    %1439 = vmatpush1.bf16.msra.mxu0 0
    %1440 = vmatprep.subr.bf16.mxu0 0
    %1441 = vmatpush1.bf16.msra.mxu0 0
    %1442 = vmatprep.subr.bf16.mxu0 0
    %1443 = vmatpush1.bf16.msra.mxu0 0
    %1444 = vmatprep.mubr.bf16.mxu0 0
    %1445 = vmatmul.mubr.bf16.gmra.mrb[0].mxu0 %v1410
    %v1446 = vpop.f32.mrb[0].mxu0
    %v1447 = vadd.f32 0.0, %v1446
    %v1448 = vpop.f32.mrb[0].mxu0
    %v1449 = vpop.f32.mrb[0].mxu0
    %v1450 = vpop.f32.mrb[0].mxu0
    %1451 = vdwg.mxu0
    %1452 = vmatprep.subr.bf16.mxu0 0
    %1453 = vmatpush1.bf16.msra.mxu0 %v1105
    %1454 = vmatprep.subr.bf16.mxu0 0
    %1455 = vmatpush1.bf16.msra.mxu0 %v1106
    %1456 = vmatprep.subr.bf16.mxu0 0
    %1457 = vmatpush1.bf16.msra.mxu0 0
    %1458 = vmatprep.subr.bf16.mxu0 0
    %1459 = vmatpush1.bf16.msra.mxu0 0
    %1460 = vmatprep.subr.bf16.mxu0 0
    %1461 = vmatpush1.bf16.msra.mxu0 0
    %1462 = vmatprep.subr.bf16.mxu0 0
    %1463 = vmatpush1.bf16.msra.mxu0 0
    %1464 = vmatprep.subr.bf16.mxu0 0
    %1465 = vmatpush1.bf16.msra.mxu0 0
    %1466 = vmatprep.subr.bf16.mxu0 0
    %1467 = vmatpush1.bf16.msra.mxu0 0
    %1468 = vmatprep.subr.bf16.mxu0 0
    %1469 = vmatpush1.bf16.msra.mxu0 0
    %1470 = vmatprep.subr.bf16.mxu0 0
    %1471 = vmatpush1.bf16.msra.mxu0 0
    %1472 = vmatprep.subr.bf16.mxu0 0
    %1473 = vmatpush1.bf16.msra.mxu0 0
    %1474 = vmatprep.subr.bf16.mxu0 0
    %1475 = vmatpush1.bf16.msra.mxu0 0
    %1476 = vmatprep.subr.bf16.mxu0 0
    %1477 = vmatpush1.bf16.msra.mxu0 0
    %1478 = vmatprep.subr.bf16.mxu0 0
    %1479 = vmatpush1.bf16.msra.mxu0 0
    %1480 = vmatprep.subr.bf16.mxu0 0
    %1481 = vmatpush1.bf16.msra.mxu0 0
    %1482 = vmatprep.subr.bf16.mxu0 0
    %1483 = vmatpush1.bf16.msra.mxu0 0
    %1484 = vmatprep.mubr.bf16.mxu0 0
    %1485 = vmatmul.mubr.bf16.gmra.mrb[0].mxu0 %v575
    %v1486 = vpop.f32.mrb[0].mxu0
    %v1487 = vadd.f32 %v1447, %v1486
    %v1488 = vpop.f32.mrb[0].mxu0
    %v1489 = vpop.f32.mrb[0].mxu0
    %v1490 = vpop.f32.mrb[0].mxu0
    %1491 = vdwg.mxu0
    %v1492 = vadd.f32 %v1487, %v1152
    %v1493 = vxor.u32 %v1492, 2147483648
    %v1494 = vmul.f32 %v1493, 1.442695
    %v1495 = vpow.pop %v1494
    %v1496 = vadd.f32 %v1495, 1.0
    %v1497 = vrcp.pop %v1496
    %v1498 = vmul.f32 1.0, %v1497
    %v1499 = vmul.f32 %v1498, 2.0
    %v1500 = vsub.f32 %v1499, 1.0
    %v1501 = vmul.f32 %v1498, %v1398
    %1503 = vrot.lane.b32.xlu0 %v1500, 64
    %v1504 = vpop.permute.xlu0 %1503
    %v1506 = vmul.f32 %v1498, %v1504
    %1508 = vrot.lane.b32.xlu0 %v1506, 32
    %v1509 = vpop.permute.xlu0 %1508
    %v1511 = vadd.f32 %v1501, %v1509
    %v1512 = vtanh.pop %v1511
    %1514 = vrot.lane.b32.xlu0 %v1512, 64
    %v1515 = vpop.permute.xlu0 %1514
    %v1517 = vmul.f32 %v1498, %v1515
    %v1518 = vpack.c.bf16 %v1517, %v1517
    %1520 = vrot.lane.b32.xlu0 %v1518, 32
    %v1521 = vpop.permute.xlu0 %1520
    %v1523 = vsel %vm93, %v1521, 0
    %1525 = vmatprep.subr.bf16.mxu0 0
    %1526 = vmatpush1.bf16.msra.mxu0 %v1053
    %1527 = vmatprep.subr.bf16.mxu0 0
    %1528 = vmatpush1.bf16.msra.mxu0 %v1054
    %1529 = vmatprep.subr.bf16.mxu0 0
    %1530 = vmatpush1.bf16.msra.mxu0 0
    %1531 = vmatprep.subr.bf16.mxu0 0
    %1532 = vmatpush1.bf16.msra.mxu0 0
    %1533 = vmatprep.subr.bf16.mxu0 0
    %1534 = vmatpush1.bf16.msra.mxu0 0
    %1535 = vmatprep.subr.bf16.mxu0 0
    %1536 = vmatpush1.bf16.msra.mxu0 0
    %1537 = vmatprep.subr.bf16.mxu0 0
    %1538 = vmatpush1.bf16.msra.mxu0 0
    %1539 = vmatprep.subr.bf16.mxu0 0
    %1540 = vmatpush1.bf16.msra.mxu0 0
    %1541 = vmatprep.subr.bf16.mxu0 0
    %1542 = vmatpush1.bf16.msra.mxu0 0
    %1543 = vmatprep.subr.bf16.mxu0 0
    %1544 = vmatpush1.bf16.msra.mxu0 0
    %1545 = vmatprep.subr.bf16.mxu0 0
    %1546 = vmatpush1.bf16.msra.mxu0 0
    %1547 = vmatprep.subr.bf16.mxu0 0
    %1548 = vmatpush1.bf16.msra.mxu0 0
    %1549 = vmatprep.subr.bf16.mxu0 0
    %1550 = vmatpush1.bf16.msra.mxu0 0
    %1551 = vmatprep.subr.bf16.mxu0 0
    %1552 = vmatpush1.bf16.msra.mxu0 0
    %1553 = vmatprep.subr.bf16.mxu0 0
    %1554 = vmatpush1.bf16.msra.mxu0 0
    %1555 = vmatprep.subr.bf16.mxu0 0
    %1556 = vmatpush1.bf16.msra.mxu0 0
    %1557 = vmatprep.mubr.bf16.mxu0 0
    %1558 = vmatmul.mubr.bf16.gmra.mrb[0].mxu0 %v1523
    %v1559 = vpop.f32.mrb[0].mxu0
    %v1560 = vadd.f32 0.0, %v1559
    %v1561 = vpop.f32.mrb[0].mxu0
    %v1562 = vpop.f32.mrb[0].mxu0
    %v1563 = vpop.f32.mrb[0].mxu0
    %1564 = vdwg.mxu0
    %1565 = vmatprep.subr.bf16.mxu0 0
    %1566 = vmatpush1.bf16.msra.mxu0 %v1105
    %1567 = vmatprep.subr.bf16.mxu0 0
    %1568 = vmatpush1.bf16.msra.mxu0 %v1106
    %1569 = vmatprep.subr.bf16.mxu0 0
    %1570 = vmatpush1.bf16.msra.mxu0 0
    %1571 = vmatprep.subr.bf16.mxu0 0
    %1572 = vmatpush1.bf16.msra.mxu0 0
    %1573 = vmatprep.subr.bf16.mxu0 0
    %1574 = vmatpush1.bf16.msra.mxu0 0
    %1575 = vmatprep.subr.bf16.mxu0 0
    %1576 = vmatpush1.bf16.msra.mxu0 0
    %1577 = vmatprep.subr.bf16.mxu0 0
    %1578 = vmatpush1.bf16.msra.mxu0 0
    %1579 = vmatprep.subr.bf16.mxu0 0
    %1580 = vmatpush1.bf16.msra.mxu0 0
    %1581 = vmatprep.subr.bf16.mxu0 0
    %1582 = vmatpush1.bf16.msra.mxu0 0
    %1583 = vmatprep.subr.bf16.mxu0 0
    %1584 = vmatpush1.bf16.msra.mxu0 0
    %1585 = vmatprep.subr.bf16.mxu0 0
    %1586 = vmatpush1.bf16.msra.mxu0 0
    %1587 = vmatprep.subr.bf16.mxu0 0
    %1588 = vmatpush1.bf16.msra.mxu0 0
    %1589 = vmatprep.subr.bf16.mxu0 0
    %1590 = vmatpush1.bf16.msra.mxu0 0
    %1591 = vmatprep.subr.bf16.mxu0 0
    %1592 = vmatpush1.bf16.msra.mxu0 0
    %1593 = vmatprep.subr.bf16.mxu0 0
    %1594 = vmatpush1.bf16.msra.mxu0 0
    %1595 = vmatprep.subr.bf16.mxu0 0
    %1596 = vmatpush1.bf16.msra.mxu0 0
    %1597 = vmatprep.mubr.bf16.mxu0 0
    %1598 = vmatmul.mubr.bf16.gmra.mrb[0].mxu0 %v691
    %v1599 = vpop.f32.mrb[0].mxu0
    %v1600 = vadd.f32 %v1560, %v1599
    %v1601 = vpop.f32.mrb[0].mxu0
    %v1602 = vpop.f32.mrb[0].mxu0
    %v1603 = vpop.f32.mrb[0].mxu0
    %1604 = vdwg.mxu0
    %v1605 = vadd.f32 %v1600, %v1152
    %v1606 = vxor.u32 %v1605, 2147483648
    %v1607 = vmul.f32 %v1606, 1.442695
    %v1608 = vpow.pop %v1607
    %v1609 = vadd.f32 %v1608, 1.0
    %v1610 = vrcp.pop %v1609
    %v1611 = vmul.f32 1.0, %v1610
    %v1612 = vmul.f32 %v1611, 2.0
    %v1613 = vsub.f32 %v1612, 1.0
    %v1614 = vmul.f32 %v1611, %v1511
    %1616 = vrot.lane.b32.xlu0 %v1613, 64
    %v1617 = vpop.permute.xlu0 %1616
    %v1619 = vmul.f32 %v1611, %v1617
    %1621 = vrot.lane.b32.xlu0 %v1619, 32
    %v1622 = vpop.permute.xlu0 %1621
    %v1624 = vadd.f32 %v1614, %v1622
    %v1625 = vtanh.pop %v1624
    %1627 = vrot.lane.b32.xlu0 %v1625, 64
    %v1628 = vpop.permute.xlu0 %1627
    %v1630 = vmul.f32 %v1611, %v1628
    %v1631 = vpack.c.bf16 %v1630, %v1630
    %1633 = vrot.lane.b32.xlu0 %v1631, 32
    %v1634 = vpop.permute.xlu0 %1633
    %v1636 = vsel %vm93, %v1634, 0
    %1638 = vmatprep.subr.bf16.mxu0 0
    %1639 = vmatpush1.bf16.msra.mxu0 %v1053
    %1640 = vmatprep.subr.bf16.mxu0 0
    %1641 = vmatpush1.bf16.msra.mxu0 %v1054
    %1642 = vmatprep.subr.bf16.mxu0 0
    %1643 = vmatpush1.bf16.msra.mxu0 0
    %1644 = vmatprep.subr.bf16.mxu0 0
    %1645 = vmatpush1.bf16.msra.mxu0 0
    %1646 = vmatprep.subr.bf16.mxu0 0
    %1647 = vmatpush1.bf16.msra.mxu0 0
    %1648 = vmatprep.subr.bf16.mxu0 0
    %1649 = vmatpush1.bf16.msra.mxu0 0
    %1650 = vmatprep.subr.bf16.mxu0 0
    %1651 = vmatpush1.bf16.msra.mxu0 0
    %1652 = vmatprep.subr.bf16.mxu0 0
    %1653 = vmatpush1.bf16.msra.mxu0 0
    %1654 = vmatprep.subr.bf16.mxu0 0
    %1655 = vmatpush1.bf16.msra.mxu0 0
    %1656 = vmatprep.subr.bf16.mxu0 0
    %1657 = vmatpush1.bf16.msra.mxu0 0
    %1658 = vmatprep.subr.bf16.mxu0 0
    %1659 = vmatpush1.bf16.msra.mxu0 0
    %1660 = vmatprep.subr.bf16.mxu0 0
    %1661 = vmatpush1.bf16.msra.mxu0 0
    %1662 = vmatprep.subr.bf16.mxu0 0
    %1663 = vmatpush1.bf16.msra.mxu0 0
    %1664 = vmatprep.subr.bf16.mxu0 0
    %1665 = vmatpush1.bf16.msra.mxu0 0
    %1666 = vmatprep.subr.bf16.mxu0 0
    %1667 = vmatpush1.bf16.msra.mxu0 0
    %1668 = vmatprep.subr.bf16.mxu0 0
    %1669 = vmatpush1.bf16.msra.mxu0 0
    %1670 = vmatprep.mubr.bf16.mxu0 0
    %1671 = vmatmul.mubr.bf16.gmra.mrb[0].mxu0 %v1636
    %v1672 = vpop.f32.mrb[0].mxu0
    %v1673 = vadd.f32 0.0, %v1672
    %v1674 = vpop.f32.mrb[0].mxu0
    %v1675 = vpop.f32.mrb[0].mxu0
    %v1676 = vpop.f32.mrb[0].mxu0
    %1677 = vdwg.mxu0
    %1678 = vmatprep.subr.bf16.mxu0 0
    %1679 = vmatpush1.bf16.msra.mxu0 %v1105
    %1680 = vmatprep.subr.bf16.mxu0 0
    %1681 = vmatpush1.bf16.msra.mxu0 %v1106
    %1682 = vmatprep.subr.bf16.mxu0 0
    %1683 = vmatpush1.bf16.msra.mxu0 0
    %1684 = vmatprep.subr.bf16.mxu0 0
    %1685 = vmatpush1.bf16.msra.mxu0 0
    %1686 = vmatprep.subr.bf16.mxu0 0
    %1687 = vmatpush1.bf16.msra.mxu0 0
    %1688 = vmatprep.subr.bf16.mxu0 0
    %1689 = vmatpush1.bf16.msra.mxu0 0
    %1690 = vmatprep.subr.bf16.mxu0 0
    %1691 = vmatpush1.bf16.msra.mxu0 0
    %1692 = vmatprep.subr.bf16.mxu0 0
    %1693 = vmatpush1.bf16.msra.mxu0 0
    %1694 = vmatprep.subr.bf16.mxu0 0
    %1695 = vmatpush1.bf16.msra.mxu0 0
    %1696 = vmatprep.subr.bf16.mxu0 0
    %1697 = vmatpush1.bf16.msra.mxu0 0
    %1698 = vmatprep.subr.bf16.mxu0 0
    %1699 = vmatpush1.bf16.msra.mxu0 0
    %1700 = vmatprep.subr.bf16.mxu0 0
    %1701 = vmatpush1.bf16.msra.mxu0 0
    %1702 = vmatprep.subr.bf16.mxu0 0
    %1703 = vmatpush1.bf16.msra.mxu0 0
    %1704 = vmatprep.subr.bf16.mxu0 0
    %1705 = vmatpush1.bf16.msra.mxu0 0
    %1706 = vmatprep.subr.bf16.mxu0 0
    %1707 = vmatpush1.bf16.msra.mxu0 0
    %1708 = vmatprep.subr.bf16.mxu0 0
    %1709 = vmatpush1.bf16.msra.mxu0 0
    %1710 = vmatprep.mubr.bf16.mxu0 0
    %1711 = vmatmul.mubr.bf16.gmra.mrb[0].mxu0 %v807
    %v1712 = vpop.f32.mrb[0].mxu0
    %v1713 = vadd.f32 %v1673, %v1712
    %v1714 = vpop.f32.mrb[0].mxu0
    %v1715 = vpop.f32.mrb[0].mxu0
    %v1716 = vpop.f32.mrb[0].mxu0
    %1717 = vdwg.mxu0
    %v1718 = vadd.f32 %v1713, %v1152
    %v1719 = vxor.u32 %v1718, 2147483648
    %v1720 = vmul.f32 %v1719, 1.442695
    %v1721 = vpow.pop %v1720
    %v1722 = vadd.f32 %v1721, 1.0
    %v1723 = vrcp.pop %v1722
    %v1724 = vmul.f32 1.0, %v1723
    %v1725 = vmul.f32 %v1724, 2.0
    %v1726 = vsub.f32 %v1725, 1.0
    %v1727 = vmul.f32 %v1724, %v1624
    %1729 = vrot.lane.b32.xlu0 %v1726, 64
    %v1730 = vpop.permute.xlu0 %1729
    %v1732 = vmul.f32 %v1724, %v1730
    %1734 = vrot.lane.b32.xlu0 %v1732, 32
    %v1735 = vpop.permute.xlu0 %1734
    %v1737 = vadd.f32 %v1727, %v1735
    %v1738 = vtanh.pop %v1737
    %1740 = vrot.lane.b32.xlu0 %v1738, 64
    %v1741 = vpop.permute.xlu0 %1740
    %v1743 = vmul.f32 %v1724, %v1741
    %v1744 = vpack.c.bf16 %v1743, %v1743
    %1746 = vrot.lane.b32.xlu0 %v1744, 32
    %v1747 = vpop.permute.xlu0 %1746
    %v1749 = vsel %vm93, %v1747, 0
    %1751 = vmatprep.subr.bf16.mxu0 0
    %1752 = vmatpush1.bf16.msra.mxu0 %v1053
    %1753 = vmatprep.subr.bf16.mxu0 0
    %1754 = vmatpush1.bf16.msra.mxu0 %v1054
    %1755 = vmatprep.subr.bf16.mxu0 0
    %1756 = vmatpush1.bf16.msra.mxu0 0
    %1757 = vmatprep.subr.bf16.mxu0 0
    %1758 = vmatpush1.bf16.msra.mxu0 0
    %1759 = vmatprep.subr.bf16.mxu0 0
    %1760 = vmatpush1.bf16.msra.mxu0 0
    %1761 = vmatprep.subr.bf16.mxu0 0
    %1762 = vmatpush1.bf16.msra.mxu0 0
    %1763 = vmatprep.subr.bf16.mxu0 0
    %1764 = vmatpush1.bf16.msra.mxu0 0
    %1765 = vmatprep.subr.bf16.mxu0 0
    %1766 = vmatpush1.bf16.msra.mxu0 0
    %1767 = vmatprep.subr.bf16.mxu0 0
    %1768 = vmatpush1.bf16.msra.mxu0 0
    %1769 = vmatprep.subr.bf16.mxu0 0
    %1770 = vmatpush1.bf16.msra.mxu0 0
    %1771 = vmatprep.subr.bf16.mxu0 0
    %1772 = vmatpush1.bf16.msra.mxu0 0
    %1773 = vmatprep.subr.bf16.mxu0 0
    %1774 = vmatpush1.bf16.msra.mxu0 0
    %1775 = vmatprep.subr.bf16.mxu0 0
    %1776 = vmatpush1.bf16.msra.mxu0 0
    %1777 = vmatprep.subr.bf16.mxu0 0
    %1778 = vmatpush1.bf16.msra.mxu0 0
    %1779 = vmatprep.subr.bf16.mxu0 0
    %1780 = vmatpush1.bf16.msra.mxu0 0
    %1781 = vmatprep.subr.bf16.mxu0 0
    %1782 = vmatpush1.bf16.msra.mxu0 0
    %1783 = vmatprep.mubr.bf16.mxu0 0
    %1784 = vmatmul.mubr.bf16.gmra.mrb[0].mxu0 %v1749
    %v1785 = vpop.f32.mrb[0].mxu0
    %v1786 = vadd.f32 0.0, %v1785
    %v1787 = vpop.f32.mrb[0].mxu0
    %v1788 = vpop.f32.mrb[0].mxu0
    %v1789 = vpop.f32.mrb[0].mxu0
    %1790 = vdwg.mxu0
    %1791 = vmatprep.subr.bf16.mxu0 0
    %1792 = vmatpush1.bf16.msra.mxu0 %v1105
    %1793 = vmatprep.subr.bf16.mxu0 0
    %1794 = vmatpush1.bf16.msra.mxu0 %v1106
    %1795 = vmatprep.subr.bf16.mxu0 0
    %1796 = vmatpush1.bf16.msra.mxu0 0
    %1797 = vmatprep.subr.bf16.mxu0 0
    %1798 = vmatpush1.bf16.msra.mxu0 0
    %1799 = vmatprep.subr.bf16.mxu0 0
    %1800 = vmatpush1.bf16.msra.mxu0 0
    %1801 = vmatprep.subr.bf16.mxu0 0
    %1802 = vmatpush1.bf16.msra.mxu0 0
    %1803 = vmatprep.subr.bf16.mxu0 0
    %1804 = vmatpush1.bf16.msra.mxu0 0
    %1805 = vmatprep.subr.bf16.mxu0 0
    %1806 = vmatpush1.bf16.msra.mxu0 0
    %1807 = vmatprep.subr.bf16.mxu0 0
    %1808 = vmatpush1.bf16.msra.mxu0 0
    %1809 = vmatprep.subr.bf16.mxu0 0
    %1810 = vmatpush1.bf16.msra.mxu0 0
    %1811 = vmatprep.subr.bf16.mxu0 0
    %1812 = vmatpush1.bf16.msra.mxu0 0
    %1813 = vmatprep.subr.bf16.mxu0 0
    %1814 = vmatpush1.bf16.msra.mxu0 0
    %1815 = vmatprep.subr.bf16.mxu0 0
    %1816 = vmatpush1.bf16.msra.mxu0 0
    %1817 = vmatprep.subr.bf16.mxu0 0
    %1818 = vmatpush1.bf16.msra.mxu0 0
    %1819 = vmatprep.subr.bf16.mxu0 0
    %1820 = vmatpush1.bf16.msra.mxu0 0
    %1821 = vmatprep.subr.bf16.mxu0 0
    %1822 = vmatpush1.bf16.msra.mxu0 0
    %1823 = vmatprep.mubr.bf16.mxu0 0
    %1824 = vmatmul.mubr.bf16.gmra.mrb[0].mxu0 %v923
    %v1825 = vpop.f32.mrb[0].mxu0
    %v1826 = vadd.f32 %v1786, %v1825
    %v1827 = vpop.f32.mrb[0].mxu0
    %v1828 = vpop.f32.mrb[0].mxu0
    %v1829 = vpop.f32.mrb[0].mxu0
    %1830 = vdwg.mxu0
    %v1831 = vadd.f32 %v1826, %v1152
    %v1832 = vxor.u32 %v1831, 2147483648
    %v1833 = vmul.f32 %v1832, 1.442695
    %v1834 = vpow.pop %v1833
    %v1835 = vadd.f32 %v1834, 1.0
    %v1836 = vrcp.pop %v1835
    %v1837 = vmul.f32 1.0, %v1836
    %v1838 = vmul.f32 %v1837, 2.0
    %v1839 = vsub.f32 %v1838, 1.0
    %v1840 = vmul.f32 %v1837, %v1737
    %1842 = vrot.lane.b32.xlu0 %v1839, 64
    %v1843 = vpop.permute.xlu0 %1842
    %v1845 = vmul.f32 %v1837, %v1843
    %1847 = vrot.lane.b32.xlu0 %v1845, 32
    %v1848 = vpop.permute.xlu0 %1847
    %v1850 = vadd.f32 %v1840, %v1848
    %v1851 = vtanh.pop %v1850
    %1853 = vrot.lane.b32.xlu0 %v1851, 64
    %v1854 = vpop.permute.xlu0 %1853
    %v1856 = vmul.f32 %v1837, %v1854
    %v1857 = vpack.c.bf16 %v1856, %v1856
    %1859 = vrot.lane.b32.xlu0 %v1857, 32
    %v1860 = vpop.permute.xlu0 %1859
    %v1862 = vsel %vm93, %v1860, 0
    %1864 = vmatprep.subr.bf16.mxu0 0
    %1865 = vmatpush1.bf16.msra.mxu0 %v1053
    %1866 = vmatprep.subr.bf16.mxu0 0
    %1867 = vmatpush1.bf16.msra.mxu0 %v1054
    %1868 = vmatprep.subr.bf16.mxu0 0
    %1869 = vmatpush1.bf16.msra.mxu0 0
    %1870 = vmatprep.subr.bf16.mxu0 0
    %1871 = vmatpush1.bf16.msra.mxu0 0
    %1872 = vmatprep.subr.bf16.mxu0 0
    %1873 = vmatpush1.bf16.msra.mxu0 0
    %1874 = vmatprep.subr.bf16.mxu0 0
    %1875 = vmatpush1.bf16.msra.mxu0 0
    %1876 = vmatprep.subr.bf16.mxu0 0
    %1877 = vmatpush1.bf16.msra.mxu0 0
    %1878 = vmatprep.subr.bf16.mxu0 0
    %1879 = vmatpush1.bf16.msra.mxu0 0
    %1880 = vmatprep.subr.bf16.mxu0 0
    %1881 = vmatpush1.bf16.msra.mxu0 0
    %1882 = vmatprep.subr.bf16.mxu0 0
    %1883 = vmatpush1.bf16.msra.mxu0 0
    %1884 = vmatprep.subr.bf16.mxu0 0
    %1885 = vmatpush1.bf16.msra.mxu0 0
    %1886 = vmatprep.subr.bf16.mxu0 0
    %1887 = vmatpush1.bf16.msra.mxu0 0
    %1888 = vmatprep.subr.bf16.mxu0 0
    %1889 = vmatpush1.bf16.msra.mxu0 0
    %1890 = vmatprep.subr.bf16.mxu0 0
    %1891 = vmatpush1.bf16.msra.mxu0 0
    %1892 = vmatprep.subr.bf16.mxu0 0
    %1893 = vmatpush1.bf16.msra.mxu0 0
    %1894 = vmatprep.subr.bf16.mxu0 0
    %1895 = vmatpush1.bf16.msra.mxu0 0
    %1896 = vmatprep.mubr.bf16.mxu0 0
    %1897 = vmatmul.mubr.bf16.gmra.mrb[0].mxu0 %v1862
    %v1898 = vpop.f32.mrb[0].mxu0
    %v1899 = vadd.f32 0.0, %v1898
    %v1900 = vpop.f32.mrb[0].mxu0
    %v1901 = vpop.f32.mrb[0].mxu0
    %v1902 = vpop.f32.mrb[0].mxu0
    %1903 = vdwg.mxu0
    %1905 = vrot.lane.b32.xlu0 %v1034, 32
    %v1906 = vpop.permute.xlu0 %1905
    %v1908 = vsel %vm93, %v1906, 0
    %1910 = vmatprep.subr.bf16.mxu0 0
    %1911 = vmatpush1.bf16.msra.mxu0 %v1105
    %1912 = vmatprep.subr.bf16.mxu0 0
    %1913 = vmatpush1.bf16.msra.mxu0 %v1106
    %1914 = vmatprep.subr.bf16.mxu0 0
    %1915 = vmatpush1.bf16.msra.mxu0 0
    %1916 = vmatprep.subr.bf16.mxu0 0
    %1917 = vmatpush1.bf16.msra.mxu0 0
    %1918 = vmatprep.subr.bf16.mxu0 0
    %1919 = vmatpush1.bf16.msra.mxu0 0
    %1920 = vmatprep.subr.bf16.mxu0 0
    %1921 = vmatpush1.bf16.msra.mxu0 0
    %1922 = vmatprep.subr.bf16.mxu0 0
    %1923 = vmatpush1.bf16.msra.mxu0 0
    %1924 = vmatprep.subr.bf16.mxu0 0
    %1925 = vmatpush1.bf16.msra.mxu0 0
    %1926 = vmatprep.subr.bf16.mxu0 0
    %1927 = vmatpush1.bf16.msra.mxu0 0
    %1928 = vmatprep.subr.bf16.mxu0 0
    %1929 = vmatpush1.bf16.msra.mxu0 0
    %1930 = vmatprep.subr.bf16.mxu0 0
    %1931 = vmatpush1.bf16.msra.mxu0 0
    %1932 = vmatprep.subr.bf16.mxu0 0
    %1933 = vmatpush1.bf16.msra.mxu0 0
    %1934 = vmatprep.subr.bf16.mxu0 0
    %1935 = vmatpush1.bf16.msra.mxu0 0
    %1936 = vmatprep.subr.bf16.mxu0 0
    %1937 = vmatpush1.bf16.msra.mxu0 0
    %1938 = vmatprep.subr.bf16.mxu0 0
    %1939 = vmatpush1.bf16.msra.mxu0 0
    %1940 = vmatprep.subr.bf16.mxu0 0
    %1941 = vmatpush1.bf16.msra.mxu0 0
    %1942 = vmatprep.mubr.bf16.mxu0 0
    %1943 = vmatmul.mubr.bf16.gmra.mrb[0].mxu0 %v1908
    %v1944 = vpop.f32.mrb[0].mxu0
    %v1945 = vadd.f32 %v1899, %v1944
    %v1946 = vpop.f32.mrb[0].mxu0
    %v1947 = vpop.f32.mrb[0].mxu0
    %v1948 = vpop.f32.mrb[0].mxu0
    %1949 = vdwg.mxu0
    %v1950 = vadd.f32 %v1945, %v1152
    %v1951 = vxor.u32 %v1950, 2147483648
    %v1952 = vmul.f32 %v1951, 1.442695
    %v1953 = vpow.pop %v1952
    %v1954 = vadd.f32 %v1953, 1.0
    %v1955 = vrcp.pop %v1954
    %v1956 = vmul.f32 1.0, %v1955
    %v1957 = vmul.f32 %v1956, 2.0
    %v1958 = vsub.f32 %v1957, 1.0
    %v1959 = vmul.f32 %v1956, %v1850
    %1961 = vrot.lane.b32.xlu0 %v1958, 64
    %v1962 = vpop.permute.xlu0 %1961
    %v1964 = vmul.f32 %v1956, %v1962
    %1966 = vrot.lane.b32.xlu0 %v1964, 32
    %v1967 = vpop.permute.xlu0 %1966
    %v1969 = vadd.f32 %v1959, %v1967
    %v1970 = vtanh.pop %v1969
    %1972 = vrot.lane.b32.xlu0 %v1970, 64
    %v1973 = vpop.permute.xlu0 %1972
    %v1975 = vmul.f32 %v1956, %v1973
    %v1976 = vpack.c.bf16 %v1975, %v1975
    %s1977 = scalar_lea.vmem [#allocation4], 64
    %v1978 = vld [vmem:[%s1977] sm:$0xf]
    %v1979 = vld [vmem:[%s1977 + $0x4] sm:$0xf]
    %v1980 = vld [vmem:[%s1977 + $0x8] sm:$0xf]
    %v1981 = vld [vmem:[%s1977 + $0xc] sm:$0xf]
    %v1982 = vld [vmem:[%s1977 + $0x10] sm:$0xf]
    %v1983 = vld [vmem:[%s1977 + $0x14] sm:$0xf]
    %v1984 = vld [vmem:[%s1977 + $0x18] sm:$0xf]
    %v1985 = vld [vmem:[%s1977 + $0x1c] sm:$0xf]
    %v1986 = vld [vmem:[#allocation6 + $0x2] sm:$0x1]
    %v1991 = vunpack.c.l.b16 %v1982
    %v1992 = vunpack.c.l.b16 %v1983
    %v1993 = vunpack.c.l.b16 %v1984
    %v1994 = vunpack.c.l.b16 %v1985
    %v1995 = vpack.c.b16 %v1992, %v1991
    %v1996 = vpack.c.b16 %v1994, %v1993
    %1999 = vmatprep.subr.bf16.mxu0 0
    %2000 = vmatpush1.bf16.msra.mxu0 %v1995
    %2001 = vmatprep.subr.bf16.mxu0 0
    %2002 = vmatpush1.bf16.msra.mxu0 %v1996
    %2003 = vmatprep.subr.bf16.mxu0 0
    %2004 = vmatpush1.bf16.msra.mxu0 0
    %2005 = vmatprep.subr.bf16.mxu0 0
    %2006 = vmatpush1.bf16.msra.mxu0 0
    %2007 = vmatprep.subr.bf16.mxu0 0
    %2008 = vmatpush1.bf16.msra.mxu0 0
    %2009 = vmatprep.subr.bf16.mxu0 0
    %2010 = vmatpush1.bf16.msra.mxu0 0
    %2011 = vmatprep.subr.bf16.mxu0 0
    %2012 = vmatpush1.bf16.msra.mxu0 0
    %2013 = vmatprep.subr.bf16.mxu0 0
    %2014 = vmatpush1.bf16.msra.mxu0 0
    %2015 = vmatprep.subr.bf16.mxu0 0
    %2016 = vmatpush1.bf16.msra.mxu0 0
    %2017 = vmatprep.subr.bf16.mxu0 0
    %2018 = vmatpush1.bf16.msra.mxu0 0
    %2019 = vmatprep.subr.bf16.mxu0 0
    %2020 = vmatpush1.bf16.msra.mxu0 0
    %2021 = vmatprep.subr.bf16.mxu0 0
    %2022 = vmatpush1.bf16.msra.mxu0 0
    %2023 = vmatprep.subr.bf16.mxu0 0
    %2024 = vmatpush1.bf16.msra.mxu0 0
    %2025 = vmatprep.subr.bf16.mxu0 0
    %2026 = vmatpush1.bf16.msra.mxu0 0
    %2027 = vmatprep.subr.bf16.mxu0 0
    %2028 = vmatpush1.bf16.msra.mxu0 0
    %2029 = vmatprep.subr.bf16.mxu0 0
    %2030 = vmatpush1.bf16.msra.mxu0 0
    %2031 = vmatprep.mubr.bf16.mxu0 0
    %2032 = vmatmul.mubr.bf16.gmra.mrb[0].mxu0 %v95
    %v2033 = vpop.f32.mrb[0].mxu0
    %v2034 = vadd.f32 0.0, %v2033
    %v2035 = vpop.f32.mrb[0].mxu0
    %v2036 = vpop.f32.mrb[0].mxu0
    %v2037 = vpop.f32.mrb[0].mxu0
    %2038 = vdwg.mxu0
    %v2043 = vunpack.c.l.b16 %v1978
    %v2044 = vunpack.c.l.b16 %v1979
    %v2045 = vunpack.c.l.b16 %v1980
    %v2046 = vunpack.c.l.b16 %v1981
    %v2047 = vpack.c.b16 %v2044, %v2043
    %v2048 = vpack.c.b16 %v2046, %v2045
    %2051 = vmatprep.subr.bf16.mxu0 0
    %2052 = vmatpush1.bf16.msra.mxu0 %v2047
    %2053 = vmatprep.subr.bf16.mxu0 0
    %2054 = vmatpush1.bf16.msra.mxu0 %v2048
    %2055 = vmatprep.subr.bf16.mxu0 0
    %2056 = vmatpush1.bf16.msra.mxu0 0
    %2057 = vmatprep.subr.bf16.mxu0 0
    %2058 = vmatpush1.bf16.msra.mxu0 0
    %2059 = vmatprep.subr.bf16.mxu0 0
    %2060 = vmatpush1.bf16.msra.mxu0 0
    %2061 = vmatprep.subr.bf16.mxu0 0
    %2062 = vmatpush1.bf16.msra.mxu0 0
    %2063 = vmatprep.subr.bf16.mxu0 0
    %2064 = vmatpush1.bf16.msra.mxu0 0
    %2065 = vmatprep.subr.bf16.mxu0 0
    %2066 = vmatpush1.bf16.msra.mxu0 0
    %2067 = vmatprep.subr.bf16.mxu0 0
    %2068 = vmatpush1.bf16.msra.mxu0 0
    %2069 = vmatprep.subr.bf16.mxu0 0
    %2070 = vmatpush1.bf16.msra.mxu0 0
    %2071 = vmatprep.subr.bf16.mxu0 0
    %2072 = vmatpush1.bf16.msra.mxu0 0
    %2073 = vmatprep.subr.bf16.mxu0 0
    %2074 = vmatpush1.bf16.msra.mxu0 0
    %2075 = vmatprep.subr.bf16.mxu0 0
    %2076 = vmatpush1.bf16.msra.mxu0 0
    %2077 = vmatprep.subr.bf16.mxu0 0
    %2078 = vmatpush1.bf16.msra.mxu0 0
    %2079 = vmatprep.subr.bf16.mxu0 0
    %2080 = vmatpush1.bf16.msra.mxu0 0
    %2081 = vmatprep.subr.bf16.mxu0 0
    %2082 = vmatpush1.bf16.msra.mxu0 0
    %2083 = vmatprep.mubr.bf16.mxu0 0
    %2084 = vmatmul.mubr.bf16.gmra.mrb[0].mxu0 %v1184
    %v2085 = vpop.f32.mrb[0].mxu0
    %v2086 = vadd.f32 %v2034, %v2085
    %v2087 = vpop.f32.mrb[0].mxu0
    %v2088 = vpop.f32.mrb[0].mxu0
    %v2089 = vpop.f32.mrb[0].mxu0
    %2090 = vdwg.mxu0
    %v2091 = vlaneseq
    %v2092 = vshrl.u32 %v2091, 7
    %v2093 = vsub.s32 0, %v2092
    %v2094 = vrot.slane %v1986, %v2093
    %v2095 = vadd.f32 %v2086, %v2094
    %v2096 = vxor.u32 %v2095, 2147483648
    %v2097 = vmul.f32 %v2096, 1.442695
    %v2098 = vpow.pop %v2097
    %v2099 = vadd.f32 %v2098, 1.0
    %v2100 = vrcp.pop %v2099
    %v2101 = vmul.f32 1.0, %v2100
    %v2102 = vmul.f32 %v2101, 2.0
    %v2103 = vsub.f32 %v2102, 1.0
    %v2104 = vmul.f32 %v2101, 0.0
    %2106 = vrot.lane.b32.xlu0 %v2103, 64
    %v2107 = vpop.permute.xlu0 %2106
    %v2109 = vmul.f32 %v2101, %v2107
    %2111 = vrot.lane.b32.xlu0 %v2109, 32
    %v2112 = vpop.permute.xlu0 %2111
    %v2114 = vadd.f32 %v2104, %v2112
    %v2115 = vtanh.pop %v2114
    %2117 = vrot.lane.b32.xlu0 %v2115, 64
    %v2118 = vpop.permute.xlu0 %2117
    %v2120 = vmul.f32 %v2101, %v2118
    %v2121 = vpack.c.bf16 %v2120, %v2120
    %2123 = vrot.lane.b32.xlu0 %v2121, 32
    %v2124 = vpop.permute.xlu0 %2123
    %v2126 = vsel %vm93, %v2124, 0
    %2128 = vmatprep.subr.bf16.mxu0 0
    %2129 = vmatpush1.bf16.msra.mxu0 %v1995
    %2130 = vmatprep.subr.bf16.mxu0 0
    %2131 = vmatpush1.bf16.msra.mxu0 %v1996
    %2132 = vmatprep.subr.bf16.mxu0 0
    %2133 = vmatpush1.bf16.msra.mxu0 0
    %2134 = vmatprep.subr.bf16.mxu0 0
    %2135 = vmatpush1.bf16.msra.mxu0 0
    %2136 = vmatprep.subr.bf16.mxu0 0
    %2137 = vmatpush1.bf16.msra.mxu0 0
    %2138 = vmatprep.subr.bf16.mxu0 0
    %2139 = vmatpush1.bf16.msra.mxu0 0
    %2140 = vmatprep.subr.bf16.mxu0 0
    %2141 = vmatpush1.bf16.msra.mxu0 0
    %2142 = vmatprep.subr.bf16.mxu0 0
    %2143 = vmatpush1.bf16.msra.mxu0 0
    %2144 = vmatprep.subr.bf16.mxu0 0
    %2145 = vmatpush1.bf16.msra.mxu0 0
    %2146 = vmatprep.subr.bf16.mxu0 0
    %2147 = vmatpush1.bf16.msra.mxu0 0
    %2148 = vmatprep.subr.bf16.mxu0 0
    %2149 = vmatpush1.bf16.msra.mxu0 0
    %2150 = vmatprep.subr.bf16.mxu0 0
    %2151 = vmatpush1.bf16.msra.mxu0 0
    %2152 = vmatprep.subr.bf16.mxu0 0
    %2153 = vmatpush1.bf16.msra.mxu0 0
    %2154 = vmatprep.subr.bf16.mxu0 0
    %2155 = vmatpush1.bf16.msra.mxu0 0
    %2156 = vmatprep.subr.bf16.mxu0 0
    %2157 = vmatpush1.bf16.msra.mxu0 0
    %2158 = vmatprep.subr.bf16.mxu0 0
    %2159 = vmatpush1.bf16.msra.mxu0 0
    %2160 = vmatprep.mubr.bf16.mxu0 0
    %2161 = vmatmul.mubr.bf16.gmra.mrb[0].mxu0 %v2126
    %v2162 = vpop.f32.mrb[0].mxu0
    %v2163 = vadd.f32 0.0, %v2162
    %v2164 = vpop.f32.mrb[0].mxu0
    %v2165 = vpop.f32.mrb[0].mxu0
    %v2166 = vpop.f32.mrb[0].mxu0
    %2167 = vdwg.mxu0
    %2168 = vmatprep.subr.bf16.mxu0 0
    %2169 = vmatpush1.bf16.msra.mxu0 %v2047
    %2170 = vmatprep.subr.bf16.mxu0 0
    %2171 = vmatpush1.bf16.msra.mxu0 %v2048
    %2172 = vmatprep.subr.bf16.mxu0 0
    %2173 = vmatpush1.bf16.msra.mxu0 0
    %2174 = vmatprep.subr.bf16.mxu0 0
    %2175 = vmatpush1.bf16.msra.mxu0 0
    %2176 = vmatprep.subr.bf16.mxu0 0
    %2177 = vmatpush1.bf16.msra.mxu0 0
    %2178 = vmatprep.subr.bf16.mxu0 0
    %2179 = vmatpush1.bf16.msra.mxu0 0
    %2180 = vmatprep.subr.bf16.mxu0 0
    %2181 = vmatpush1.bf16.msra.mxu0 0
    %2182 = vmatprep.subr.bf16.mxu0 0
    %2183 = vmatpush1.bf16.msra.mxu0 0
    %2184 = vmatprep.subr.bf16.mxu0 0
    %2185 = vmatpush1.bf16.msra.mxu0 0
    %2186 = vmatprep.subr.bf16.mxu0 0
    %2187 = vmatpush1.bf16.msra.mxu0 0
    %2188 = vmatprep.subr.bf16.mxu0 0
    %2189 = vmatpush1.bf16.msra.mxu0 0
    %2190 = vmatprep.subr.bf16.mxu0 0
    %2191 = vmatpush1.bf16.msra.mxu0 0
    %2192 = vmatprep.subr.bf16.mxu0 0
    %2193 = vmatpush1.bf16.msra.mxu0 0
    %2194 = vmatprep.subr.bf16.mxu0 0
    %2195 = vmatpush1.bf16.msra.mxu0 0
    %2196 = vmatprep.subr.bf16.mxu0 0
    %2197 = vmatpush1.bf16.msra.mxu0 0
    %2198 = vmatprep.subr.bf16.mxu0 0
    %2199 = vmatpush1.bf16.msra.mxu0 0
    %2200 = vmatprep.mubr.bf16.mxu0 0
    %2201 = vmatmul.mubr.bf16.gmra.mrb[0].mxu0 %v1297
    %v2202 = vpop.f32.mrb[0].mxu0
    %v2203 = vadd.f32 %v2163, %v2202
    %v2204 = vpop.f32.mrb[0].mxu0
    %v2205 = vpop.f32.mrb[0].mxu0
    %v2206 = vpop.f32.mrb[0].mxu0
    %2207 = vdwg.mxu0
    %v2208 = vadd.f32 %v2203, %v2094
    %v2209 = vxor.u32 %v2208, 2147483648
    %v2210 = vmul.f32 %v2209, 1.442695
    %v2211 = vpow.pop %v2210
    %v2212 = vadd.f32 %v2211, 1.0
    %v2213 = vrcp.pop %v2212
    %v2214 = vmul.f32 1.0, %v2213
    %v2215 = vmul.f32 %v2214, 2.0
    %v2216 = vsub.f32 %v2215, 1.0
    %v2217 = vmul.f32 %v2214, %v2114
    %2219 = vrot.lane.b32.xlu0 %v2216, 64
    %v2220 = vpop.permute.xlu0 %2219
    %v2222 = vmul.f32 %v2214, %v2220
    %2224 = vrot.lane.b32.xlu0 %v2222, 32
    %v2225 = vpop.permute.xlu0 %2224
    %v2227 = vadd.f32 %v2217, %v2225
    %v2228 = vtanh.pop %v2227
    %2230 = vrot.lane.b32.xlu0 %v2228, 64
    %v2231 = vpop.permute.xlu0 %2230
    %v2233 = vmul.f32 %v2214, %v2231
    %v2234 = vpack.c.bf16 %v2233, %v2233
    %2236 = vrot.lane.b32.xlu0 %v2234, 32
    %v2237 = vpop.permute.xlu0 %2236
    %v2239 = vsel %vm93, %v2237, 0
    %2241 = vmatprep.subr.bf16.mxu0 0
    %2242 = vmatpush1.bf16.msra.mxu0 %v1995
    %2243 = vmatprep.subr.bf16.mxu0 0
    %2244 = vmatpush1.bf16.msra.mxu0 %v1996
    %2245 = vmatprep.subr.bf16.mxu0 0
    %2246 = vmatpush1.bf16.msra.mxu0 0
    %2247 = vmatprep.subr.bf16.mxu0 0
    %2248 = vmatpush1.bf16.msra.mxu0 0
    %2249 = vmatprep.subr.bf16.mxu0 0
    %2250 = vmatpush1.bf16.msra.mxu0 0
    %2251 = vmatprep.subr.bf16.mxu0 0
    %2252 = vmatpush1.bf16.msra.mxu0 0
    %2253 = vmatprep.subr.bf16.mxu0 0
    %2254 = vmatpush1.bf16.msra.mxu0 0
    %2255 = vmatprep.subr.bf16.mxu0 0
    %2256 = vmatpush1.bf16.msra.mxu0 0
    %2257 = vmatprep.subr.bf16.mxu0 0
    %2258 = vmatpush1.bf16.msra.mxu0 0
    %2259 = vmatprep.subr.bf16.mxu0 0
    %2260 = vmatpush1.bf16.msra.mxu0 0
    %2261 = vmatprep.subr.bf16.mxu0 0
    %2262 = vmatpush1.bf16.msra.mxu0 0
    %2263 = vmatprep.subr.bf16.mxu0 0
    %2264 = vmatpush1.bf16.msra.mxu0 0
    %2265 = vmatprep.subr.bf16.mxu0 0
    %2266 = vmatpush1.bf16.msra.mxu0 0
    %2267 = vmatprep.subr.bf16.mxu0 0
    %2268 = vmatpush1.bf16.msra.mxu0 0
    %2269 = vmatprep.subr.bf16.mxu0 0
    %2270 = vmatpush1.bf16.msra.mxu0 0
    %2271 = vmatprep.subr.bf16.mxu0 0
    %2272 = vmatpush1.bf16.msra.mxu0 0
    %2273 = vmatprep.mubr.bf16.mxu0 0
    %2274 = vmatmul.mubr.bf16.gmra.mrb[0].mxu0 %v2239
    %v2275 = vpop.f32.mrb[0].mxu0
    %v2276 = vadd.f32 0.0, %v2275
    %v2277 = vpop.f32.mrb[0].mxu0
    %v2278 = vpop.f32.mrb[0].mxu0
    %v2279 = vpop.f32.mrb[0].mxu0
    %2280 = vdwg.mxu0
    %2281 = vmatprep.subr.bf16.mxu0 0
    %2282 = vmatpush1.bf16.msra.mxu0 %v2047
    %2283 = vmatprep.subr.bf16.mxu0 0
    %2284 = vmatpush1.bf16.msra.mxu0 %v2048
    %2285 = vmatprep.subr.bf16.mxu0 0
    %2286 = vmatpush1.bf16.msra.mxu0 0
    %2287 = vmatprep.subr.bf16.mxu0 0
    %2288 = vmatpush1.bf16.msra.mxu0 0
    %2289 = vmatprep.subr.bf16.mxu0 0
    %2290 = vmatpush1.bf16.msra.mxu0 0
    %2291 = vmatprep.subr.bf16.mxu0 0
    %2292 = vmatpush1.bf16.msra.mxu0 0
    %2293 = vmatprep.subr.bf16.mxu0 0
    %2294 = vmatpush1.bf16.msra.mxu0 0
    %2295 = vmatprep.subr.bf16.mxu0 0
    %2296 = vmatpush1.bf16.msra.mxu0 0
    %2297 = vmatprep.subr.bf16.mxu0 0
    %2298 = vmatpush1.bf16.msra.mxu0 0
    %2299 = vmatprep.subr.bf16.mxu0 0
    %2300 = vmatpush1.bf16.msra.mxu0 0
    %2301 = vmatprep.subr.bf16.mxu0 0
    %2302 = vmatpush1.bf16.msra.mxu0 0
    %2303 = vmatprep.subr.bf16.mxu0 0
    %2304 = vmatpush1.bf16.msra.mxu0 0
    %2305 = vmatprep.subr.bf16.mxu0 0
    %2306 = vmatpush1.bf16.msra.mxu0 0
    %2307 = vmatprep.subr.bf16.mxu0 0
    %2308 = vmatpush1.bf16.msra.mxu0 0
    %2309 = vmatprep.subr.bf16.mxu0 0
    %2310 = vmatpush1.bf16.msra.mxu0 0
    %2311 = vmatprep.subr.bf16.mxu0 0
    %2312 = vmatpush1.bf16.msra.mxu0 0
    %2313 = vmatprep.mubr.bf16.mxu0 0
    %2314 = vmatmul.mubr.bf16.gmra.mrb[0].mxu0 %v1410
    %v2315 = vpop.f32.mrb[0].mxu0
    %v2316 = vadd.f32 %v2276, %v2315
    %v2317 = vpop.f32.mrb[0].mxu0
    %v2318 = vpop.f32.mrb[0].mxu0
    %v2319 = vpop.f32.mrb[0].mxu0
    %2320 = vdwg.mxu0
    %v2321 = vadd.f32 %v2316, %v2094
    %v2322 = vxor.u32 %v2321, 2147483648
    %v2323 = vmul.f32 %v2322, 1.442695
    %v2324 = vpow.pop %v2323
    %v2325 = vadd.f32 %v2324, 1.0
    %v2326 = vrcp.pop %v2325
    %v2327 = vmul.f32 1.0, %v2326
    %v2328 = vmul.f32 %v2327, 2.0
    %v2329 = vsub.f32 %v2328, 1.0
    %v2330 = vmul.f32 %v2327, %v2227
    %2332 = vrot.lane.b32.xlu0 %v2329, 64
    %v2333 = vpop.permute.xlu0 %2332
    %v2335 = vmul.f32 %v2327, %v2333
    %2337 = vrot.lane.b32.xlu0 %v2335, 32
    %v2338 = vpop.permute.xlu0 %2337
    %v2340 = vadd.f32 %v2330, %v2338
    %v2341 = vtanh.pop %v2340
    %2343 = vrot.lane.b32.xlu0 %v2341, 64
    %v2344 = vpop.permute.xlu0 %2343
    %v2346 = vmul.f32 %v2327, %v2344
    %v2347 = vpack.c.bf16 %v2346, %v2346
    %2349 = vrot.lane.b32.xlu0 %v2347, 32
    %v2350 = vpop.permute.xlu0 %2349
    %v2352 = vsel %vm93, %v2350, 0
    %2354 = vmatprep.subr.bf16.mxu0 0
    %2355 = vmatpush1.bf16.msra.mxu0 %v1995
    %2356 = vmatprep.subr.bf16.mxu0 0
    %2357 = vmatpush1.bf16.msra.mxu0 %v1996
    %2358 = vmatprep.subr.bf16.mxu0 0
    %2359 = vmatpush1.bf16.msra.mxu0 0
    %2360 = vmatprep.subr.bf16.mxu0 0
    %2361 = vmatpush1.bf16.msra.mxu0 0
    %2362 = vmatprep.subr.bf16.mxu0 0
    %2363 = vmatpush1.bf16.msra.mxu0 0
    %2364 = vmatprep.subr.bf16.mxu0 0
    %2365 = vmatpush1.bf16.msra.mxu0 0
    %2366 = vmatprep.subr.bf16.mxu0 0
    %2367 = vmatpush1.bf16.msra.mxu0 0
    %2368 = vmatprep.subr.bf16.mxu0 0
    %2369 = vmatpush1.bf16.msra.mxu0 0
    %2370 = vmatprep.subr.bf16.mxu0 0
    %2371 = vmatpush1.bf16.msra.mxu0 0
    %2372 = vmatprep.subr.bf16.mxu0 0
    %2373 = vmatpush1.bf16.msra.mxu0 0
    %2374 = vmatprep.subr.bf16.mxu0 0
    %2375 = vmatpush1.bf16.msra.mxu0 0
    %2376 = vmatprep.subr.bf16.mxu0 0
    %2377 = vmatpush1.bf16.msra.mxu0 0
    %2378 = vmatprep.subr.bf16.mxu0 0
    %2379 = vmatpush1.bf16.msra.mxu0 0
    %2380 = vmatprep.subr.bf16.mxu0 0
    %2381 = vmatpush1.bf16.msra.mxu0 0
    %2382 = vmatprep.subr.bf16.mxu0 0
    %2383 = vmatpush1.bf16.msra.mxu0 0
    %2384 = vmatprep.subr.bf16.mxu0 0
    %2385 = vmatpush1.bf16.msra.mxu0 0
    %2386 = vmatprep.mubr.bf16.mxu0 0
    %2387 = vmatmul.mubr.bf16.gmra.mrb[0].mxu0 %v2352
    %v2388 = vpop.f32.mrb[0].mxu0
    %v2389 = vadd.f32 0.0, %v2388
    %v2390 = vpop.f32.mrb[0].mxu0
    %v2391 = vpop.f32.mrb[0].mxu0
    %v2392 = vpop.f32.mrb[0].mxu0
    %2393 = vdwg.mxu0
    %2394 = vmatprep.subr.bf16.mxu0 0
    %2395 = vmatpush1.bf16.msra.mxu0 %v2047
    %2396 = vmatprep.subr.bf16.mxu0 0
    %2397 = vmatpush1.bf16.msra.mxu0 %v2048
    %2398 = vmatprep.subr.bf16.mxu0 0
    %2399 = vmatpush1.bf16.msra.mxu0 0
    %2400 = vmatprep.subr.bf16.mxu0 0
    %2401 = vmatpush1.bf16.msra.mxu0 0
    %2402 = vmatprep.subr.bf16.mxu0 0
    %2403 = vmatpush1.bf16.msra.mxu0 0
    %2404 = vmatprep.subr.bf16.mxu0 0
    %2405 = vmatpush1.bf16.msra.mxu0 0
    %2406 = vmatprep.subr.bf16.mxu0 0
    %2407 = vmatpush1.bf16.msra.mxu0 0
    %2408 = vmatprep.subr.bf16.mxu0 0
    %2409 = vmatpush1.bf16.msra.mxu0 0
    %2410 = vmatprep.subr.bf16.mxu0 0
    %2411 = vmatpush1.bf16.msra.mxu0 0
    %2412 = vmatprep.subr.bf16.mxu0 0
    %2413 = vmatpush1.bf16.msra.mxu0 0
    %2414 = vmatprep.subr.bf16.mxu0 0
    %2415 = vmatpush1.bf16.msra.mxu0 0
    %2416 = vmatprep.subr.bf16.mxu0 0
    %2417 = vmatpush1.bf16.msra.mxu0 0
    %2418 = vmatprep.subr.bf16.mxu0 0
    %2419 = vmatpush1.bf16.msra.mxu0 0
    %2420 = vmatprep.subr.bf16.mxu0 0
    %2421 = vmatpush1.bf16.msra.mxu0 0
    %2422 = vmatprep.subr.bf16.mxu0 0
    %2423 = vmatpush1.bf16.msra.mxu0 0
    %2424 = vmatprep.subr.bf16.mxu0 0
    %2425 = vmatpush1.bf16.msra.mxu0 0
    %2426 = vmatprep.mubr.bf16.mxu0 0
    %2427 = vmatmul.mubr.bf16.gmra.mrb[0].mxu0 %v1523
    %v2428 = vpop.f32.mrb[0].mxu0
    %v2429 = vadd.f32 %v2389, %v2428
    %v2430 = vpop.f32.mrb[0].mxu0
    %v2431 = vpop.f32.mrb[0].mxu0
    %v2432 = vpop.f32.mrb[0].mxu0
    %2433 = vdwg.mxu0
    %v2434 = vadd.f32 %v2429, %v2094
    %v2435 = vxor.u32 %v2434, 2147483648
    %v2436 = vmul.f32 %v2435, 1.442695
    %v2437 = vpow.pop %v2436
    %v2438 = vadd.f32 %v2437, 1.0
    %v2439 = vrcp.pop %v2438
    %v2440 = vmul.f32 1.0, %v2439
    %v2441 = vmul.f32 %v2440, 2.0
    %v2442 = vsub.f32 %v2441, 1.0
    %v2443 = vmul.f32 %v2440, %v2340
    %2445 = vrot.lane.b32.xlu0 %v2442, 64
    %v2446 = vpop.permute.xlu0 %2445
    %v2448 = vmul.f32 %v2440, %v2446
    %2450 = vrot.lane.b32.xlu0 %v2448, 32
    %v2451 = vpop.permute.xlu0 %2450
    %v2453 = vadd.f32 %v2443, %v2451
    %v2454 = vtanh.pop %v2453
    %2456 = vrot.lane.b32.xlu0 %v2454, 64
    %v2457 = vpop.permute.xlu0 %2456
    %v2459 = vmul.f32 %v2440, %v2457
    %v2460 = vpack.c.bf16 %v2459, %v2459
    %2462 = vrot.lane.b32.xlu0 %v2460, 32
    %v2463 = vpop.permute.xlu0 %2462
    %v2465 = vsel %vm93, %v2463, 0
    %2467 = vmatprep.subr.bf16.mxu0 0
    %2468 = vmatpush1.bf16.msra.mxu0 %v1995
    %2469 = vmatprep.subr.bf16.mxu0 0
    %2470 = vmatpush1.bf16.msra.mxu0 %v1996
    %2471 = vmatprep.subr.bf16.mxu0 0
    %2472 = vmatpush1.bf16.msra.mxu0 0
    %2473 = vmatprep.subr.bf16.mxu0 0
    %2474 = vmatpush1.bf16.msra.mxu0 0
    %2475 = vmatprep.subr.bf16.mxu0 0
    %2476 = vmatpush1.bf16.msra.mxu0 0
    %2477 = vmatprep.subr.bf16.mxu0 0
    %2478 = vmatpush1.bf16.msra.mxu0 0
    %2479 = vmatprep.subr.bf16.mxu0 0
    %2480 = vmatpush1.bf16.msra.mxu0 0
    %2481 = vmatprep.subr.bf16.mxu0 0
    %2482 = vmatpush1.bf16.msra.mxu0 0
    %2483 = vmatprep.subr.bf16.mxu0 0
    %2484 = vmatpush1.bf16.msra.mxu0 0
    %2485 = vmatprep.subr.bf16.mxu0 0
    %2486 = vmatpush1.bf16.msra.mxu0 0
    %2487 = vmatprep.subr.bf16.mxu0 0
    %2488 = vmatpush1.bf16.msra.mxu0 0
    %2489 = vmatprep.subr.bf16.mxu0 0
    %2490 = vmatpush1.bf16.msra.mxu0 0
    %2491 = vmatprep.subr.bf16.mxu0 0
    %2492 = vmatpush1.bf16.msra.mxu0 0
    %2493 = vmatprep.subr.bf16.mxu0 0
    %2494 = vmatpush1.bf16.msra.mxu0 0
    %2495 = vmatprep.subr.bf16.mxu0 0
    %2496 = vmatpush1.bf16.msra.mxu0 0
    %2497 = vmatprep.subr.bf16.mxu0 0
    %2498 = vmatpush1.bf16.msra.mxu0 0
    %2499 = vmatprep.mubr.bf16.mxu0 0
    %2500 = vmatmul.mubr.bf16.gmra.mrb[0].mxu0 %v2465
    %v2501 = vpop.f32.mrb[0].mxu0
    %v2502 = vadd.f32 0.0, %v2501
    %v2503 = vpop.f32.mrb[0].mxu0
    %v2504 = vpop.f32.mrb[0].mxu0
    %v2505 = vpop.f32.mrb[0].mxu0
    %2506 = vdwg.mxu0
    %2507 = vmatprep.subr.bf16.mxu0 0
    %2508 = vmatpush1.bf16.msra.mxu0 %v2047
    %2509 = vmatprep.subr.bf16.mxu0 0
    %2510 = vmatpush1.bf16.msra.mxu0 %v2048
    %2511 = vmatprep.subr.bf16.mxu0 0
    %2512 = vmatpush1.bf16.msra.mxu0 0
    %2513 = vmatprep.subr.bf16.mxu0 0
    %2514 = vmatpush1.bf16.msra.mxu0 0
    %2515 = vmatprep.subr.bf16.mxu0 0
    %2516 = vmatpush1.bf16.msra.mxu0 0
    %2517 = vmatprep.subr.bf16.mxu0 0
    %2518 = vmatpush1.bf16.msra.mxu0 0
    %2519 = vmatprep.subr.bf16.mxu0 0
    %2520 = vmatpush1.bf16.msra.mxu0 0
    %2521 = vmatprep.subr.bf16.mxu0 0
    %2522 = vmatpush1.bf16.msra.mxu0 0
    %2523 = vmatprep.subr.bf16.mxu0 0
    %2524 = vmatpush1.bf16.msra.mxu0 0
    %2525 = vmatprep.subr.bf16.mxu0 0
    %2526 = vmatpush1.bf16.msra.mxu0 0
    %2527 = vmatprep.subr.bf16.mxu0 0
    %2528 = vmatpush1.bf16.msra.mxu0 0
    %2529 = vmatprep.subr.bf16.mxu0 0
    %2530 = vmatpush1.bf16.msra.mxu0 0
    %2531 = vmatprep.subr.bf16.mxu0 0
    %2532 = vmatpush1.bf16.msra.mxu0 0
    %2533 = vmatprep.subr.bf16.mxu0 0
    %2534 = vmatpush1.bf16.msra.mxu0 0
    %2535 = vmatprep.subr.bf16.mxu0 0
    %2536 = vmatpush1.bf16.msra.mxu0 0
    %2537 = vmatprep.subr.bf16.mxu0 0
    %2538 = vmatpush1.bf16.msra.mxu0 0
    %2539 = vmatprep.mubr.bf16.mxu0 0
    %2540 = vmatmul.mubr.bf16.gmra.mrb[0].mxu0 %v1636
    %v2541 = vpop.f32.mrb[0].mxu0
    %v2542 = vadd.f32 %v2502, %v2541
    %v2543 = vpop.f32.mrb[0].mxu0
    %v2544 = vpop.f32.mrb[0].mxu0
    %v2545 = vpop.f32.mrb[0].mxu0
    %2546 = vdwg.mxu0
    %v2547 = vadd.f32 %v2542, %v2094
    %v2548 = vxor.u32 %v2547, 2147483648
    %v2549 = vmul.f32 %v2548, 1.442695
    %v2550 = vpow.pop %v2549
    %v2551 = vadd.f32 %v2550, 1.0
    %v2552 = vrcp.pop %v2551
    %v2553 = vmul.f32 1.0, %v2552
    %v2554 = vmul.f32 %v2553, 2.0
    %v2555 = vsub.f32 %v2554, 1.0
    %v2556 = vmul.f32 %v2553, %v2453
    %2558 = vrot.lane.b32.xlu0 %v2555, 64
    %v2559 = vpop.permute.xlu0 %2558
    %v2561 = vmul.f32 %v2553, %v2559
    %2563 = vrot.lane.b32.xlu0 %v2561, 32
    %v2564 = vpop.permute.xlu0 %2563
    %v2566 = vadd.f32 %v2556, %v2564
    %v2567 = vtanh.pop %v2566
    %2569 = vrot.lane.b32.xlu0 %v2567, 64
    %v2570 = vpop.permute.xlu0 %2569
    %v2572 = vmul.f32 %v2553, %v2570
    %v2573 = vpack.c.bf16 %v2572, %v2572
    %2575 = vrot.lane.b32.xlu0 %v2573, 32
    %v2576 = vpop.permute.xlu0 %2575
    %v2578 = vsel %vm93, %v2576, 0
    %2580 = vmatprep.subr.bf16.mxu0 0
    %2581 = vmatpush1.bf16.msra.mxu0 %v1995
    %2582 = vmatprep.subr.bf16.mxu0 0
    %2583 = vmatpush1.bf16.msra.mxu0 %v1996
    %2584 = vmatprep.subr.bf16.mxu0 0
    %2585 = vmatpush1.bf16.msra.mxu0 0
    %2586 = vmatprep.subr.bf16.mxu0 0
    %2587 = vmatpush1.bf16.msra.mxu0 0
    %2588 = vmatprep.subr.bf16.mxu0 0
    %2589 = vmatpush1.bf16.msra.mxu0 0
    %2590 = vmatprep.subr.bf16.mxu0 0
    %2591 = vmatpush1.bf16.msra.mxu0 0
    %2592 = vmatprep.subr.bf16.mxu0 0
    %2593 = vmatpush1.bf16.msra.mxu0 0
    %2594 = vmatprep.subr.bf16.mxu0 0
    %2595 = vmatpush1.bf16.msra.mxu0 0
    %2596 = vmatprep.subr.bf16.mxu0 0
    %2597 = vmatpush1.bf16.msra.mxu0 0
    %2598 = vmatprep.subr.bf16.mxu0 0
    %2599 = vmatpush1.bf16.msra.mxu0 0
    %2600 = vmatprep.subr.bf16.mxu0 0
    %2601 = vmatpush1.bf16.msra.mxu0 0
    %2602 = vmatprep.subr.bf16.mxu0 0
    %2603 = vmatpush1.bf16.msra.mxu0 0
    %2604 = vmatprep.subr.bf16.mxu0 0
    %2605 = vmatpush1.bf16.msra.mxu0 0
    %2606 = vmatprep.subr.bf16.mxu0 0
    %2607 = vmatpush1.bf16.msra.mxu0 0
    %2608 = vmatprep.subr.bf16.mxu0 0
    %2609 = vmatpush1.bf16.msra.mxu0 0
    %2610 = vmatprep.subr.bf16.mxu0 0
    %2611 = vmatpush1.bf16.msra.mxu0 0
    %2612 = vmatprep.mubr.bf16.mxu0 0
    %2613 = vmatmul.mubr.bf16.gmra.mrb[0].mxu0 %v2578
    %v2614 = vpop.f32.mrb[0].mxu0
    %v2615 = vadd.f32 0.0, %v2614
    %v2616 = vpop.f32.mrb[0].mxu0
    %v2617 = vpop.f32.mrb[0].mxu0
    %v2618 = vpop.f32.mrb[0].mxu0
    %2619 = vdwg.mxu0
    %2620 = vmatprep.subr.bf16.mxu0 0
    %2621 = vmatpush1.bf16.msra.mxu0 %v2047
    %2622 = vmatprep.subr.bf16.mxu0 0
    %2623 = vmatpush1.bf16.msra.mxu0 %v2048
    %2624 = vmatprep.subr.bf16.mxu0 0
    %2625 = vmatpush1.bf16.msra.mxu0 0
    %2626 = vmatprep.subr.bf16.mxu0 0
    %2627 = vmatpush1.bf16.msra.mxu0 0
    %2628 = vmatprep.subr.bf16.mxu0 0
    %2629 = vmatpush1.bf16.msra.mxu0 0
    %2630 = vmatprep.subr.bf16.mxu0 0
    %2631 = vmatpush1.bf16.msra.mxu0 0
    %2632 = vmatprep.subr.bf16.mxu0 0
    %2633 = vmatpush1.bf16.msra.mxu0 0
    %2634 = vmatprep.subr.bf16.mxu0 0
    %2635 = vmatpush1.bf16.msra.mxu0 0
    %2636 = vmatprep.subr.bf16.mxu0 0
    %2637 = vmatpush1.bf16.msra.mxu0 0
    %2638 = vmatprep.subr.bf16.mxu0 0
    %2639 = vmatpush1.bf16.msra.mxu0 0
    %2640 = vmatprep.subr.bf16.mxu0 0
    %2641 = vmatpush1.bf16.msra.mxu0 0
    %2642 = vmatprep.subr.bf16.mxu0 0
    %2643 = vmatpush1.bf16.msra.mxu0 0
    %2644 = vmatprep.subr.bf16.mxu0 0
    %2645 = vmatpush1.bf16.msra.mxu0 0
    %2646 = vmatprep.subr.bf16.mxu0 0
    %2647 = vmatpush1.bf16.msra.mxu0 0
    %2648 = vmatprep.subr.bf16.mxu0 0
    %2649 = vmatpush1.bf16.msra.mxu0 0
    %2650 = vmatprep.subr.bf16.mxu0 0
    %2651 = vmatpush1.bf16.msra.mxu0 0
    %2652 = vmatprep.mubr.bf16.mxu0 0
    %2653 = vmatmul.mubr.bf16.gmra.mrb[0].mxu0 %v1749
    %v2654 = vpop.f32.mrb[0].mxu0
    %v2655 = vadd.f32 %v2615, %v2654
    %v2656 = vpop.f32.mrb[0].mxu0
    %v2657 = vpop.f32.mrb[0].mxu0
    %v2658 = vpop.f32.mrb[0].mxu0
    %2659 = vdwg.mxu0
    %v2660 = vadd.f32 %v2655, %v2094
    %v2661 = vxor.u32 %v2660, 2147483648
    %v2662 = vmul.f32 %v2661, 1.442695
    %v2663 = vpow.pop %v2662
    %v2664 = vadd.f32 %v2663, 1.0
    %v2665 = vrcp.pop %v2664
    %v2666 = vmul.f32 1.0, %v2665
    %v2667 = vmul.f32 %v2666, 2.0
    %v2668 = vsub.f32 %v2667, 1.0
    %v2669 = vmul.f32 %v2666, %v2566
    %2671 = vrot.lane.b32.xlu0 %v2668, 64
    %v2672 = vpop.permute.xlu0 %2671
    %v2674 = vmul.f32 %v2666, %v2672
    %2676 = vrot.lane.b32.xlu0 %v2674, 32
    %v2677 = vpop.permute.xlu0 %2676
    %v2679 = vadd.f32 %v2669, %v2677
    %v2680 = vtanh.pop %v2679
    %2682 = vrot.lane.b32.xlu0 %v2680, 64
    %v2683 = vpop.permute.xlu0 %2682
    %v2685 = vmul.f32 %v2666, %v2683
    %v2686 = vpack.c.bf16 %v2685, %v2685
    %2688 = vrot.lane.b32.xlu0 %v2686, 32
    %v2689 = vpop.permute.xlu0 %2688
    %v2691 = vsel %vm93, %v2689, 0
    %2693 = vmatprep.subr.bf16.mxu0 0
    %2694 = vmatpush1.bf16.msra.mxu0 %v1995
    %2695 = vmatprep.subr.bf16.mxu0 0
    %2696 = vmatpush1.bf16.msra.mxu0 %v1996
    %2697 = vmatprep.subr.bf16.mxu0 0
    %2698 = vmatpush1.bf16.msra.mxu0 0
    %2699 = vmatprep.subr.bf16.mxu0 0
    %2700 = vmatpush1.bf16.msra.mxu0 0
    %2701 = vmatprep.subr.bf16.mxu0 0
    %2702 = vmatpush1.bf16.msra.mxu0 0
    %2703 = vmatprep.subr.bf16.mxu0 0
    %2704 = vmatpush1.bf16.msra.mxu0 0
    %2705 = vmatprep.subr.bf16.mxu0 0
    %2706 = vmatpush1.bf16.msra.mxu0 0
    %2707 = vmatprep.subr.bf16.mxu0 0
    %2708 = vmatpush1.bf16.msra.mxu0 0
    %2709 = vmatprep.subr.bf16.mxu0 0
    %2710 = vmatpush1.bf16.msra.mxu0 0
    %2711 = vmatprep.subr.bf16.mxu0 0
    %2712 = vmatpush1.bf16.msra.mxu0 0
    %2713 = vmatprep.subr.bf16.mxu0 0
    %2714 = vmatpush1.bf16.msra.mxu0 0
    %2715 = vmatprep.subr.bf16.mxu0 0
    %2716 = vmatpush1.bf16.msra.mxu0 0
    %2717 = vmatprep.subr.bf16.mxu0 0
    %2718 = vmatpush1.bf16.msra.mxu0 0
    %2719 = vmatprep.subr.bf16.mxu0 0
    %2720 = vmatpush1.bf16.msra.mxu0 0
    %2721 = vmatprep.subr.bf16.mxu0 0
    %2722 = vmatpush1.bf16.msra.mxu0 0
    %2723 = vmatprep.subr.bf16.mxu0 0
    %2724 = vmatpush1.bf16.msra.mxu0 0
    %2725 = vmatprep.mubr.bf16.mxu0 0
    %2726 = vmatmul.mubr.bf16.gmra.mrb[0].mxu0 %v2691
    %v2727 = vpop.f32.mrb[0].mxu0
    %v2728 = vadd.f32 0.0, %v2727
    %v2729 = vpop.f32.mrb[0].mxu0
    %v2730 = vpop.f32.mrb[0].mxu0
    %v2731 = vpop.f32.mrb[0].mxu0
    %2732 = vdwg.mxu0
    %2733 = vmatprep.subr.bf16.mxu0 0
    %2734 = vmatpush1.bf16.msra.mxu0 %v2047
    %2735 = vmatprep.subr.bf16.mxu0 0
    %2736 = vmatpush1.bf16.msra.mxu0 %v2048
    %2737 = vmatprep.subr.bf16.mxu0 0
    %2738 = vmatpush1.bf16.msra.mxu0 0
    %2739 = vmatprep.subr.bf16.mxu0 0
    %2740 = vmatpush1.bf16.msra.mxu0 0
    %2741 = vmatprep.subr.bf16.mxu0 0
    %2742 = vmatpush1.bf16.msra.mxu0 0
    %2743 = vmatprep.subr.bf16.mxu0 0
    %2744 = vmatpush1.bf16.msra.mxu0 0
    %2745 = vmatprep.subr.bf16.mxu0 0
    %2746 = vmatpush1.bf16.msra.mxu0 0
    %2747 = vmatprep.subr.bf16.mxu0 0
    %2748 = vmatpush1.bf16.msra.mxu0 0
    %2749 = vmatprep.subr.bf16.mxu0 0
    %2750 = vmatpush1.bf16.msra.mxu0 0
    %2751 = vmatprep.subr.bf16.mxu0 0
    %2752 = vmatpush1.bf16.msra.mxu0 0
    %2753 = vmatprep.subr.bf16.mxu0 0
    %2754 = vmatpush1.bf16.msra.mxu0 0
    %2755 = vmatprep.subr.bf16.mxu0 0
    %2756 = vmatpush1.bf16.msra.mxu0 0
    %2757 = vmatprep.subr.bf16.mxu0 0
    %2758 = vmatpush1.bf16.msra.mxu0 0
    %2759 = vmatprep.subr.bf16.mxu0 0
    %2760 = vmatpush1.bf16.msra.mxu0 0
    %2761 = vmatprep.subr.bf16.mxu0 0
    %2762 = vmatpush1.bf16.msra.mxu0 0
    %2763 = vmatprep.subr.bf16.mxu0 0
    %2764 = vmatpush1.bf16.msra.mxu0 0
    %2765 = vmatprep.mubr.bf16.mxu0 0
    %2766 = vmatmul.mubr.bf16.gmra.mrb[0].mxu0 %v1862
    %v2767 = vpop.f32.mrb[0].mxu0
    %v2768 = vadd.f32 %v2728, %v2767
    %v2769 = vpop.f32.mrb[0].mxu0
    %v2770 = vpop.f32.mrb[0].mxu0
    %v2771 = vpop.f32.mrb[0].mxu0
    %2772 = vdwg.mxu0
    %v2773 = vadd.f32 %v2768, %v2094
    %v2774 = vxor.u32 %v2773, 2147483648
    %v2775 = vmul.f32 %v2774, 1.442695
    %v2776 = vpow.pop %v2775
    %v2777 = vadd.f32 %v2776, 1.0
    %v2778 = vrcp.pop %v2777
    %v2779 = vmul.f32 1.0, %v2778
    %v2780 = vmul.f32 %v2779, 2.0
    %v2781 = vsub.f32 %v2780, 1.0
    %v2782 = vmul.f32 %v2779, %v2679
    %2784 = vrot.lane.b32.xlu0 %v2781, 64
    %v2785 = vpop.permute.xlu0 %2784
    %v2787 = vmul.f32 %v2779, %v2785
    %2789 = vrot.lane.b32.xlu0 %v2787, 32
    %v2790 = vpop.permute.xlu0 %2789
    %v2792 = vadd.f32 %v2782, %v2790
    %v2793 = vtanh.pop %v2792
    %2795 = vrot.lane.b32.xlu0 %v2793, 64
    %v2796 = vpop.permute.xlu0 %2795
    %v2798 = vmul.f32 %v2779, %v2796
    %v2799 = vpack.c.bf16 %v2798, %v2798
    %2801 = vrot.lane.b32.xlu0 %v2799, 32
    %v2802 = vpop.permute.xlu0 %2801
    %v2804 = vsel %vm93, %v2802, 0
    %2806 = vmatprep.subr.bf16.mxu0 0
    %2807 = vmatpush1.bf16.msra.mxu0 %v1995
    %2808 = vmatprep.subr.bf16.mxu0 0
    %2809 = vmatpush1.bf16.msra.mxu0 %v1996
    %2810 = vmatprep.subr.bf16.mxu0 0
    %2811 = vmatpush1.bf16.msra.mxu0 0
    %2812 = vmatprep.subr.bf16.mxu0 0
    %2813 = vmatpush1.bf16.msra.mxu0 0
    %2814 = vmatprep.subr.bf16.mxu0 0
    %2815 = vmatpush1.bf16.msra.mxu0 0
    %2816 = vmatprep.subr.bf16.mxu0 0
    %2817 = vmatpush1.bf16.msra.mxu0 0
    %2818 = vmatprep.subr.bf16.mxu0 0
    %2819 = vmatpush1.bf16.msra.mxu0 0
    %2820 = vmatprep.subr.bf16.mxu0 0
    %2821 = vmatpush1.bf16.msra.mxu0 0
    %2822 = vmatprep.subr.bf16.mxu0 0
    %2823 = vmatpush1.bf16.msra.mxu0 0
    %2824 = vmatprep.subr.bf16.mxu0 0
    %2825 = vmatpush1.bf16.msra.mxu0 0
    %2826 = vmatprep.subr.bf16.mxu0 0
    %2827 = vmatpush1.bf16.msra.mxu0 0
    %2828 = vmatprep.subr.bf16.mxu0 0
    %2829 = vmatpush1.bf16.msra.mxu0 0
    %2830 = vmatprep.subr.bf16.mxu0 0
    %2831 = vmatpush1.bf16.msra.mxu0 0
    %2832 = vmatprep.subr.bf16.mxu0 0
    %2833 = vmatpush1.bf16.msra.mxu0 0
    %2834 = vmatprep.subr.bf16.mxu0 0
    %2835 = vmatpush1.bf16.msra.mxu0 0
    %2836 = vmatprep.subr.bf16.mxu0 0
    %2837 = vmatpush1.bf16.msra.mxu0 0
    %2838 = vmatprep.mubr.bf16.mxu0 0
    %2839 = vmatmul.mubr.bf16.gmra.mrb[0].mxu0 %v2804
    %v2840 = vpop.f32.mrb[0].mxu0
    %v2841 = vadd.f32 0.0, %v2840
    %v2842 = vpop.f32.mrb[0].mxu0
    %v2843 = vpop.f32.mrb[0].mxu0
    %v2844 = vpop.f32.mrb[0].mxu0
    %2845 = vdwg.mxu0
    %2847 = vrot.lane.b32.xlu0 %v1976, 32
    %v2848 = vpop.permute.xlu0 %2847
    %v2850 = vsel %vm93, %v2848, 0
    %2852 = vmatprep.subr.bf16.mxu0 0
    %2853 = vmatpush1.bf16.msra.mxu0 %v2047
    %2854 = vmatprep.subr.bf16.mxu0 0
    %2855 = vmatpush1.bf16.msra.mxu0 %v2048
    %2856 = vmatprep.subr.bf16.mxu0 0
    %2857 = vmatpush1.bf16.msra.mxu0 0
    %2858 = vmatprep.subr.bf16.mxu0 0
    %2859 = vmatpush1.bf16.msra.mxu0 0
    %2860 = vmatprep.subr.bf16.mxu0 0
    %2861 = vmatpush1.bf16.msra.mxu0 0
    %2862 = vmatprep.subr.bf16.mxu0 0
    %2863 = vmatpush1.bf16.msra.mxu0 0
    %2864 = vmatprep.subr.bf16.mxu0 0
    %2865 = vmatpush1.bf16.msra.mxu0 0
    %2866 = vmatprep.subr.bf16.mxu0 0
    %2867 = vmatpush1.bf16.msra.mxu0 0
    %2868 = vmatprep.subr.bf16.mxu0 0
    %2869 = vmatpush1.bf16.msra.mxu0 0
    %2870 = vmatprep.subr.bf16.mxu0 0
    %2871 = vmatpush1.bf16.msra.mxu0 0
    %2872 = vmatprep.subr.bf16.mxu0 0
    %2873 = vmatpush1.bf16.msra.mxu0 0
    %2874 = vmatprep.subr.bf16.mxu0 0
    %2875 = vmatpush1.bf16.msra.mxu0 0
    %2876 = vmatprep.subr.bf16.mxu0 0
    %2877 = vmatpush1.bf16.msra.mxu0 0
    %2878 = vmatprep.subr.bf16.mxu0 0
    %2879 = vmatpush1.bf16.msra.mxu0 0
    %2880 = vmatprep.subr.bf16.mxu0 0
    %2881 = vmatpush1.bf16.msra.mxu0 0
    %2882 = vmatprep.subr.bf16.mxu0 0
    %2883 = vmatpush1.bf16.msra.mxu0 0
    %2884 = vmatprep.mubr.bf16.mxu0 0
    %2885 = vmatmul.mubr.bf16.gmra.mrb[0].mxu0 %v2850
    %v2886 = vpop.f32.mrb[0].mxu0
    %v2887 = vadd.f32 %v2841, %v2886
    %v2888 = vpop.f32.mrb[0].mxu0
    %v2889 = vpop.f32.mrb[0].mxu0
    %v2890 = vpop.f32.mrb[0].mxu0
    %2891 = vdwg.mxu0
    %v2892 = vadd.f32 %v2887, %v2094
    %v2893 = vxor.u32 %v2892, 2147483648
    %v2894 = vmul.f32 %v2893, 1.442695
    %v2895 = vpow.pop %v2894
    %v2896 = vadd.f32 %v2895, 1.0
    %v2897 = vrcp.pop %v2896
    %v2898 = vmul.f32 1.0, %v2897
    %v2899 = vmul.f32 %v2898, 2.0
    %v2900 = vsub.f32 %v2899, 1.0
    %v2901 = vmul.f32 %v2898, %v2792
    %2903 = vrot.lane.b32.xlu0 %v2900, 64
    %v2904 = vpop.permute.xlu0 %2903
    %v2906 = vmul.f32 %v2898, %v2904
    %2908 = vrot.lane.b32.xlu0 %v2906, 32
    %v2909 = vpop.permute.xlu0 %2908
    %v2911 = vadd.f32 %v2901, %v2909
    %v2912 = vtanh.pop %v2911
    %2914 = vrot.lane.b32.xlu0 %v2912, 64
    %v2915 = vpop.permute.xlu0 %2914
    %v2917 = vmul.f32 %v2898, %v2915
    %v2918 = vld [vmem:[#allocation6 + $0x3] sm:$0x1]
    %v2919 = vld [vmem:[%s3] sm:$0xff]
    %2921 = vrot.lane.b32.xlu0 %v2919, 96
    %v2922 = vpop.permute.xlu0 %2921
    %v2924 = vmul.f32 %v2917, %v2922
    %2926 = vrot.lane.b32.xlu0 %v2924, 32
    %v2927 = vpop.permute.xlu0 %2926
    %v2929 = vsel %vm93, %v2927, 0.0
    %2930 = vadd.xlane.f32.xlu0 %v2929
    %v2931 = vpop.xlane.xlu0 %2930
    %v2932 = vlaneseq
    %v2933 = vshrl.u32 %v2932, 7
    %v2934 = vsub.s32 0, %v2933
    %v2935 = vrot.slane %v2918, %v2934
    %v2936 = vadd.f32 %v2931, %v2935
    %vm2937 = vcmask 7168
    %2938 = vst.msk [vmem:[%s4] sm:$0xff] %vm2937, %v2936
    // Predicated region
    $region30: #{tpu_custom_call.1} parent=1 // pred_check
      _
    $region31: #{tpu_custom_call.1} parent=1 // pred_check_branch
      %2940 = sbr.rel (0) target = $region33
    $region32: #{tpu_custom_call.1} parent=1 // pred_region
      _
    $region33: #{tpu_custom_call.1} parent=1 // pred_fallthru
      _
    // Predicated region
    $region34: #{tpu_custom_call.1} parent=1 // pred_check
      _
    $region35: #{tpu_custom_call.1} parent=1 // pred_check_branch
      %2942 = sbr.rel (0) target = $region37
    $region36: #{tpu_custom_call.1} parent=1 // pred_region
      _
    $region37: #{tpu_custom_call.1} parent=1 // pred_fallthru
      _
    %2943 = vsyncpa [#allocation3], 1
    %2944 = vsyncpa [#allocation5], 1

</llo_original>
